<compile_context>
chip_gen: v6e
topology: v6e:2x2x1
jax: 0.10.0
libtpu: 0.0.40
codegen_flags: <defaults>
</compile_context>

<pallas_src>
import functools

import jax
import jax.numpy as jnp
from jax.experimental import pallas as pl
from jax.experimental.pallas import tpu as pltpu


def _attention_gate_kernel(x_ref, wqkv_ref, bqkv_ref, wo_ref, bo_ref, o_ref,
                           *, batch, seq, dim, num_heads, head_dim):
    x = x_ref[...]                                                  # (B*S, D)

    # Fused Q/K/V projection: a single MXU matmul, lane-dense 3D-wide result.
    qkv = (jnp.dot(x, wqkv_ref[...], preferred_element_type=jnp.float32)
           + bqkv_ref[...])                                         # (B*S, 3D)

    # Recover batch structure; the lane (minor) dim is untouched so this
    # reshape is layout-cheap.
    qkv3 = qkv.reshape(batch, seq, 3 * dim)                         # (B, S, 3D)
    q = qkv3[:, :, :dim]              # scale already folded into W_q / b_q
    k = qkv3[:, :, dim:2 * dim]
    v = qkv3[:, :, 2 * dim:]

    # Per-head attention, batched over the batch axis with dot_general-style
    # einsums (contraction on head_dim -> no materialized K transpose).
    # TODO(synk): batch heads too ('bqhd,bkhd->bhqk') at real head_dim sizes,
    # where the head-splitting relayout is worth it.
    head_outs = []
    for h in range(num_heads):        # static loop, num_heads is small
        lo = h * head_dim
        hi = lo + head_dim
        qh = q[:, :, lo:hi]                                         # (B, S, hd)
        kh = k[:, :, lo:hi]
        vh = v[:, :, lo:hi]

        s = jnp.einsum('bqd,bkd->bqk', qh, kh,
                       preferred_element_type=jnp.float32)          # (B, S, S)
        s = s - jnp.max(s, axis=-1, keepdims=True)
        p = jnp.exp(s)
        denom = jnp.sum(p, axis=-1, keepdims=True)                  # (B, S, 1)
        ctx_h = jnp.einsum('bqk,bkd->bqd', p, vh,
                           preferred_element_type=jnp.float32)      # (B, S, hd)
        # Normalize after P@V with an EUP approximate reciprocal (no divides).
        head_outs.append(ctx_h * pl.reciprocal(denom, approx=True))

    ctx = jnp.concatenate(head_outs, axis=-1)                       # (B, S, D)
    ctx = ctx.reshape(batch * seq, dim)                             # (B*S, D)

    # Output projection against the lane-padded weight -> lane-dense store.
    out = (jnp.dot(ctx, wo_ref[...], preferred_element_type=jnp.float32)
           + bo_ref[...])                                           # (B*S, Dp)
    o_ref[...] = out.astype(o_ref.dtype)


def pack_params(params, dim, num_heads):
    """One-time host-side packing: fuse QKV, fold scale, lane-pad out proj."""
    head_dim = dim // num_heads
    scale = head_dim ** (-0.5)
    dp = max(128, ((dim + 127) // 128) * 128)   # lane-dense output width

    wqkv = jnp.concatenate(
        [params["wq"] * scale, params["wk"], params["wv"]], axis=1)  # (D, 3D)
    bqkv = jnp.concatenate(
        [params["bq"] * scale, params["bk"], params["bv"]], axis=1)  # (1, 3D)
    wo = jnp.zeros((dim, dp), params["wo"].dtype).at[:, :dim].set(params["wo"])
    bo = jnp.zeros((1, dp), params["bo"].dtype).at[:, :dim].set(params["bo"])
    return {"wqkv": wqkv, "bqkv": bqkv, "wo": wo, "bo": bo}


def attention_gate(x, packed, num_heads):
    B, S, D = x.shape
    head_dim = D // num_heads
    Dp = packed["wo"].shape[1]
    BS = B * S

    x_flat = x.reshape(BS, D)   # host-side flatten for the fused projection

    kernel = functools.partial(_attention_gate_kernel, batch=B, seq=S, dim=D,
                               num_heads=num_heads, head_dim=head_dim)

    # Whole problem fits easily in VMEM -> single grid step (no per-step
    # pipeline overhead). At real model sizes, reintroduce a parallel
    # batch/seq grid axis (keeps v7x's second TensorCore busy) and K-tile the
    # projections to respect the 64 MiB VMEM budget.
    out = pl.pallas_call(
        kernel,
        out_shape=jax.ShapeDtypeStruct((BS, Dp), x.dtype),
        grid_spec=pltpu.PrefetchScalarGridSpec(
            num_scalar_prefetch=0,
            grid=(1,),
            in_specs=[
                pl.BlockSpec((BS, D), lambda i: (0, 0)),        # x (flattened)
                pl.BlockSpec((D, 3 * D), lambda i: (0, 0)),     # fused W_qkv
                pl.BlockSpec((1, 3 * D), lambda i: (0, 0)),     # fused b_qkv
                pl.BlockSpec((D, Dp), lambda i: (0, 0)),        # padded W_o
                pl.BlockSpec((1, Dp), lambda i: (0, 0)),        # padded b_o
            ],
            out_specs=pl.BlockSpec((BS, Dp), lambda i: (0, 0)),
        ),
        compiler_params=pltpu.CompilerParams(
            dimension_semantics=("arbitrary",)),
    )(x_flat, packed["wqkv"], packed["bqkv"], packed["wo"], packed["bo"])

    return out[:, :D].reshape(B, S, D)


def attention_gate_reference(x, params, num_heads):
    """Pure-JAX reference mirroring the PyTorch forward (eval mode)."""
    B, S, D = x.shape
    hd = D // num_heads
    scale = hd ** (-0.5)

    def lin(t, w, b):
        return t @ w + b[0]

    q = lin(x, params["wq"], params["bq"]).reshape(B, S, num_heads, hd).transpose(0, 2, 1, 3)
    k = lin(x, params["wk"], params["bk"]).reshape(B, S, num_heads, hd).transpose(0, 2, 1, 3)
    v = lin(x, params["wv"], params["bv"]).reshape(B, S, num_heads, hd).transpose(0, 2, 1, 3)
    scores = jnp.einsum("bhqd,bhkd->bhqk", q, k) * scale
    w = jax.nn.softmax(scores, axis=-1)
    ctx = jnp.einsum("bhqk,bhkd->bhqd", w, v).transpose(0, 2, 1, 3).reshape(B, S, D)
    return lin(ctx, params["wo"], params["bo"])


def init_params(key, dim):
    """Deterministic parameter init (weights stored as (in, out); biases as (1, out))."""
    ks = jax.random.split(key, 8)
    bound = 1.0 / (dim ** 0.5)

    def u(k, shape):
        return jax.random.uniform(k, shape, jnp.float32, -bound, bound)

    return {
        "wq": u(ks[0], (dim, dim)), "bq": u(ks[1], (1, dim)),
        "wk": u(ks[2], (dim, dim)), "bk": u(ks[3], (1, dim)),
        "wv": u(ks[4], (dim, dim)), "bv": u(ks[5], (1, dim)),
        "wo": u(ks[6], (dim, dim)), "bo": u(ks[7], (1, dim)),
    }


if __name__ == "__main__":
    B, S, D = 2, 8, 32
    NUM_HEADS = 8  # head_dim = 4

    key = jax.random.PRNGKey(0)
    kx, kp = jax.random.split(key)
    x = jax.random.normal(kx, (B, S, D), dtype=jnp.float32)
    params = init_params(kp, D)
    packed = pack_params(params, D, NUM_HEADS)

    out = attention_gate(x, packed, NUM_HEADS)
    out = jax.block_until_ready(out)

    ref = attention_gate_reference(x, params, NUM_HEADS)
    assert out.shape == (B, S, D)
    # Tolerance loosened vs exact division: softmax uses the EUP approximate
    # reciprocal (pl.reciprocal(approx=True)).
    assert jnp.allclose(out, ref, atol=1e-2, rtol=1e-2), \
        f"max abs err = {jnp.max(jnp.abs(out - ref))}"

    print("KERNEL_OK")
</pallas_src>

<mosaic_0001>
module attributes {stable_mosaic.version = 11 : i64} {
  func.func @_attention_gate_kernel(%arg0: i32, %arg1: memref<16x32xf32, #tpu.memory_space<vmem>>, %arg2: memref<32x96xf32, #tpu.memory_space<vmem>>, %arg3: memref<1x96xf32, #tpu.memory_space<vmem>>, %arg4: memref<32x128xf32, #tpu.memory_space<vmem>>, %arg5: memref<1x128xf32, #tpu.memory_space<vmem>>, %arg6: memref<16x128xf32, #tpu.memory_space<vmem>>) attributes {dimension_semantics = [#tpu.dimension_semantics<arbitrary>], iteration_bounds = array<i64: 1>, scalar_prefetch = 0 : i64, scratch_operands = 0 : i64, tpu.core_type = #tpu.core_type<tc>, window_params = [{pipeline_mode = #tpu.pipeline_mode<synchronous>, transform_indices = @transform_0, window_bounds = array<i64: 16, 32>}, {pipeline_mode = #tpu.pipeline_mode<synchronous>, transform_indices = @transform_1, window_bounds = array<i64: 32, 96>}, {pipeline_mode = #tpu.pipeline_mode<synchronous>, transform_indices = @transform_2, window_bounds = array<i64: 1, 96>}, {pipeline_mode = #tpu.pipeline_mode<synchronous>, transform_indices = @transform_3, window_bounds = array<i64: 32, 128>}, {pipeline_mode = #tpu.pipeline_mode<synchronous>, transform_indices = @transform_4, window_bounds = array<i64: 1, 128>}, {pipeline_mode = #tpu.pipeline_mode<synchronous>, transform_indices = @transform_5, window_bounds = array<i64: 16, 128>}]} {
    %c0 = arith.constant 0 : index
    %c0_0 = arith.constant 0 : index
    %0 = vector.load %arg1[%c0, %c0_0] : memref<16x32xf32, #tpu.memory_space<vmem>>, vector<16x32xf32>
    %c0_1 = arith.constant 0 : index
    %c0_2 = arith.constant 0 : index
    %1 = vector.load %arg2[%c0_1, %c0_2] : memref<32x96xf32, #tpu.memory_space<vmem>>, vector<32x96xf32>
    %cst = arith.constant dense<0.000000e+00> : vector<16x96xf32>
    %2 = tpu.matmul %0, %1, %cst {dimension_numbers = #tpu.dot_dimension_numbers<[1], [0], [0], [1], [0, 0, 1, 1], [], []>} : vector<16x32xf32>, vector<32x96xf32>, vector<16x96xf32> -> vector<16x96xf32>
    %c0_3 = arith.constant 0 : index
    %c0_4 = arith.constant 0 : index
    %3 = vector.load %arg3[%c0_3, %c0_4] : memref<1x96xf32, #tpu.memory_space<vmem>>, vector<1x96xf32>
    %4 = vector.broadcast %3 : vector<1x96xf32> to vector<16x96xf32>
    %5 = arith.addf %2, %4 : vector<16x96xf32>
    %6 = vector.shape_cast %5 : vector<16x96xf32> to vector<2x8x96xf32>
    %7 = vector.extract_strided_slice %6 {offsets = [0, 0, 0], sizes = [2, 8, 32], strides = [1, 1, 1]} : vector<2x8x96xf32> to vector<2x8x32xf32>
    %8 = vector.extract_strided_slice %6 {offsets = [0, 0, 32], sizes = [2, 8, 32], strides = [1, 1, 1]} : vector<2x8x96xf32> to vector<2x8x32xf32>
    %9 = vector.extract_strided_slice %6 {offsets = [0, 0, 64], sizes = [2, 8, 32], strides = [1, 1, 1]} : vector<2x8x96xf32> to vector<2x8x32xf32>
    %10 = vector.extract_strided_slice %7 {offsets = [0, 0, 0], sizes = [2, 8, 4], strides = [1, 1, 1]} : vector<2x8x32xf32> to vector<2x8x4xf32>
    %11 = vector.extract_strided_slice %8 {offsets = [0, 0, 0], sizes = [2, 8, 4], strides = [1, 1, 1]} : vector<2x8x32xf32> to vector<2x8x4xf32>
    %12 = vector.extract_strided_slice %9 {offsets = [0, 0, 0], sizes = [2, 8, 4], strides = [1, 1, 1]} : vector<2x8x32xf32> to vector<2x8x4xf32>
    "tpu.trace_start"() <{level = 10 : i32, message = "bqd,bkd->bqk"}> : () -> ()
    %cst_5 = arith.constant dense<0.000000e+00> : vector<2x8x8xf32>
    %13 = tpu.matmul %10, %11, %cst_5 {dimension_numbers = #tpu.dot_dimension_numbers<[2], [2], [1], [1], [0, 0, 0, 1, 1, 1], [0], [0]>} : vector<2x8x4xf32>, vector<2x8x4xf32>, vector<2x8x8xf32> -> vector<2x8x8xf32>
    "tpu.trace_stop"() : () -> ()
    %cst_6 = arith.constant dense<0xFF800000> : vector<2x8xf32>
    %14 = vector.multi_reduction <maximumf>, %13, %cst_6 [2] : vector<2x8x8xf32> to vector<2x8xf32>
    %15 = vector.shape_cast %14 : vector<2x8xf32> to vector<2x8x1xf32>
    %16 = vector.broadcast %15 : vector<2x8x1xf32> to vector<2x8x8xf32>
    %17 = arith.subf %13, %16 : vector<2x8x8xf32>
    %18 = math.exp %17 : vector<2x8x8xf32>
    %cst_7 = arith.constant dense<0.000000e+00> : vector<2x8xf32>
    %19 = vector.multi_reduction <add>, %18, %cst_7 [2] : vector<2x8x8xf32> to vector<2x8xf32>
    %20 = vector.shape_cast %19 : vector<2x8xf32> to vector<2x8x1xf32>
    "tpu.trace_start"() <{level = 10 : i32, message = "bqk,bkd->bqd"}> : () -> ()
    %cst_8 = arith.constant dense<0.000000e+00> : vector<2x8x4xf32>
    %21 = tpu.matmul %18, %12, %cst_8 {dimension_numbers = #tpu.dot_dimension_numbers<[2], [1], [1], [2], [0, 0, 0, 1, 1, 2], [0], [0]>} : vector<2x8x8xf32>, vector<2x8x4xf32>, vector<2x8x4xf32> -> vector<2x8x4xf32>
    "tpu.trace_stop"() : () -> ()
    %22 = tpu.reciprocal %20 {approx = true} : vector<2x8x1xf32> -> vector<2x8x1xf32>
    %23 = vector.broadcast %22 : vector<2x8x1xf32> to vector<2x8x4xf32>
    %24 = arith.mulf %21, %23 : vector<2x8x4xf32>
    %25 = vector.extract_strided_slice %7 {offsets = [0, 0, 4], sizes = [2, 8, 4], strides = [1, 1, 1]} : vector<2x8x32xf32> to vector<2x8x4xf32>
    %26 = vector.extract_strided_slice %8 {offsets = [0, 0, 4], sizes = [2, 8, 4], strides = [1, 1, 1]} : vector<2x8x32xf32> to vector<2x8x4xf32>
    %27 = vector.extract_strided_slice %9 {offsets = [0, 0, 4], sizes = [2, 8, 4], strides = [1, 1, 1]} : vector<2x8x32xf32> to vector<2x8x4xf32>
    "tpu.trace_start"() <{level = 10 : i32, message = "bqd,bkd->bqk"}> : () -> ()
    %cst_9 = arith.constant dense<0.000000e+00> : vector<2x8x8xf32>
    %28 = tpu.matmul %25, %26, %cst_9 {dimension_numbers = #tpu.dot_dimension_numbers<[2], [2], [1], [1], [0, 0, 0, 1, 1, 1], [0], [0]>} : vector<2x8x4xf32>, vector<2x8x4xf32>, vector<2x8x8xf32> -> vector<2x8x8xf32>
    "tpu.trace_stop"() : () -> ()
    %cst_10 = arith.constant dense<0xFF800000> : vector<2x8xf32>
    %29 = vector.multi_reduction <maximumf>, %28, %cst_10 [2] : vector<2x8x8xf32> to vector<2x8xf32>
    %30 = vector.shape_cast %29 : vector<2x8xf32> to vector<2x8x1xf32>
    %31 = vector.broadcast %30 : vector<2x8x1xf32> to vector<2x8x8xf32>
    %32 = arith.subf %28, %31 : vector<2x8x8xf32>
    %33 = math.exp %32 : vector<2x8x8xf32>
    %cst_11 = arith.constant dense<0.000000e+00> : vector<2x8xf32>
    %34 = vector.multi_reduction <add>, %33, %cst_11 [2] : vector<2x8x8xf32> to vector<2x8xf32>
    %35 = vector.shape_cast %34 : vector<2x8xf32> to vector<2x8x1xf32>
    "tpu.trace_start"() <{level = 10 : i32, message = "bqk,bkd->bqd"}> : () -> ()
    %cst_12 = arith.constant dense<0.000000e+00> : vector<2x8x4xf32>
    %36 = tpu.matmul %33, %27, %cst_12 {dimension_numbers = #tpu.dot_dimension_numbers<[2], [1], [1], [2], [0, 0, 0, 1, 1, 2], [0], [0]>} : vector<2x8x8xf32>, vector<2x8x4xf32>, vector<2x8x4xf32> -> vector<2x8x4xf32>
    "tpu.trace_stop"() : () -> ()
    %37 = tpu.reciprocal %35 {approx = true} : vector<2x8x1xf32> -> vector<2x8x1xf32>
    %38 = vector.broadcast %37 : vector<2x8x1xf32> to vector<2x8x4xf32>
    %39 = arith.mulf %36, %38 : vector<2x8x4xf32>
    %40 = vector.extract_strided_slice %7 {offsets = [0, 0, 8], sizes = [2, 8, 4], strides = [1, 1, 1]} : vector<2x8x32xf32> to vector<2x8x4xf32>
    %41 = vector.extract_strided_slice %8 {offsets = [0, 0, 8], sizes = [2, 8, 4], strides = [1, 1, 1]} : vector<2x8x32xf32> to vector<2x8x4xf32>
    %42 = vector.extract_strided_slice %9 {offsets = [0, 0, 8], sizes = [2, 8, 4], strides = [1, 1, 1]} : vector<2x8x32xf32> to vector<2x8x4xf32>
    "tpu.trace_start"() <{level = 10 : i32, message = "bqd,bkd->bqk"}> : () -> ()
    %cst_13 = arith.constant dense<0.000000e+00> : vector<2x8x8xf32>
    %43 = tpu.matmul %40, %41, %cst_13 {dimension_numbers = #tpu.dot_dimension_numbers<[2], [2], [1], [1], [0, 0, 0, 1, 1, 1], [0], [0]>} : vector<2x8x4xf32>, vector<2x8x4xf32>, vector<2x8x8xf32> -> vector<2x8x8xf32>
    "tpu.trace_stop"() : () -> ()
    %cst_14 = arith.constant dense<0xFF800000> : vector<2x8xf32>
    %44 = vector.multi_reduction <maximumf>, %43, %cst_14 [2] : vector<2x8x8xf32> to vector<2x8xf32>
    %45 = vector.shape_cast %44 : vector<2x8xf32> to vector<2x8x1xf32>
    %46 = vector.broadcast %45 : vector<2x8x1xf32> to vector<2x8x8xf32>
    %47 = arith.subf %43, %46 : vector<2x8x8xf32>
    %48 = math.exp %47 : vector<2x8x8xf32>
    %cst_15 = arith.constant dense<0.000000e+00> : vector<2x8xf32>
    %49 = vector.multi_reduction <add>, %48, %cst_15 [2] : vector<2x8x8xf32> to vector<2x8xf32>
    %50 = vector.shape_cast %49 : vector<2x8xf32> to vector<2x8x1xf32>
    "tpu.trace_start"() <{level = 10 : i32, message = "bqk,bkd->bqd"}> : () -> ()
    %cst_16 = arith.constant dense<0.000000e+00> : vector<2x8x4xf32>
    %51 = tpu.matmul %48, %42, %cst_16 {dimension_numbers = #tpu.dot_dimension_numbers<[2], [1], [1], [2], [0, 0, 0, 1, 1, 2], [0], [0]>} : vector<2x8x8xf32>, vector<2x8x4xf32>, vector<2x8x4xf32> -> vector<2x8x4xf32>
    "tpu.trace_stop"() : () -> ()
    %52 = tpu.reciprocal %50 {approx = true} : vector<2x8x1xf32> -> vector<2x8x1xf32>
    %53 = vector.broadcast %52 : vector<2x8x1xf32> to vector<2x8x4xf32>
    %54 = arith.mulf %51, %53 : vector<2x8x4xf32>
    %55 = vector.extract_strided_slice %7 {offsets = [0, 0, 12], sizes = [2, 8, 4], strides = [1, 1, 1]} : vector<2x8x32xf32> to vector<2x8x4xf32>
    %56 = vector.extract_strided_slice %8 {offsets = [0, 0, 12], sizes = [2, 8, 4], strides = [1, 1, 1]} : vector<2x8x32xf32> to vector<2x8x4xf32>
    %57 = vector.extract_strided_slice %9 {offsets = [0, 0, 12], sizes = [2, 8, 4], strides = [1, 1, 1]} : vector<2x8x32xf32> to vector<2x8x4xf32>
    "tpu.trace_start"() <{level = 10 : i32, message = "bqd,bkd->bqk"}> : () -> ()
    %cst_17 = arith.constant dense<0.000000e+00> : vector<2x8x8xf32>
    %58 = tpu.matmul %55, %56, %cst_17 {dimension_numbers = #tpu.dot_dimension_numbers<[2], [2], [1], [1], [0, 0, 0, 1, 1, 1], [0], [0]>} : vector<2x8x4xf32>, vector<2x8x4xf32>, vector<2x8x8xf32> -> vector<2x8x8xf32>
    "tpu.trace_stop"() : () -> ()
    %cst_18 = arith.constant dense<0xFF800000> : vector<2x8xf32>
    %59 = vector.multi_reduction <maximumf>, %58, %cst_18 [2] : vector<2x8x8xf32> to vector<2x8xf32>
    %60 = vector.shape_cast %59 : vector<2x8xf32> to vector<2x8x1xf32>
    %61 = vector.broadcast %60 : vector<2x8x1xf32> to vector<2x8x8xf32>
    %62 = arith.subf %58, %61 : vector<2x8x8xf32>
    %63 = math.exp %62 : vector<2x8x8xf32>
    %cst_19 = arith.constant dense<0.000000e+00> : vector<2x8xf32>
    %64 = vector.multi_reduction <add>, %63, %cst_19 [2] : vector<2x8x8xf32> to vector<2x8xf32>
    %65 = vector.shape_cast %64 : vector<2x8xf32> to vector<2x8x1xf32>
    "tpu.trace_start"() <{level = 10 : i32, message = "bqk,bkd->bqd"}> : () -> ()
    %cst_20 = arith.constant dense<0.000000e+00> : vector<2x8x4xf32>
    %66 = tpu.matmul %63, %57, %cst_20 {dimension_numbers = #tpu.dot_dimension_numbers<[2], [1], [1], [2], [0, 0, 0, 1, 1, 2], [0], [0]>} : vector<2x8x8xf32>, vector<2x8x4xf32>, vector<2x8x4xf32> -> vector<2x8x4xf32>
    "tpu.trace_stop"() : () -> ()
    %67 = tpu.reciprocal %65 {approx = true} : vector<2x8x1xf32> -> vector<2x8x1xf32>
    %68 = vector.broadcast %67 : vector<2x8x1xf32> to vector<2x8x4xf32>
    %69 = arith.mulf %66, %68 : vector<2x8x4xf32>
    %70 = vector.extract_strided_slice %7 {offsets = [0, 0, 16], sizes = [2, 8, 4], strides = [1, 1, 1]} : vector<2x8x32xf32> to vector<2x8x4xf32>
    %71 = vector.extract_strided_slice %8 {offsets = [0, 0, 16], sizes = [2, 8, 4], strides = [1, 1, 1]} : vector<2x8x32xf32> to vector<2x8x4xf32>
    %72 = vector.extract_strided_slice %9 {offsets = [0, 0, 16], sizes = [2, 8, 4], strides = [1, 1, 1]} : vector<2x8x32xf32> to vector<2x8x4xf32>
    "tpu.trace_start"() <{level = 10 : i32, message = "bqd,bkd->bqk"}> : () -> ()
    %cst_21 = arith.constant dense<0.000000e+00> : vector<2x8x8xf32>
    %73 = tpu.matmul %70, %71, %cst_21 {dimension_numbers = #tpu.dot_dimension_numbers<[2], [2], [1], [1], [0, 0, 0, 1, 1, 1], [0], [0]>} : vector<2x8x4xf32>, vector<2x8x4xf32>, vector<2x8x8xf32> -> vector<2x8x8xf32>
    "tpu.trace_stop"() : () -> ()
    %cst_22 = arith.constant dense<0xFF800000> : vector<2x8xf32>
    %74 = vector.multi_reduction <maximumf>, %73, %cst_22 [2] : vector<2x8x8xf32> to vector<2x8xf32>
    %75 = vector.shape_cast %74 : vector<2x8xf32> to vector<2x8x1xf32>
    %76 = vector.broadcast %75 : vector<2x8x1xf32> to vector<2x8x8xf32>
    %77 = arith.subf %73, %76 : vector<2x8x8xf32>
    %78 = math.exp %77 : vector<2x8x8xf32>
    %cst_23 = arith.constant dense<0.000000e+00> : vector<2x8xf32>
    %79 = vector.multi_reduction <add>, %78, %cst_23 [2] : vector<2x8x8xf32> to vector<2x8xf32>
    %80 = vector.shape_cast %79 : vector<2x8xf32> to vector<2x8x1xf32>
    "tpu.trace_start"() <{level = 10 : i32, message = "bqk,bkd->bqd"}> : () -> ()
    %cst_24 = arith.constant dense<0.000000e+00> : vector<2x8x4xf32>
    %81 = tpu.matmul %78, %72, %cst_24 {dimension_numbers = #tpu.dot_dimension_numbers<[2], [1], [1], [2], [0, 0, 0, 1, 1, 2], [0], [0]>} : vector<2x8x8xf32>, vector<2x8x4xf32>, vector<2x8x4xf32> -> vector<2x8x4xf32>
    "tpu.trace_stop"() : () -> ()
    %82 = tpu.reciprocal %80 {approx = true} : vector<2x8x1xf32> -> vector<2x8x1xf32>
    %83 = vector.broadcast %82 : vector<2x8x1xf32> to vector<2x8x4xf32>
    %84 = arith.mulf %81, %83 : vector<2x8x4xf32>
    %85 = vector.extract_strided_slice %7 {offsets = [0, 0, 20], sizes = [2, 8, 4], strides = [1, 1, 1]} : vector<2x8x32xf32> to vector<2x8x4xf32>
    %86 = vector.extract_strided_slice %8 {offsets = [0, 0, 20], sizes = [2, 8, 4], strides = [1, 1, 1]} : vector<2x8x32xf32> to vector<2x8x4xf32>
    %87 = vector.extract_strided_slice %9 {offsets = [0, 0, 20], sizes = [2, 8, 4], strides = [1, 1, 1]} : vector<2x8x32xf32> to vector<2x8x4xf32>
    "tpu.trace_start"() <{level = 10 : i32, message = "bqd,bkd->bqk"}> : () -> ()
    %cst_25 = arith.constant dense<0.000000e+00> : vector<2x8x8xf32>
    %88 = tpu.matmul %85, %86, %cst_25 {dimension_numbers = #tpu.dot_dimension_numbers<[2], [2], [1], [1], [0, 0, 0, 1, 1, 1], [0], [0]>} : vector<2x8x4xf32>, vector<2x8x4xf32>, vector<2x8x8xf32> -> vector<2x8x8xf32>
    "tpu.trace_stop"() : () -> ()
    %cst_26 = arith.constant dense<0xFF800000> : vector<2x8xf32>
    %89 = vector.multi_reduction <maximumf>, %88, %cst_26 [2] : vector<2x8x8xf32> to vector<2x8xf32>
    %90 = vector.shape_cast %89 : vector<2x8xf32> to vector<2x8x1xf32>
    %91 = vector.broadcast %90 : vector<2x8x1xf32> to vector<2x8x8xf32>
    %92 = arith.subf %88, %91 : vector<2x8x8xf32>
    %93 = math.exp %92 : vector<2x8x8xf32>
    %cst_27 = arith.constant dense<0.000000e+00> : vector<2x8xf32>
    %94 = vector.multi_reduction <add>, %93, %cst_27 [2] : vector<2x8x8xf32> to vector<2x8xf32>
    %95 = vector.shape_cast %94 : vector<2x8xf32> to vector<2x8x1xf32>
    "tpu.trace_start"() <{level = 10 : i32, message = "bqk,bkd->bqd"}> : () -> ()
    %cst_28 = arith.constant dense<0.000000e+00> : vector<2x8x4xf32>
    %96 = tpu.matmul %93, %87, %cst_28 {dimension_numbers = #tpu.dot_dimension_numbers<[2], [1], [1], [2], [0, 0, 0, 1, 1, 2], [0], [0]>} : vector<2x8x8xf32>, vector<2x8x4xf32>, vector<2x8x4xf32> -> vector<2x8x4xf32>
    "tpu.trace_stop"() : () -> ()
    %97 = tpu.reciprocal %95 {approx = true} : vector<2x8x1xf32> -> vector<2x8x1xf32>
    %98 = vector.broadcast %97 : vector<2x8x1xf32> to vector<2x8x4xf32>
    %99 = arith.mulf %96, %98 : vector<2x8x4xf32>
    %100 = vector.extract_strided_slice %7 {offsets = [0, 0, 24], sizes = [2, 8, 4], strides = [1, 1, 1]} : vector<2x8x32xf32> to vector<2x8x4xf32>
    %101 = vector.extract_strided_slice %8 {offsets = [0, 0, 24], sizes = [2, 8, 4], strides = [1, 1, 1]} : vector<2x8x32xf32> to vector<2x8x4xf32>
    %102 = vector.extract_strided_slice %9 {offsets = [0, 0, 24], sizes = [2, 8, 4], strides = [1, 1, 1]} : vector<2x8x32xf32> to vector<2x8x4xf32>
    "tpu.trace_start"() <{level = 10 : i32, message = "bqd,bkd->bqk"}> : () -> ()
    %cst_29 = arith.constant dense<0.000000e+00> : vector<2x8x8xf32>
    %103 = tpu.matmul %100, %101, %cst_29 {dimension_numbers = #tpu.dot_dimension_numbers<[2], [2], [1], [1], [0, 0, 0, 1, 1, 1], [0], [0]>} : vector<2x8x4xf32>, vector<2x8x4xf32>, vector<2x8x8xf32> -> vector<2x8x8xf32>
    "tpu.trace_stop"() : () -> ()
    %cst_30 = arith.constant dense<0xFF800000> : vector<2x8xf32>
    %104 = vector.multi_reduction <maximumf>, %103, %cst_30 [2] : vector<2x8x8xf32> to vector<2x8xf32>
    %105 = vector.shape_cast %104 : vector<2x8xf32> to vector<2x8x1xf32>
    %106 = vector.broadcast %105 : vector<2x8x1xf32> to vector<2x8x8xf32>
    %107 = arith.subf %103, %106 : vector<2x8x8xf32>
    %108 = math.exp %107 : vector<2x8x8xf32>
    %cst_31 = arith.constant dense<0.000000e+00> : vector<2x8xf32>
    %109 = vector.multi_reduction <add>, %108, %cst_31 [2] : vector<2x8x8xf32> to vector<2x8xf32>
    %110 = vector.shape_cast %109 : vector<2x8xf32> to vector<2x8x1xf32>
    "tpu.trace_start"() <{level = 10 : i32, message = "bqk,bkd->bqd"}> : () -> ()
    %cst_32 = arith.constant dense<0.000000e+00> : vector<2x8x4xf32>
    %111 = tpu.matmul %108, %102, %cst_32 {dimension_numbers = #tpu.dot_dimension_numbers<[2], [1], [1], [2], [0, 0, 0, 1, 1, 2], [0], [0]>} : vector<2x8x8xf32>, vector<2x8x4xf32>, vector<2x8x4xf32> -> vector<2x8x4xf32>
    "tpu.trace_stop"() : () -> ()
    %112 = tpu.reciprocal %110 {approx = true} : vector<2x8x1xf32> -> vector<2x8x1xf32>
    %113 = vector.broadcast %112 : vector<2x8x1xf32> to vector<2x8x4xf32>
    %114 = arith.mulf %111, %113 : vector<2x8x4xf32>
    %115 = vector.extract_strided_slice %7 {offsets = [0, 0, 28], sizes = [2, 8, 4], strides = [1, 1, 1]} : vector<2x8x32xf32> to vector<2x8x4xf32>
    %116 = vector.extract_strided_slice %8 {offsets = [0, 0, 28], sizes = [2, 8, 4], strides = [1, 1, 1]} : vector<2x8x32xf32> to vector<2x8x4xf32>
    %117 = vector.extract_strided_slice %9 {offsets = [0, 0, 28], sizes = [2, 8, 4], strides = [1, 1, 1]} : vector<2x8x32xf32> to vector<2x8x4xf32>
    "tpu.trace_start"() <{level = 10 : i32, message = "bqd,bkd->bqk"}> : () -> ()
    %cst_33 = arith.constant dense<0.000000e+00> : vector<2x8x8xf32>
    %118 = tpu.matmul %115, %116, %cst_33 {dimension_numbers = #tpu.dot_dimension_numbers<[2], [2], [1], [1], [0, 0, 0, 1, 1, 1], [0], [0]>} : vector<2x8x4xf32>, vector<2x8x4xf32>, vector<2x8x8xf32> -> vector<2x8x8xf32>
    "tpu.trace_stop"() : () -> ()
    %cst_34 = arith.constant dense<0xFF800000> : vector<2x8xf32>
    %119 = vector.multi_reduction <maximumf>, %118, %cst_34 [2] : vector<2x8x8xf32> to vector<2x8xf32>
    %120 = vector.shape_cast %119 : vector<2x8xf32> to vector<2x8x1xf32>
    %121 = vector.broadcast %120 : vector<2x8x1xf32> to vector<2x8x8xf32>
    %122 = arith.subf %118, %121 : vector<2x8x8xf32>
    %123 = math.exp %122 : vector<2x8x8xf32>
    %cst_35 = arith.constant dense<0.000000e+00> : vector<2x8xf32>
    %124 = vector.multi_reduction <add>, %123, %cst_35 [2] : vector<2x8x8xf32> to vector<2x8xf32>
    %125 = vector.shape_cast %124 : vector<2x8xf32> to vector<2x8x1xf32>
    "tpu.trace_start"() <{level = 10 : i32, message = "bqk,bkd->bqd"}> : () -> ()
    %cst_36 = arith.constant dense<0.000000e+00> : vector<2x8x4xf32>
    %126 = tpu.matmul %123, %117, %cst_36 {dimension_numbers = #tpu.dot_dimension_numbers<[2], [1], [1], [2], [0, 0, 0, 1, 1, 2], [0], [0]>} : vector<2x8x8xf32>, vector<2x8x4xf32>, vector<2x8x4xf32> -> vector<2x8x4xf32>
    "tpu.trace_stop"() : () -> ()
    %127 = tpu.reciprocal %125 {approx = true} : vector<2x8x1xf32> -> vector<2x8x1xf32>
    %128 = vector.broadcast %127 : vector<2x8x1xf32> to vector<2x8x4xf32>
    %129 = arith.mulf %126, %128 : vector<2x8x4xf32>
    %130 = tpu.concatenate %24, %39, %54, %69, %84, %99, %114, %129 in 2 : vector<2x8x4xf32>, vector<2x8x4xf32>, vector<2x8x4xf32>, vector<2x8x4xf32>, vector<2x8x4xf32>, vector<2x8x4xf32>, vector<2x8x4xf32>, vector<2x8x4xf32> -> vector<2x8x32xf32>
    %131 = vector.shape_cast %130 : vector<2x8x32xf32> to vector<16x32xf32>
    %c0_37 = arith.constant 0 : index
    %c0_38 = arith.constant 0 : index
    %132 = vector.load %arg4[%c0_37, %c0_38] : memref<32x128xf32, #tpu.memory_space<vmem>>, vector<32x128xf32>
    %cst_39 = arith.constant dense<0.000000e+00> : vector<16x128xf32>
    %133 = tpu.matmul %131, %132, %cst_39 {dimension_numbers = #tpu.dot_dimension_numbers<[1], [0], [0], [1], [0, 0, 1, 1], [], []>} : vector<16x32xf32>, vector<32x128xf32>, vector<16x128xf32> -> vector<16x128xf32>
    %c0_40 = arith.constant 0 : index
    %c0_41 = arith.constant 0 : index
    %134 = vector.load %arg5[%c0_40, %c0_41] : memref<1x128xf32, #tpu.memory_space<vmem>>, vector<1x128xf32>
    %135 = vector.broadcast %134 : vector<1x128xf32> to vector<16x128xf32>
    %136 = arith.addf %133, %135 : vector<16x128xf32>
    %c0_42 = arith.constant 0 : index
    %c0_43 = arith.constant 0 : index
    %137 = vector.load %arg6[%c0_42, %c0_43] : memref<16x128xf32, #tpu.memory_space<vmem>>, vector<16x128xf32>
    tpu.vector_store %arg6[%c0_42, %c0_43], %136 {strides = array<i32>} : memref<16x128xf32, #tpu.memory_space<vmem>>, vector<16x128xf32>,
    return
  }
  func.func @transform_0(%arg0: i32) -> (i32, i32) {
    %c0_i32 = arith.constant 0 : i32
    %c0_i32_0 = arith.constant 0 : i32
    %c0_i32_1 = arith.constant 0 : i32
    return %c0_i32, %c0_i32_0 : i32, i32
  }
  func.func @transform_1(%arg0: i32) -> (i32, i32) {
    %c0_i32 = arith.constant 0 : i32
    %c0_i32_0 = arith.constant 0 : i32
    %c0_i32_1 = arith.constant 0 : i32
    return %c0_i32, %c0_i32_0 : i32, i32
  }
  func.func @transform_2(%arg0: i32) -> (i32, i32) {
    %c0_i32 = arith.constant 0 : i32
    %c0_i32_0 = arith.constant 0 : i32
    %c0_i32_1 = arith.constant 0 : i32
    return %c0_i32, %c0_i32_0 : i32, i32
  }
  func.func @transform_3(%arg0: i32) -> (i32, i32) {
    %c0_i32 = arith.constant 0 : i32
    %c0_i32_0 = arith.constant 0 : i32
    %c0_i32_1 = arith.constant 0 : i32
    return %c0_i32, %c0_i32_0 : i32, i32
  }
  func.func @transform_4(%arg0: i32) -> (i32, i32) {
    %c0_i32 = arith.constant 0 : i32
    %c0_i32_0 = arith.constant 0 : i32
    %c0_i32_1 = arith.constant 0 : i32
    return %c0_i32, %c0_i32_0 : i32, i32
  }
  func.func @transform_5(%arg0: i32) -> (i32, i32) {
    %c0_i32 = arith.constant 0 : i32
    %c0_i32_0 = arith.constant 0 : i32
    %c0_i32_1 = arith.constant 0 : i32
    return %c0_i32, %c0_i32_0 : i32, i32
  }
}

</mosaic_0001>

<llo_original>
// kernel: tpu_custom_call.1
$region0: #{tpu_custom_call.1}
  #allocation0 [shape = 'u32[]', space=smem, size = 0x4, offset = 0x4, fixed_abs, tag = 'smem constant byte address 0x4 - core index']
  #allocation1 [shape = 'u32[144,128]{1,0:T(1,128)}', space=vmem, size = 0x12000, scoped, tag = 'internal scratch']
  %s0 = inlined_call_operand.hbm [shape: f32[16,32], index: 0, kind: input, shape index: {}]
  %s1 = inlined_call_operand.hbm [shape: f32[32,96], index: 1, kind: input, shape index: {}]
  %s2 = inlined_call_operand.vmem [shape: f32[1,96], index: 2, kind: input, shape index: {}]
  %s3 = inlined_call_operand.hbm [shape: f32[32,128], index: 3, kind: input, shape index: {}]
  %s4 = inlined_call_operand.vmem [shape: f32[1,128], index: 4, kind: input, shape index: {}]
  %s5 = inlined_call_operand.hbm [shape: f32[16,128], index: 5, kind: output, shape index: {}]
  %s6 = sld [smem:[#allocation0]]
  $region42: #{tpu_custom_call.1} parent=0
    _
  %s8 = ssub.s32 1, %s6
  %s9 = scalar_select 0, %s8, %s6
  $region1: #{tpu_custom_call.1} parent=0
    #allocation2 [shape = 'u8[8192]{0}', space=vmem, size = 0x2000, scoped, tag = 'input window, operand 0, single buffered']
    #allocation3 [shape = 's32[1]{0}', space=sflag, size = 0x4, scoped, tag = 'scoped memory for tpu_custom_call.1']
    #allocation4 [shape = 's32[1]{0}', space=sflag, size = 0x4, scoped, tag = 'scoped memory for tpu_custom_call.1']
    #allocation5 [shape = 'u8[16384]{0}', space=vmem, size = 0x4000, scoped, tag = 'input window, operand 1, single buffered']
    #allocation6 [shape = 's32[1]{0}', space=sflag, size = 0x4, scoped, tag = 'scoped memory for tpu_custom_call.1']
    #allocation7 [shape = 'u8[16384]{0}', space=vmem, size = 0x4000, scoped, tag = 'input window, operand 3, single buffered']
    #allocation8 [shape = 'u8[8192]{0}', space=vmem, size = 0x2000, scoped, tag = 'output window, operand 0, single buffered']
    %10 = vsyncpa [#allocation3], 0
    %11 = vsyncpa [#allocation6], 0
    %12 = vsyncpa [#allocation4], 0
    // Predicated region
    $region2: #{tpu_custom_call.1} parent=1 // pred_check
      _
    $region3: #{tpu_custom_call.1} parent=1 // pred_check_branch
      %14 = sbr.rel (0) target = $region5
    $region4: #{tpu_custom_call.1} parent=1 // pred_region
      %s16 = ssub.s32 256, 256
      %17 = vsyncadd [#allocation3], %s16
      %s18 = sshll.u32 [#allocation2], 4
      %s19 = int_to_ptr.vmem [resolvable:$true] %s18
      %24 = dma.hbm_to_vmem [thread:$0]  %s0, 256, %s19, [#allocation3], 128, 128, 8
    $region5: #{tpu_custom_call.1} parent=1 // pred_fallthru
      _
    // Predicated region
    $region6: #{tpu_custom_call.1} parent=1 // pred_check
      _
    $region7: #{tpu_custom_call.1} parent=1 // pred_check_branch
      %26 = sbr.rel (0) target = $region9
    $region8: #{tpu_custom_call.1} parent=1 // pred_region
      %s28 = ssub.s32 512, 512
      %29 = vsyncadd [#allocation6], %s28
      %s30 = sshll.u32 [#allocation5], 4
      %s31 = int_to_ptr.vmem [resolvable:$true] %s30
      %36 = dma.hbm_to_vmem [thread:$0]  %s1, 512, %s31, [#allocation6], 128, 128, 8
    $region9: #{tpu_custom_call.1} parent=1 // pred_fallthru
      _
    // Predicated region
    $region10: #{tpu_custom_call.1} parent=1 // pred_check
      _
    $region11: #{tpu_custom_call.1} parent=1 // pred_check_branch
      %38 = sbr.rel (0) target = $region13
    $region12: #{tpu_custom_call.1} parent=1 // pred_region
      _
    $region13: #{tpu_custom_call.1} parent=1 // pred_fallthru
      _
    // Predicated region
    $region14: #{tpu_custom_call.1} parent=1 // pred_check
      _
    $region15: #{tpu_custom_call.1} parent=1 // pred_check_branch
      %40 = sbr.rel (0) target = $region17
    $region16: #{tpu_custom_call.1} parent=1 // pred_region
      %s42 = ssub.s32 512, 512
      %43 = vsyncadd [#allocation6], %s42
      %s44 = sshll.u32 [#allocation7], 4
      %s45 = int_to_ptr.vmem [resolvable:$true] %s44
      %50 = dma.hbm_to_vmem [thread:$0]  %s3, 512, %s45, [#allocation6], 128, 128, 8
    $region17: #{tpu_custom_call.1} parent=1 // pred_fallthru
      _
    // Predicated region
    $region18: #{tpu_custom_call.1} parent=1 // pred_check
      _
    $region19: #{tpu_custom_call.1} parent=1 // pred_check_branch
      %52 = sbr.rel (0) target = $region21
    $region20: #{tpu_custom_call.1} parent=1 // pred_region
      _
    $region21: #{tpu_custom_call.1} parent=1 // pred_fallthru
      _
    // Predicated region
    $region22: #{tpu_custom_call.1} parent=1 // pred_check
      _
    $region23: #{tpu_custom_call.1} parent=1 // pred_check_branch
      %54 = sbr.rel (0) target = $region25
    $region24: #{tpu_custom_call.1} parent=1 // pred_region
      %55 = dma.done [#allocation3], 256
    $region25: #{tpu_custom_call.1} parent=1 // pred_fallthru
      _
    // Predicated region
    $region26: #{tpu_custom_call.1} parent=1 // pred_check
      _
    $region27: #{tpu_custom_call.1} parent=1 // pred_check_branch
      %57 = sbr.rel (0) target = $region29
    $region28: #{tpu_custom_call.1} parent=1 // pred_region
      %58 = dma.done [#allocation6], 512
    $region29: #{tpu_custom_call.1} parent=1 // pred_fallthru
      _
    // Predicated region
    $region30: #{tpu_custom_call.1} parent=1 // pred_check
      _
    $region31: #{tpu_custom_call.1} parent=1 // pred_check_branch
      %60 = sbr.rel (0) target = $region33
    $region32: #{tpu_custom_call.1} parent=1 // pred_region
      %61 = dma.done [#allocation6], 512
    $region33: #{tpu_custom_call.1} parent=1 // pred_fallthru
      _
    %v62 = vld [vmem:[#allocation2] sm:$0xff]
    %v63 = vld [vmem:[#allocation2 + $0x8] sm:$0xff]
    %v64 = vld [vmem:[#allocation5] sm:$0xff]
    %v65 = vld [vmem:[#allocation5 + $0x8] sm:$0xff]
    %v66 = vld [vmem:[#allocation5 + $0x10] sm:$0xff]
    %v67 = vld [vmem:[#allocation5 + $0x18] sm:$0xff]
    %v68 = vld [vmem:[%s2] sm:$0x1]
    %v70 = vlaneseq
    %v71 = vshrl.u32 %v70, 7
    %v72 = vsub.s32 0, %v71
    %v73 = vrot.slane %v68, %v72
    %vm75 = vcmask 261120
    %v77 = vsel %vm75, %v62, 0
    %v80 = vsel %vm75, %v63, 0
    %82 = vmatprep.subr.mxu0 0.0
    %83 = vmatpush1.msra.mxu0 0.0
    %84 = vmatprep.subr.mxu0 0.0
    %85 = vmatpush1.msra.mxu0 0.0
    %86 = vmatprep.subr.mxu0 0.0
    %87 = vmatpush1.msra.mxu0 0.0
    %88 = vmatprep.subr.mxu0 0.0
    %89 = vmatpush1.msra.mxu0 0.0
    %90 = vmatprep.subr.mxu0 0.0
    %91 = vmatpush1.msra.mxu0 0.0
    %92 = vmatprep.subr.mxu0 0.0
    %93 = vmatpush1.msra.mxu0 0.0
    %94 = vmatprep.subr.mxu0 0.0
    %95 = vmatpush1.msra.mxu0 0.0
    %96 = vmatprep.subr.mxu0 0.0
    %97 = vmatpush1.msra.mxu0 0.0
    %98 = vmatprep.subr.mxu0 0.0
    %99 = vmatpush1.msra.mxu0 0.0
    %100 = vmatprep.subr.mxu0 0.0
    %101 = vmatpush1.msra.mxu0 0.0
    %102 = vmatprep.subr.mxu0 0.0
    %103 = vmatpush1.msra.mxu0 0.0
    %104 = vmatprep.subr.mxu0 0.0
    %105 = vmatpush1.msra.mxu0 0.0
    %106 = vmatprep.subr.mxu0 0.0
    %107 = vmatpush1.msra.mxu0 %v67
    %108 = vmatprep.subr.mxu0 0.0
    %109 = vmatpush1.msra.mxu0 %v66
    %110 = vmatprep.subr.mxu0 0.0
    %111 = vmatpush1.msra.mxu0 %v65
    %112 = vmatprep.subr.mxu0 0.0
    %113 = vmatpush1.msra.mxu0 %v64
    %114 = vmatprep.subr.mxu0 0.0
    %115 = vmatpush2.msra.mxu0 0.0
    %116 = vmatprep.subr.mxu0 0.0
    %117 = vmatpush2.msra.mxu0 0.0
    %118 = vmatprep.subr.mxu0 0.0
    %119 = vmatpush2.msra.mxu0 0.0
    %120 = vmatprep.subr.mxu0 0.0
    %121 = vmatpush2.msra.mxu0 0.0
    %122 = vmatprep.subr.mxu0 0.0
    %123 = vmatpush2.msra.mxu0 0.0
    %124 = vmatprep.subr.mxu0 0.0
    %125 = vmatpush2.msra.mxu0 0.0
    %126 = vmatprep.subr.mxu0 0.0
    %127 = vmatpush2.msra.mxu0 0.0
    %128 = vmatprep.subr.mxu0 0.0
    %129 = vmatpush2.msra.mxu0 0.0
    %130 = vmatprep.subr.mxu0 0.0
    %131 = vmatpush2.msra.mxu0 0.0
    %132 = vmatprep.subr.mxu0 0.0
    %133 = vmatpush2.msra.mxu0 0.0
    %134 = vmatprep.subr.mxu0 0.0
    %135 = vmatpush2.msra.mxu0 0.0
    %136 = vmatprep.subr.mxu0 0.0
    %137 = vmatpush2.msra.mxu0 0.0
    %138 = vmatprep.subr.mxu0 0.0
    %139 = vmatpush2.msra.mxu0 0.0
    %140 = vmatprep.subr.mxu0 0.0
    %141 = vmatpush2.msra.mxu0 0.0
    %142 = vmatprep.subr.mxu0 0.0
    %143 = vmatpush2.msra.mxu0 0.0
    %144 = vmatprep.subr.mxu0 0.0
    %145 = vmatpush2.msra.mxu0 0.0
    %146 = vmatprep.mubr.f32.mxu0 0.0
    %147 = vmatmul.mubr.f32.gmra.mxu0 %v77
    %v148 = vpop.f32.mrf.mxu0
    %v149 = vadd.f32 %v73, %v148
    %v150 = vpop.f32.mrf.mxu0
    %151 = vmatprep.mubr.f32.mxu0 0.0
    %152 = vmatmul.mubr.f32.gmra.mxu0 %v80
    %v153 = vpop.f32.mrf.mxu0
    %v154 = vadd.f32 %v73, %v153
    %v155 = vpop.f32.mrf.mxu0
    %156 = vdwg.mxu0
    %158 = vrot.lane.b32.xlu0 %v149, 96
    %v159 = vpop.permute.xlu0 %158
    %vm160 = vcmask 31744
    %v161 = vsel %vm160, %v149, 0
    %v163 = vsel %vm160, %v159, 0
    %165 = vmatprep.subr.mxu0 0.0
    %166 = vmatpush1.xpose.msra.mxu0 0.0
    %167 = vmatprep.subr.mxu0 0.0
    %168 = vmatpush1.xpose.msra.mxu0 0.0
    %169 = vmatprep.subr.mxu0 0.0
    %170 = vmatpush1.xpose.msra.mxu0 0.0
    %171 = vmatprep.subr.mxu0 0.0
    %172 = vmatpush1.xpose.msra.mxu0 0.0
    %173 = vmatprep.subr.mxu0 0.0
    %174 = vmatpush1.xpose.msra.mxu0 0.0
    %175 = vmatprep.subr.mxu0 0.0
    %176 = vmatpush1.xpose.msra.mxu0 0.0
    %177 = vmatprep.subr.mxu0 0.0
    %178 = vmatpush1.xpose.msra.mxu0 0.0
    %179 = vmatprep.subr.mxu0 0.0
    %180 = vmatpush1.xpose.msra.mxu0 0.0
    %181 = vmatprep.subr.mxu0 0.0
    %182 = vmatpush1.xpose.msra.mxu0 0.0
    %183 = vmatprep.subr.mxu0 0.0
    %184 = vmatpush1.xpose.msra.mxu0 0.0
    %185 = vmatprep.subr.mxu0 0.0
    %186 = vmatpush1.xpose.msra.mxu0 0.0
    %187 = vmatprep.subr.mxu0 0.0
    %188 = vmatpush1.xpose.msra.mxu0 0.0
    %189 = vmatprep.subr.mxu0 0.0
    %190 = vmatpush1.xpose.msra.mxu0 0.0
    %191 = vmatprep.subr.mxu0 0.0
    %192 = vmatpush1.xpose.msra.mxu0 0.0
    %193 = vmatprep.subr.mxu0 0.0
    %194 = vmatpush1.xpose.msra.mxu0 0.0
    %195 = vmatprep.subr.mxu0 0.0
    %196 = vmatpush1.xpose.msra.mxu0 %v163
    %197 = vmatprep.subr.mxu0 0.0
    %198 = vmatpush2.xpose.msra.mxu0 0.0
    %199 = vmatprep.subr.mxu0 0.0
    %200 = vmatpush2.xpose.msra.mxu0 0.0
    %201 = vmatprep.subr.mxu0 0.0
    %202 = vmatpush2.xpose.msra.mxu0 0.0
    %203 = vmatprep.subr.mxu0 0.0
    %204 = vmatpush2.xpose.msra.mxu0 0.0
    %205 = vmatprep.subr.mxu0 0.0
    %206 = vmatpush2.xpose.msra.mxu0 0.0
    %207 = vmatprep.subr.mxu0 0.0
    %208 = vmatpush2.xpose.msra.mxu0 0.0
    %209 = vmatprep.subr.mxu0 0.0
    %210 = vmatpush2.xpose.msra.mxu0 0.0
    %211 = vmatprep.subr.mxu0 0.0
    %212 = vmatpush2.xpose.msra.mxu0 0.0
    %213 = vmatprep.subr.mxu0 0.0
    %214 = vmatpush2.xpose.msra.mxu0 0.0
    %215 = vmatprep.subr.mxu0 0.0
    %216 = vmatpush2.xpose.msra.mxu0 0.0
    %217 = vmatprep.subr.mxu0 0.0
    %218 = vmatpush2.xpose.msra.mxu0 0.0
    %219 = vmatprep.subr.mxu0 0.0
    %220 = vmatpush2.xpose.msra.mxu0 0.0
    %221 = vmatprep.subr.mxu0 0.0
    %222 = vmatpush2.xpose.msra.mxu0 0.0
    %223 = vmatprep.subr.mxu0 0.0
    %224 = vmatpush2.xpose.msra.mxu0 0.0
    %225 = vmatprep.subr.mxu0 0.0
    %226 = vmatpush2.xpose.msra.mxu0 0.0
    %227 = vmatprep.subr.mxu0 0.0
    %228 = vmatpush2.xpose.msra.mxu0 0.0
    %229 = vmatprep.mubr.f32.mxu0 0.0
    %230 = vmatmul.mubr.f32.gmra.mxu0 %v161
    %v231 = vpop.f32.mrf.mxu0
    %v232 = vadd.f32 0.0, %v231
    %v233 = vpop.f32.mrf.mxu0
    %234 = vdwg.mxu0
    %236 = vrot.lane.b32.xlu0 %v154, 96
    %v237 = vpop.permute.xlu0 %236
    %v238 = vsel %vm160, %v154, 0
    %v240 = vsel %vm160, %v237, 0
    %242 = vmatprep.subr.mxu0 0.0
    %243 = vmatpush1.xpose.msra.mxu0 0.0
    %244 = vmatprep.subr.mxu0 0.0
    %245 = vmatpush1.xpose.msra.mxu0 0.0
    %246 = vmatprep.subr.mxu0 0.0
    %247 = vmatpush1.xpose.msra.mxu0 0.0
    %248 = vmatprep.subr.mxu0 0.0
    %249 = vmatpush1.xpose.msra.mxu0 0.0
    %250 = vmatprep.subr.mxu0 0.0
    %251 = vmatpush1.xpose.msra.mxu0 0.0
    %252 = vmatprep.subr.mxu0 0.0
    %253 = vmatpush1.xpose.msra.mxu0 0.0
    %254 = vmatprep.subr.mxu0 0.0
    %255 = vmatpush1.xpose.msra.mxu0 0.0
    %256 = vmatprep.subr.mxu0 0.0
    %257 = vmatpush1.xpose.msra.mxu0 0.0
    %258 = vmatprep.subr.mxu0 0.0
    %259 = vmatpush1.xpose.msra.mxu0 0.0
    %260 = vmatprep.subr.mxu0 0.0
    %261 = vmatpush1.xpose.msra.mxu0 0.0
    %262 = vmatprep.subr.mxu0 0.0
    %263 = vmatpush1.xpose.msra.mxu0 0.0
    %264 = vmatprep.subr.mxu0 0.0
    %265 = vmatpush1.xpose.msra.mxu0 0.0
    %266 = vmatprep.subr.mxu0 0.0
    %267 = vmatpush1.xpose.msra.mxu0 0.0
    %268 = vmatprep.subr.mxu0 0.0
    %269 = vmatpush1.xpose.msra.mxu0 0.0
    %270 = vmatprep.subr.mxu0 0.0
    %271 = vmatpush1.xpose.msra.mxu0 0.0
    %272 = vmatprep.subr.mxu0 0.0
    %273 = vmatpush1.xpose.msra.mxu0 %v240
    %274 = vmatprep.subr.mxu0 0.0
    %275 = vmatpush2.xpose.msra.mxu0 0.0
    %276 = vmatprep.subr.mxu0 0.0
    %277 = vmatpush2.xpose.msra.mxu0 0.0
    %278 = vmatprep.subr.mxu0 0.0
    %279 = vmatpush2.xpose.msra.mxu0 0.0
    %280 = vmatprep.subr.mxu0 0.0
    %281 = vmatpush2.xpose.msra.mxu0 0.0
    %282 = vmatprep.subr.mxu0 0.0
    %283 = vmatpush2.xpose.msra.mxu0 0.0
    %284 = vmatprep.subr.mxu0 0.0
    %285 = vmatpush2.xpose.msra.mxu0 0.0
    %286 = vmatprep.subr.mxu0 0.0
    %287 = vmatpush2.xpose.msra.mxu0 0.0
    %288 = vmatprep.subr.mxu0 0.0
    %289 = vmatpush2.xpose.msra.mxu0 0.0
    %290 = vmatprep.subr.mxu0 0.0
    %291 = vmatpush2.xpose.msra.mxu0 0.0
    %292 = vmatprep.subr.mxu0 0.0
    %293 = vmatpush2.xpose.msra.mxu0 0.0
    %294 = vmatprep.subr.mxu0 0.0
    %295 = vmatpush2.xpose.msra.mxu0 0.0
    %296 = vmatprep.subr.mxu0 0.0
    %297 = vmatpush2.xpose.msra.mxu0 0.0
    %298 = vmatprep.subr.mxu0 0.0
    %299 = vmatpush2.xpose.msra.mxu0 0.0
    %300 = vmatprep.subr.mxu0 0.0
    %301 = vmatpush2.xpose.msra.mxu0 0.0
    %302 = vmatprep.subr.mxu0 0.0
    %303 = vmatpush2.xpose.msra.mxu0 0.0
    %304 = vmatprep.subr.mxu0 0.0
    %305 = vmatpush2.xpose.msra.mxu0 0.0
    %306 = vmatprep.mubr.f32.mxu0 0.0
    %307 = vmatmul.mubr.f32.gmra.mxu0 %v238
    %v308 = vpop.f32.mrf.mxu0
    %v309 = vadd.f32 0.0, %v308
    %v310 = vpop.f32.mrf.mxu0
    %311 = vdwg.mxu0
    %vm312 = vcmask 64512
    %v313 = vsel %vm312, %v232, -inf
    %314 = vmax.xlane.f32.xlu0 %v313
    %v315 = vpop.xlane.xlu0 %314
    %v316 = vsel %vm312, %v309, -inf
    %317 = vmax.xlane.f32.xlu0 %v316
    %v318 = vpop.xlane.xlu0 %317
    %v319 = vsub.f32 %v232, %v315
    %v320 = vsub.f32 %v309, %v318
    %v321 = vmul.f32 %v319, 1.442695
    %v322 = vpow.pop %v321
    %v323 = vmul.f32 %v320, 1.442695
    %v324 = vpow.pop %v323
    %v325 = vsel %vm312, %v322, 0.0
    %326 = vadd.xlane.f32.xlu0 %v325
    %v327 = vpop.xlane.xlu0 %326
    %v328 = vsel %vm312, %v324, 0.0
    %329 = vadd.xlane.f32.xlu0 %v328
    %v330 = vpop.xlane.xlu0 %329
    %331 = vrot.lane.b32.xlu0 %v149, 64
    %v332 = vpop.permute.xlu0 %331
    %v335 = vsel %vm312, %v322, 0
    %337 = vmatprep.subr.mxu0 0.0
    %338 = vmatpush1.msra.mxu0 0.0
    %339 = vmatprep.subr.mxu0 0.0
    %340 = vmatpush1.msra.mxu0 0.0
    %341 = vmatprep.subr.mxu0 0.0
    %342 = vmatpush1.msra.mxu0 0.0
    %343 = vmatprep.subr.mxu0 0.0
    %344 = vmatpush1.msra.mxu0 0.0
    %345 = vmatprep.subr.mxu0 0.0
    %346 = vmatpush1.msra.mxu0 0.0
    %347 = vmatprep.subr.mxu0 0.0
    %348 = vmatpush1.msra.mxu0 0.0
    %349 = vmatprep.subr.mxu0 0.0
    %350 = vmatpush1.msra.mxu0 0.0
    %351 = vmatprep.subr.mxu0 0.0
    %352 = vmatpush1.msra.mxu0 0.0
    %353 = vmatprep.subr.mxu0 0.0
    %354 = vmatpush1.msra.mxu0 0.0
    %355 = vmatprep.subr.mxu0 0.0
    %356 = vmatpush1.msra.mxu0 0.0
    %357 = vmatprep.subr.mxu0 0.0
    %358 = vmatpush1.msra.mxu0 0.0
    %359 = vmatprep.subr.mxu0 0.0
    %360 = vmatpush1.msra.mxu0 0.0
    %361 = vmatprep.subr.mxu0 0.0
    %362 = vmatpush1.msra.mxu0 0.0
    %363 = vmatprep.subr.mxu0 0.0
    %364 = vmatpush1.msra.mxu0 0.0
    %365 = vmatprep.subr.mxu0 0.0
    %366 = vmatpush1.msra.mxu0 0.0
    %367 = vmatprep.subr.mxu0 0.0
    %368 = vmatpush1.msra.mxu0 %v332
    %369 = vmatprep.subr.mxu0 0.0
    %370 = vmatpush2.msra.mxu0 0.0
    %371 = vmatprep.subr.mxu0 0.0
    %372 = vmatpush2.msra.mxu0 0.0
    %373 = vmatprep.subr.mxu0 0.0
    %374 = vmatpush2.msra.mxu0 0.0
    %375 = vmatprep.subr.mxu0 0.0
    %376 = vmatpush2.msra.mxu0 0.0
    %377 = vmatprep.subr.mxu0 0.0
    %378 = vmatpush2.msra.mxu0 0.0
    %379 = vmatprep.subr.mxu0 0.0
    %380 = vmatpush2.msra.mxu0 0.0
    %381 = vmatprep.subr.mxu0 0.0
    %382 = vmatpush2.msra.mxu0 0.0
    %383 = vmatprep.subr.mxu0 0.0
    %384 = vmatpush2.msra.mxu0 0.0
    %385 = vmatprep.subr.mxu0 0.0
    %386 = vmatpush2.msra.mxu0 0.0
    %387 = vmatprep.subr.mxu0 0.0
    %388 = vmatpush2.msra.mxu0 0.0
    %389 = vmatprep.subr.mxu0 0.0
    %390 = vmatpush2.msra.mxu0 0.0
    %391 = vmatprep.subr.mxu0 0.0
    %392 = vmatpush2.msra.mxu0 0.0
    %393 = vmatprep.subr.mxu0 0.0
    %394 = vmatpush2.msra.mxu0 0.0
    %395 = vmatprep.subr.mxu0 0.0
    %396 = vmatpush2.msra.mxu0 0.0
    %397 = vmatprep.subr.mxu0 0.0
    %398 = vmatpush2.msra.mxu0 0.0
    %399 = vmatprep.subr.mxu0 0.0
    %400 = vmatpush2.msra.mxu0 0.0
    %401 = vmatprep.mubr.f32.mxu0 0.0
    %402 = vmatmul.mubr.f32.gmra.mxu0 %v335
    %v403 = vpop.f32.mrf.mxu0
    %v404 = vadd.f32 0.0, %v403
    %v405 = vpop.f32.mrf.mxu0
    %406 = vdwg.mxu0
    %407 = vrot.lane.b32.xlu0 %v154, 64
    %v408 = vpop.permute.xlu0 %407
    %v411 = vsel %vm312, %v324, 0
    %413 = vmatprep.subr.mxu0 0.0
    %414 = vmatpush1.msra.mxu0 0.0
    %415 = vmatprep.subr.mxu0 0.0
    %416 = vmatpush1.msra.mxu0 0.0
    %417 = vmatprep.subr.mxu0 0.0
    %418 = vmatpush1.msra.mxu0 0.0
    %419 = vmatprep.subr.mxu0 0.0
    %420 = vmatpush1.msra.mxu0 0.0
    %421 = vmatprep.subr.mxu0 0.0
    %422 = vmatpush1.msra.mxu0 0.0
    %423 = vmatprep.subr.mxu0 0.0
    %424 = vmatpush1.msra.mxu0 0.0
    %425 = vmatprep.subr.mxu0 0.0
    %426 = vmatpush1.msra.mxu0 0.0
    %427 = vmatprep.subr.mxu0 0.0
    %428 = vmatpush1.msra.mxu0 0.0
    %429 = vmatprep.subr.mxu0 0.0
    %430 = vmatpush1.msra.mxu0 0.0
    %431 = vmatprep.subr.mxu0 0.0
    %432 = vmatpush1.msra.mxu0 0.0
    %433 = vmatprep.subr.mxu0 0.0
    %434 = vmatpush1.msra.mxu0 0.0
    %435 = vmatprep.subr.mxu0 0.0
    %436 = vmatpush1.msra.mxu0 0.0
    %437 = vmatprep.subr.mxu0 0.0
    %438 = vmatpush1.msra.mxu0 0.0
    %439 = vmatprep.subr.mxu0 0.0
    %440 = vmatpush1.msra.mxu0 0.0
    %441 = vmatprep.subr.mxu0 0.0
    %442 = vmatpush1.msra.mxu0 0.0
    %443 = vmatprep.subr.mxu0 0.0
    %444 = vmatpush1.msra.mxu0 %v408
    %445 = vmatprep.subr.mxu0 0.0
    %446 = vmatpush2.msra.mxu0 0.0
    %447 = vmatprep.subr.mxu0 0.0
    %448 = vmatpush2.msra.mxu0 0.0
    %449 = vmatprep.subr.mxu0 0.0
    %450 = vmatpush2.msra.mxu0 0.0
    %451 = vmatprep.subr.mxu0 0.0
    %452 = vmatpush2.msra.mxu0 0.0
    %453 = vmatprep.subr.mxu0 0.0
    %454 = vmatpush2.msra.mxu0 0.0
    %455 = vmatprep.subr.mxu0 0.0
    %456 = vmatpush2.msra.mxu0 0.0
    %457 = vmatprep.subr.mxu0 0.0
    %458 = vmatpush2.msra.mxu0 0.0
    %459 = vmatprep.subr.mxu0 0.0
    %460 = vmatpush2.msra.mxu0 0.0
    %461 = vmatprep.subr.mxu0 0.0
    %462 = vmatpush2.msra.mxu0 0.0
    %463 = vmatprep.subr.mxu0 0.0
    %464 = vmatpush2.msra.mxu0 0.0
    %465 = vmatprep.subr.mxu0 0.0
    %466 = vmatpush2.msra.mxu0 0.0
    %467 = vmatprep.subr.mxu0 0.0
    %468 = vmatpush2.msra.mxu0 0.0
    %469 = vmatprep.subr.mxu0 0.0
    %470 = vmatpush2.msra.mxu0 0.0
    %471 = vmatprep.subr.mxu0 0.0
    %472 = vmatpush2.msra.mxu0 0.0
    %473 = vmatprep.subr.mxu0 0.0
    %474 = vmatpush2.msra.mxu0 0.0
    %475 = vmatprep.subr.mxu0 0.0
    %476 = vmatpush2.msra.mxu0 0.0
    %477 = vmatprep.mubr.f32.mxu0 0.0
    %478 = vmatmul.mubr.f32.gmra.mxu0 %v411
    %v479 = vpop.f32.mrf.mxu0
    %v480 = vadd.f32 0.0, %v479
    %v481 = vpop.f32.mrf.mxu0
    %482 = vdwg.mxu0
    %v483 = vrcp.pop %v327
    %v484 = vrcp.pop %v330
    %v485 = vmul.f32 %v404, %v483
    %v486 = vmul.f32 %v480, %v484
    %487 = vrot.lane.b32.xlu0 %v149, 124
    %v488 = vpop.permute.xlu0 %487
    %489 = vrot.lane.b32.xlu0 %v149, 92
    %v490 = vpop.permute.xlu0 %489
    %v491 = vsel %vm160, %v488, 0
    %v493 = vsel %vm160, %v490, 0
    %495 = vmatprep.subr.mxu0 0.0
    %496 = vmatpush1.xpose.msra.mxu0 0.0
    %497 = vmatprep.subr.mxu0 0.0
    %498 = vmatpush1.xpose.msra.mxu0 0.0
    %499 = vmatprep.subr.mxu0 0.0
    %500 = vmatpush1.xpose.msra.mxu0 0.0
    %501 = vmatprep.subr.mxu0 0.0
    %502 = vmatpush1.xpose.msra.mxu0 0.0
    %503 = vmatprep.subr.mxu0 0.0
    %504 = vmatpush1.xpose.msra.mxu0 0.0
    %505 = vmatprep.subr.mxu0 0.0
    %506 = vmatpush1.xpose.msra.mxu0 0.0
    %507 = vmatprep.subr.mxu0 0.0
    %508 = vmatpush1.xpose.msra.mxu0 0.0
    %509 = vmatprep.subr.mxu0 0.0
    %510 = vmatpush1.xpose.msra.mxu0 0.0
    %511 = vmatprep.subr.mxu0 0.0
    %512 = vmatpush1.xpose.msra.mxu0 0.0
    %513 = vmatprep.subr.mxu0 0.0
    %514 = vmatpush1.xpose.msra.mxu0 0.0
    %515 = vmatprep.subr.mxu0 0.0
    %516 = vmatpush1.xpose.msra.mxu0 0.0
    %517 = vmatprep.subr.mxu0 0.0
    %518 = vmatpush1.xpose.msra.mxu0 0.0
    %519 = vmatprep.subr.mxu0 0.0
    %520 = vmatpush1.xpose.msra.mxu0 0.0
    %521 = vmatprep.subr.mxu0 0.0
    %522 = vmatpush1.xpose.msra.mxu0 0.0
    %523 = vmatprep.subr.mxu0 0.0
    %524 = vmatpush1.xpose.msra.mxu0 0.0
    %525 = vmatprep.subr.mxu0 0.0
    %526 = vmatpush1.xpose.msra.mxu0 %v493
    %527 = vmatprep.subr.mxu0 0.0
    %528 = vmatpush2.xpose.msra.mxu0 0.0
    %529 = vmatprep.subr.mxu0 0.0
    %530 = vmatpush2.xpose.msra.mxu0 0.0
    %531 = vmatprep.subr.mxu0 0.0
    %532 = vmatpush2.xpose.msra.mxu0 0.0
    %533 = vmatprep.subr.mxu0 0.0
    %534 = vmatpush2.xpose.msra.mxu0 0.0
    %535 = vmatprep.subr.mxu0 0.0
    %536 = vmatpush2.xpose.msra.mxu0 0.0
    %537 = vmatprep.subr.mxu0 0.0
    %538 = vmatpush2.xpose.msra.mxu0 0.0
    %539 = vmatprep.subr.mxu0 0.0
    %540 = vmatpush2.xpose.msra.mxu0 0.0
    %541 = vmatprep.subr.mxu0 0.0
    %542 = vmatpush2.xpose.msra.mxu0 0.0
    %543 = vmatprep.subr.mxu0 0.0
    %544 = vmatpush2.xpose.msra.mxu0 0.0
    %545 = vmatprep.subr.mxu0 0.0
    %546 = vmatpush2.xpose.msra.mxu0 0.0
    %547 = vmatprep.subr.mxu0 0.0
    %548 = vmatpush2.xpose.msra.mxu0 0.0
    %549 = vmatprep.subr.mxu0 0.0
    %550 = vmatpush2.xpose.msra.mxu0 0.0
    %551 = vmatprep.subr.mxu0 0.0
    %552 = vmatpush2.xpose.msra.mxu0 0.0
    %553 = vmatprep.subr.mxu0 0.0
    %554 = vmatpush2.xpose.msra.mxu0 0.0
    %555 = vmatprep.subr.mxu0 0.0
    %556 = vmatpush2.xpose.msra.mxu0 0.0
    %557 = vmatprep.subr.mxu0 0.0
    %558 = vmatpush2.xpose.msra.mxu0 0.0
    %559 = vmatprep.mubr.f32.mxu0 0.0
    %560 = vmatmul.mubr.f32.gmra.mxu0 %v491
    %v561 = vpop.f32.mrf.mxu0
    %v562 = vadd.f32 0.0, %v561
    %v563 = vpop.f32.mrf.mxu0
    %564 = vdwg.mxu0
    %565 = vrot.lane.b32.xlu0 %v154, 124
    %v566 = vpop.permute.xlu0 %565
    %567 = vrot.lane.b32.xlu0 %v154, 92
    %v568 = vpop.permute.xlu0 %567
    %v569 = vsel %vm160, %v566, 0
    %v571 = vsel %vm160, %v568, 0
    %573 = vmatprep.subr.mxu0 0.0
    %574 = vmatpush1.xpose.msra.mxu0 0.0
    %575 = vmatprep.subr.mxu0 0.0
    %576 = vmatpush1.xpose.msra.mxu0 0.0
    %577 = vmatprep.subr.mxu0 0.0
    %578 = vmatpush1.xpose.msra.mxu0 0.0
    %579 = vmatprep.subr.mxu0 0.0
    %580 = vmatpush1.xpose.msra.mxu0 0.0
    %581 = vmatprep.subr.mxu0 0.0
    %582 = vmatpush1.xpose.msra.mxu0 0.0
    %583 = vmatprep.subr.mxu0 0.0
    %584 = vmatpush1.xpose.msra.mxu0 0.0
    %585 = vmatprep.subr.mxu0 0.0
    %586 = vmatpush1.xpose.msra.mxu0 0.0
    %587 = vmatprep.subr.mxu0 0.0
    %588 = vmatpush1.xpose.msra.mxu0 0.0
    %589 = vmatprep.subr.mxu0 0.0
    %590 = vmatpush1.xpose.msra.mxu0 0.0
    %591 = vmatprep.subr.mxu0 0.0
    %592 = vmatpush1.xpose.msra.mxu0 0.0
    %593 = vmatprep.subr.mxu0 0.0
    %594 = vmatpush1.xpose.msra.mxu0 0.0
    %595 = vmatprep.subr.mxu0 0.0
    %596 = vmatpush1.xpose.msra.mxu0 0.0
    %597 = vmatprep.subr.mxu0 0.0
    %598 = vmatpush1.xpose.msra.mxu0 0.0
    %599 = vmatprep.subr.mxu0 0.0
    %600 = vmatpush1.xpose.msra.mxu0 0.0
    %601 = vmatprep.subr.mxu0 0.0
    %602 = vmatpush1.xpose.msra.mxu0 0.0
    %603 = vmatprep.subr.mxu0 0.0
    %604 = vmatpush1.xpose.msra.mxu0 %v571
    %605 = vmatprep.subr.mxu0 0.0
    %606 = vmatpush2.xpose.msra.mxu0 0.0
    %607 = vmatprep.subr.mxu0 0.0
    %608 = vmatpush2.xpose.msra.mxu0 0.0
    %609 = vmatprep.subr.mxu0 0.0
    %610 = vmatpush2.xpose.msra.mxu0 0.0
    %611 = vmatprep.subr.mxu0 0.0
    %612 = vmatpush2.xpose.msra.mxu0 0.0
    %613 = vmatprep.subr.mxu0 0.0
    %614 = vmatpush2.xpose.msra.mxu0 0.0
    %615 = vmatprep.subr.mxu0 0.0
    %616 = vmatpush2.xpose.msra.mxu0 0.0
    %617 = vmatprep.subr.mxu0 0.0
    %618 = vmatpush2.xpose.msra.mxu0 0.0
    %619 = vmatprep.subr.mxu0 0.0
    %620 = vmatpush2.xpose.msra.mxu0 0.0
    %621 = vmatprep.subr.mxu0 0.0
    %622 = vmatpush2.xpose.msra.mxu0 0.0
    %623 = vmatprep.subr.mxu0 0.0
    %624 = vmatpush2.xpose.msra.mxu0 0.0
    %625 = vmatprep.subr.mxu0 0.0
    %626 = vmatpush2.xpose.msra.mxu0 0.0
    %627 = vmatprep.subr.mxu0 0.0
    %628 = vmatpush2.xpose.msra.mxu0 0.0
    %629 = vmatprep.subr.mxu0 0.0
    %630 = vmatpush2.xpose.msra.mxu0 0.0
    %631 = vmatprep.subr.mxu0 0.0
    %632 = vmatpush2.xpose.msra.mxu0 0.0
    %633 = vmatprep.subr.mxu0 0.0
    %634 = vmatpush2.xpose.msra.mxu0 0.0
    %635 = vmatprep.subr.mxu0 0.0
    %636 = vmatpush2.xpose.msra.mxu0 0.0
    %637 = vmatprep.mubr.f32.mxu0 0.0
    %638 = vmatmul.mubr.f32.gmra.mxu0 %v569
    %v639 = vpop.f32.mrf.mxu0
    %v640 = vadd.f32 0.0, %v639
    %v641 = vpop.f32.mrf.mxu0
    %642 = vdwg.mxu0
    %v643 = vsel %vm312, %v562, -inf
    %644 = vmax.xlane.f32.xlu0 %v643
    %v645 = vpop.xlane.xlu0 %644
    %v646 = vsel %vm312, %v640, -inf
    %647 = vmax.xlane.f32.xlu0 %v646
    %v648 = vpop.xlane.xlu0 %647
    %v649 = vsub.f32 %v562, %v645
    %v650 = vsub.f32 %v640, %v648
    %v651 = vmul.f32 %v649, 1.442695
    %v652 = vpow.pop %v651
    %v653 = vmul.f32 %v650, 1.442695
    %v654 = vpow.pop %v653
    %v655 = vsel %vm312, %v652, 0.0
    %656 = vadd.xlane.f32.xlu0 %v655
    %v657 = vpop.xlane.xlu0 %656
    %v658 = vsel %vm312, %v654, 0.0
    %659 = vadd.xlane.f32.xlu0 %v658
    %v660 = vpop.xlane.xlu0 %659
    %661 = vrot.lane.b32.xlu0 %v149, 60
    %v662 = vpop.permute.xlu0 %661
    %v665 = vsel %vm312, %v652, 0
    %667 = vmatprep.subr.mxu0 0.0
    %668 = vmatpush1.msra.mxu0 0.0
    %669 = vmatprep.subr.mxu0 0.0
    %670 = vmatpush1.msra.mxu0 0.0
    %671 = vmatprep.subr.mxu0 0.0
    %672 = vmatpush1.msra.mxu0 0.0
    %673 = vmatprep.subr.mxu0 0.0
    %674 = vmatpush1.msra.mxu0 0.0
    %675 = vmatprep.subr.mxu0 0.0
    %676 = vmatpush1.msra.mxu0 0.0
    %677 = vmatprep.subr.mxu0 0.0
    %678 = vmatpush1.msra.mxu0 0.0
    %679 = vmatprep.subr.mxu0 0.0
    %680 = vmatpush1.msra.mxu0 0.0
    %681 = vmatprep.subr.mxu0 0.0
    %682 = vmatpush1.msra.mxu0 0.0
    %683 = vmatprep.subr.mxu0 0.0
    %684 = vmatpush1.msra.mxu0 0.0
    %685 = vmatprep.subr.mxu0 0.0
    %686 = vmatpush1.msra.mxu0 0.0
    %687 = vmatprep.subr.mxu0 0.0
    %688 = vmatpush1.msra.mxu0 0.0
    %689 = vmatprep.subr.mxu0 0.0
    %690 = vmatpush1.msra.mxu0 0.0
    %691 = vmatprep.subr.mxu0 0.0
    %692 = vmatpush1.msra.mxu0 0.0
    %693 = vmatprep.subr.mxu0 0.0
    %694 = vmatpush1.msra.mxu0 0.0
    %695 = vmatprep.subr.mxu0 0.0
    %696 = vmatpush1.msra.mxu0 0.0
    %697 = vmatprep.subr.mxu0 0.0
    %698 = vmatpush1.msra.mxu0 %v662
    %699 = vmatprep.subr.mxu0 0.0
    %700 = vmatpush2.msra.mxu0 0.0
    %701 = vmatprep.subr.mxu0 0.0
    %702 = vmatpush2.msra.mxu0 0.0
    %703 = vmatprep.subr.mxu0 0.0
    %704 = vmatpush2.msra.mxu0 0.0
    %705 = vmatprep.subr.mxu0 0.0
    %706 = vmatpush2.msra.mxu0 0.0
    %707 = vmatprep.subr.mxu0 0.0
    %708 = vmatpush2.msra.mxu0 0.0
    %709 = vmatprep.subr.mxu0 0.0
    %710 = vmatpush2.msra.mxu0 0.0
    %711 = vmatprep.subr.mxu0 0.0
    %712 = vmatpush2.msra.mxu0 0.0
    %713 = vmatprep.subr.mxu0 0.0
    %714 = vmatpush2.msra.mxu0 0.0
    %715 = vmatprep.subr.mxu0 0.0
    %716 = vmatpush2.msra.mxu0 0.0
    %717 = vmatprep.subr.mxu0 0.0
    %718 = vmatpush2.msra.mxu0 0.0
    %719 = vmatprep.subr.mxu0 0.0
    %720 = vmatpush2.msra.mxu0 0.0
    %721 = vmatprep.subr.mxu0 0.0
    %722 = vmatpush2.msra.mxu0 0.0
    %723 = vmatprep.subr.mxu0 0.0
    %724 = vmatpush2.msra.mxu0 0.0
    %725 = vmatprep.subr.mxu0 0.0
    %726 = vmatpush2.msra.mxu0 0.0
    %727 = vmatprep.subr.mxu0 0.0
    %728 = vmatpush2.msra.mxu0 0.0
    %729 = vmatprep.subr.mxu0 0.0
    %730 = vmatpush2.msra.mxu0 0.0
    %731 = vmatprep.mubr.f32.mxu0 0.0
    %732 = vmatmul.mubr.f32.gmra.mxu0 %v665
    %v733 = vpop.f32.mrf.mxu0
    %v734 = vadd.f32 0.0, %v733
    %v735 = vpop.f32.mrf.mxu0
    %736 = vdwg.mxu0
    %737 = vrot.lane.b32.xlu0 %v154, 60
    %v738 = vpop.permute.xlu0 %737
    %v741 = vsel %vm312, %v654, 0
    %743 = vmatprep.subr.mxu0 0.0
    %744 = vmatpush1.msra.mxu0 0.0
    %745 = vmatprep.subr.mxu0 0.0
    %746 = vmatpush1.msra.mxu0 0.0
    %747 = vmatprep.subr.mxu0 0.0
    %748 = vmatpush1.msra.mxu0 0.0
    %749 = vmatprep.subr.mxu0 0.0
    %750 = vmatpush1.msra.mxu0 0.0
    %751 = vmatprep.subr.mxu0 0.0
    %752 = vmatpush1.msra.mxu0 0.0
    %753 = vmatprep.subr.mxu0 0.0
    %754 = vmatpush1.msra.mxu0 0.0
    %755 = vmatprep.subr.mxu0 0.0
    %756 = vmatpush1.msra.mxu0 0.0
    %757 = vmatprep.subr.mxu0 0.0
    %758 = vmatpush1.msra.mxu0 0.0
    %759 = vmatprep.subr.mxu0 0.0
    %760 = vmatpush1.msra.mxu0 0.0
    %761 = vmatprep.subr.mxu0 0.0
    %762 = vmatpush1.msra.mxu0 0.0
    %763 = vmatprep.subr.mxu0 0.0
    %764 = vmatpush1.msra.mxu0 0.0
    %765 = vmatprep.subr.mxu0 0.0
    %766 = vmatpush1.msra.mxu0 0.0
    %767 = vmatprep.subr.mxu0 0.0
    %768 = vmatpush1.msra.mxu0 0.0
    %769 = vmatprep.subr.mxu0 0.0
    %770 = vmatpush1.msra.mxu0 0.0
    %771 = vmatprep.subr.mxu0 0.0
    %772 = vmatpush1.msra.mxu0 0.0
    %773 = vmatprep.subr.mxu0 0.0
    %774 = vmatpush1.msra.mxu0 %v738
    %775 = vmatprep.subr.mxu0 0.0
    %776 = vmatpush2.msra.mxu0 0.0
    %777 = vmatprep.subr.mxu0 0.0
    %778 = vmatpush2.msra.mxu0 0.0
    %779 = vmatprep.subr.mxu0 0.0
    %780 = vmatpush2.msra.mxu0 0.0
    %781 = vmatprep.subr.mxu0 0.0
    %782 = vmatpush2.msra.mxu0 0.0
    %783 = vmatprep.subr.mxu0 0.0
    %784 = vmatpush2.msra.mxu0 0.0
    %785 = vmatprep.subr.mxu0 0.0
    %786 = vmatpush2.msra.mxu0 0.0
    %787 = vmatprep.subr.mxu0 0.0
    %788 = vmatpush2.msra.mxu0 0.0
    %789 = vmatprep.subr.mxu0 0.0
    %790 = vmatpush2.msra.mxu0 0.0
    %791 = vmatprep.subr.mxu0 0.0
    %792 = vmatpush2.msra.mxu0 0.0
    %793 = vmatprep.subr.mxu0 0.0
    %794 = vmatpush2.msra.mxu0 0.0
    %795 = vmatprep.subr.mxu0 0.0
    %796 = vmatpush2.msra.mxu0 0.0
    %797 = vmatprep.subr.mxu0 0.0
    %798 = vmatpush2.msra.mxu0 0.0
    %799 = vmatprep.subr.mxu0 0.0
    %800 = vmatpush2.msra.mxu0 0.0
    %801 = vmatprep.subr.mxu0 0.0
    %802 = vmatpush2.msra.mxu0 0.0
    %803 = vmatprep.subr.mxu0 0.0
    %804 = vmatpush2.msra.mxu0 0.0
    %805 = vmatprep.subr.mxu0 0.0
    %806 = vmatpush2.msra.mxu0 0.0
    %807 = vmatprep.mubr.f32.mxu0 0.0
    %808 = vmatmul.mubr.f32.gmra.mxu0 %v741
    %v809 = vpop.f32.mrf.mxu0
    %v810 = vadd.f32 0.0, %v809
    %v811 = vpop.f32.mrf.mxu0
    %812 = vdwg.mxu0
    %v813 = vrcp.pop %v657
    %v814 = vrcp.pop %v660
    %v815 = vmul.f32 %v734, %v813
    %v816 = vmul.f32 %v810, %v814
    %817 = vrot.lane.b32.xlu0 %v149, 120
    %v818 = vpop.permute.xlu0 %817
    %819 = vrot.lane.b32.xlu0 %v149, 88
    %v820 = vpop.permute.xlu0 %819
    %v821 = vsel %vm160, %v818, 0
    %v823 = vsel %vm160, %v820, 0
    %825 = vmatprep.subr.mxu0 0.0
    %826 = vmatpush1.xpose.msra.mxu0 0.0
    %827 = vmatprep.subr.mxu0 0.0
    %828 = vmatpush1.xpose.msra.mxu0 0.0
    %829 = vmatprep.subr.mxu0 0.0
    %830 = vmatpush1.xpose.msra.mxu0 0.0
    %831 = vmatprep.subr.mxu0 0.0
    %832 = vmatpush1.xpose.msra.mxu0 0.0
    %833 = vmatprep.subr.mxu0 0.0
    %834 = vmatpush1.xpose.msra.mxu0 0.0
    %835 = vmatprep.subr.mxu0 0.0
    %836 = vmatpush1.xpose.msra.mxu0 0.0
    %837 = vmatprep.subr.mxu0 0.0
    %838 = vmatpush1.xpose.msra.mxu0 0.0
    %839 = vmatprep.subr.mxu0 0.0
    %840 = vmatpush1.xpose.msra.mxu0 0.0
    %841 = vmatprep.subr.mxu0 0.0
    %842 = vmatpush1.xpose.msra.mxu0 0.0
    %843 = vmatprep.subr.mxu0 0.0
    %844 = vmatpush1.xpose.msra.mxu0 0.0
    %845 = vmatprep.subr.mxu0 0.0
    %846 = vmatpush1.xpose.msra.mxu0 0.0
    %847 = vmatprep.subr.mxu0 0.0
    %848 = vmatpush1.xpose.msra.mxu0 0.0
    %849 = vmatprep.subr.mxu0 0.0
    %850 = vmatpush1.xpose.msra.mxu0 0.0
    %851 = vmatprep.subr.mxu0 0.0
    %852 = vmatpush1.xpose.msra.mxu0 0.0
    %853 = vmatprep.subr.mxu0 0.0
    %854 = vmatpush1.xpose.msra.mxu0 0.0
    %855 = vmatprep.subr.mxu0 0.0
    %856 = vmatpush1.xpose.msra.mxu0 %v823
    %857 = vmatprep.subr.mxu0 0.0
    %858 = vmatpush2.xpose.msra.mxu0 0.0
    %859 = vmatprep.subr.mxu0 0.0
    %860 = vmatpush2.xpose.msra.mxu0 0.0
    %861 = vmatprep.subr.mxu0 0.0
    %862 = vmatpush2.xpose.msra.mxu0 0.0
    %863 = vmatprep.subr.mxu0 0.0
    %864 = vmatpush2.xpose.msra.mxu0 0.0
    %865 = vmatprep.subr.mxu0 0.0
    %866 = vmatpush2.xpose.msra.mxu0 0.0
    %867 = vmatprep.subr.mxu0 0.0
    %868 = vmatpush2.xpose.msra.mxu0 0.0
    %869 = vmatprep.subr.mxu0 0.0
    %870 = vmatpush2.xpose.msra.mxu0 0.0
    %871 = vmatprep.subr.mxu0 0.0
    %872 = vmatpush2.xpose.msra.mxu0 0.0
    %873 = vmatprep.subr.mxu0 0.0
    %874 = vmatpush2.xpose.msra.mxu0 0.0
    %875 = vmatprep.subr.mxu0 0.0
    %876 = vmatpush2.xpose.msra.mxu0 0.0
    %877 = vmatprep.subr.mxu0 0.0
    %878 = vmatpush2.xpose.msra.mxu0 0.0
    %879 = vmatprep.subr.mxu0 0.0
    %880 = vmatpush2.xpose.msra.mxu0 0.0
    %881 = vmatprep.subr.mxu0 0.0
    %882 = vmatpush2.xpose.msra.mxu0 0.0
    %883 = vmatprep.subr.mxu0 0.0
    %884 = vmatpush2.xpose.msra.mxu0 0.0
    %885 = vmatprep.subr.mxu0 0.0
    %886 = vmatpush2.xpose.msra.mxu0 0.0
    %887 = vmatprep.subr.mxu0 0.0
    %888 = vmatpush2.xpose.msra.mxu0 0.0
    %889 = vmatprep.mubr.f32.mxu0 0.0
    %890 = vmatmul.mubr.f32.gmra.mxu0 %v821
    %v891 = vpop.f32.mrf.mxu0
    %v892 = vadd.f32 0.0, %v891
    %v893 = vpop.f32.mrf.mxu0
    %894 = vdwg.mxu0
    %895 = vrot.lane.b32.xlu0 %v154, 120
    %v896 = vpop.permute.xlu0 %895
    %897 = vrot.lane.b32.xlu0 %v154, 88
    %v898 = vpop.permute.xlu0 %897
    %v899 = vsel %vm160, %v896, 0
    %v901 = vsel %vm160, %v898, 0
    %903 = vmatprep.subr.mxu0 0.0
    %904 = vmatpush1.xpose.msra.mxu0 0.0
    %905 = vmatprep.subr.mxu0 0.0
    %906 = vmatpush1.xpose.msra.mxu0 0.0
    %907 = vmatprep.subr.mxu0 0.0
    %908 = vmatpush1.xpose.msra.mxu0 0.0
    %909 = vmatprep.subr.mxu0 0.0
    %910 = vmatpush1.xpose.msra.mxu0 0.0
    %911 = vmatprep.subr.mxu0 0.0
    %912 = vmatpush1.xpose.msra.mxu0 0.0
    %913 = vmatprep.subr.mxu0 0.0
    %914 = vmatpush1.xpose.msra.mxu0 0.0
    %915 = vmatprep.subr.mxu0 0.0
    %916 = vmatpush1.xpose.msra.mxu0 0.0
    %917 = vmatprep.subr.mxu0 0.0
    %918 = vmatpush1.xpose.msra.mxu0 0.0
    %919 = vmatprep.subr.mxu0 0.0
    %920 = vmatpush1.xpose.msra.mxu0 0.0
    %921 = vmatprep.subr.mxu0 0.0
    %922 = vmatpush1.xpose.msra.mxu0 0.0
    %923 = vmatprep.subr.mxu0 0.0
    %924 = vmatpush1.xpose.msra.mxu0 0.0
    %925 = vmatprep.subr.mxu0 0.0
    %926 = vmatpush1.xpose.msra.mxu0 0.0
    %927 = vmatprep.subr.mxu0 0.0
    %928 = vmatpush1.xpose.msra.mxu0 0.0
    %929 = vmatprep.subr.mxu0 0.0
    %930 = vmatpush1.xpose.msra.mxu0 0.0
    %931 = vmatprep.subr.mxu0 0.0
    %932 = vmatpush1.xpose.msra.mxu0 0.0
    %933 = vmatprep.subr.mxu0 0.0
    %934 = vmatpush1.xpose.msra.mxu0 %v901
    %935 = vmatprep.subr.mxu0 0.0
    %936 = vmatpush2.xpose.msra.mxu0 0.0
    %937 = vmatprep.subr.mxu0 0.0
    %938 = vmatpush2.xpose.msra.mxu0 0.0
    %939 = vmatprep.subr.mxu0 0.0
    %940 = vmatpush2.xpose.msra.mxu0 0.0
    %941 = vmatprep.subr.mxu0 0.0
    %942 = vmatpush2.xpose.msra.mxu0 0.0
    %943 = vmatprep.subr.mxu0 0.0
    %944 = vmatpush2.xpose.msra.mxu0 0.0
    %945 = vmatprep.subr.mxu0 0.0
    %946 = vmatpush2.xpose.msra.mxu0 0.0
    %947 = vmatprep.subr.mxu0 0.0
    %948 = vmatpush2.xpose.msra.mxu0 0.0
    %949 = vmatprep.subr.mxu0 0.0
    %950 = vmatpush2.xpose.msra.mxu0 0.0
    %951 = vmatprep.subr.mxu0 0.0
    %952 = vmatpush2.xpose.msra.mxu0 0.0
    %953 = vmatprep.subr.mxu0 0.0
    %954 = vmatpush2.xpose.msra.mxu0 0.0
    %955 = vmatprep.subr.mxu0 0.0
    %956 = vmatpush2.xpose.msra.mxu0 0.0
    %957 = vmatprep.subr.mxu0 0.0
    %958 = vmatpush2.xpose.msra.mxu0 0.0
    %959 = vmatprep.subr.mxu0 0.0
    %960 = vmatpush2.xpose.msra.mxu0 0.0
    %961 = vmatprep.subr.mxu0 0.0
    %962 = vmatpush2.xpose.msra.mxu0 0.0
    %963 = vmatprep.subr.mxu0 0.0
    %964 = vmatpush2.xpose.msra.mxu0 0.0
    %965 = vmatprep.subr.mxu0 0.0
    %966 = vmatpush2.xpose.msra.mxu0 0.0
    %967 = vmatprep.mubr.f32.mxu0 0.0
    %968 = vmatmul.mubr.f32.gmra.mxu0 %v899
    %v969 = vpop.f32.mrf.mxu0
    %v970 = vadd.f32 0.0, %v969
    %v971 = vpop.f32.mrf.mxu0
    %972 = vdwg.mxu0
    %v973 = vsel %vm312, %v892, -inf
    %974 = vmax.xlane.f32.xlu0 %v973
    %v975 = vpop.xlane.xlu0 %974
    %v976 = vsel %vm312, %v970, -inf
    %977 = vmax.xlane.f32.xlu0 %v976
    %v978 = vpop.xlane.xlu0 %977
    %v979 = vsub.f32 %v892, %v975
    %v980 = vsub.f32 %v970, %v978
    %v981 = vmul.f32 %v979, 1.442695
    %v982 = vpow.pop %v981
    %v983 = vmul.f32 %v980, 1.442695
    %v984 = vpow.pop %v983
    %v985 = vsel %vm312, %v982, 0.0
    %986 = vadd.xlane.f32.xlu0 %v985
    %v987 = vpop.xlane.xlu0 %986
    %v988 = vsel %vm312, %v984, 0.0
    %989 = vadd.xlane.f32.xlu0 %v988
    %v990 = vpop.xlane.xlu0 %989
    %991 = vrot.lane.b32.xlu0 %v149, 56
    %v992 = vpop.permute.xlu0 %991
    %v995 = vsel %vm312, %v982, 0
    %997 = vmatprep.subr.mxu0 0.0
    %998 = vmatpush1.msra.mxu0 0.0
    %999 = vmatprep.subr.mxu0 0.0
    %1000 = vmatpush1.msra.mxu0 0.0
    %1001 = vmatprep.subr.mxu0 0.0
    %1002 = vmatpush1.msra.mxu0 0.0
    %1003 = vmatprep.subr.mxu0 0.0
    %1004 = vmatpush1.msra.mxu0 0.0
    %1005 = vmatprep.subr.mxu0 0.0
    %1006 = vmatpush1.msra.mxu0 0.0
    %1007 = vmatprep.subr.mxu0 0.0
    %1008 = vmatpush1.msra.mxu0 0.0
    %1009 = vmatprep.subr.mxu0 0.0
    %1010 = vmatpush1.msra.mxu0 0.0
    %1011 = vmatprep.subr.mxu0 0.0
    %1012 = vmatpush1.msra.mxu0 0.0
    %1013 = vmatprep.subr.mxu0 0.0
    %1014 = vmatpush1.msra.mxu0 0.0
    %1015 = vmatprep.subr.mxu0 0.0
    %1016 = vmatpush1.msra.mxu0 0.0
    %1017 = vmatprep.subr.mxu0 0.0
    %1018 = vmatpush1.msra.mxu0 0.0
    %1019 = vmatprep.subr.mxu0 0.0
    %1020 = vmatpush1.msra.mxu0 0.0
    %1021 = vmatprep.subr.mxu0 0.0
    %1022 = vmatpush1.msra.mxu0 0.0
    %1023 = vmatprep.subr.mxu0 0.0
    %1024 = vmatpush1.msra.mxu0 0.0
    %1025 = vmatprep.subr.mxu0 0.0
    %1026 = vmatpush1.msra.mxu0 0.0
    %1027 = vmatprep.subr.mxu0 0.0
    %1028 = vmatpush1.msra.mxu0 %v992
    %1029 = vmatprep.subr.mxu0 0.0
    %1030 = vmatpush2.msra.mxu0 0.0
    %1031 = vmatprep.subr.mxu0 0.0
    %1032 = vmatpush2.msra.mxu0 0.0
    %1033 = vmatprep.subr.mxu0 0.0
    %1034 = vmatpush2.msra.mxu0 0.0
    %1035 = vmatprep.subr.mxu0 0.0
    %1036 = vmatpush2.msra.mxu0 0.0
    %1037 = vmatprep.subr.mxu0 0.0
    %1038 = vmatpush2.msra.mxu0 0.0
    %1039 = vmatprep.subr.mxu0 0.0
    %1040 = vmatpush2.msra.mxu0 0.0
    %1041 = vmatprep.subr.mxu0 0.0
    %1042 = vmatpush2.msra.mxu0 0.0
    %1043 = vmatprep.subr.mxu0 0.0
    %1044 = vmatpush2.msra.mxu0 0.0
    %1045 = vmatprep.subr.mxu0 0.0
    %1046 = vmatpush2.msra.mxu0 0.0
    %1047 = vmatprep.subr.mxu0 0.0
    %1048 = vmatpush2.msra.mxu0 0.0
    %1049 = vmatprep.subr.mxu0 0.0
    %1050 = vmatpush2.msra.mxu0 0.0
    %1051 = vmatprep.subr.mxu0 0.0
    %1052 = vmatpush2.msra.mxu0 0.0
    %1053 = vmatprep.subr.mxu0 0.0
    %1054 = vmatpush2.msra.mxu0 0.0
    %1055 = vmatprep.subr.mxu0 0.0
    %1056 = vmatpush2.msra.mxu0 0.0
    %1057 = vmatprep.subr.mxu0 0.0
    %1058 = vmatpush2.msra.mxu0 0.0
    %1059 = vmatprep.subr.mxu0 0.0
    %1060 = vmatpush2.msra.mxu0 0.0
    %1061 = vmatprep.mubr.f32.mxu0 0.0
    %1062 = vmatmul.mubr.f32.gmra.mxu0 %v995
    %v1063 = vpop.f32.mrf.mxu0
    %v1064 = vadd.f32 0.0, %v1063
    %v1065 = vpop.f32.mrf.mxu0
    %1066 = vdwg.mxu0
    %1067 = vrot.lane.b32.xlu0 %v154, 56
    %v1068 = vpop.permute.xlu0 %1067
    %v1071 = vsel %vm312, %v984, 0
    %1073 = vmatprep.subr.mxu0 0.0
    %1074 = vmatpush1.msra.mxu0 0.0
    %1075 = vmatprep.subr.mxu0 0.0
    %1076 = vmatpush1.msra.mxu0 0.0
    %1077 = vmatprep.subr.mxu0 0.0
    %1078 = vmatpush1.msra.mxu0 0.0
    %1079 = vmatprep.subr.mxu0 0.0
    %1080 = vmatpush1.msra.mxu0 0.0
    %1081 = vmatprep.subr.mxu0 0.0
    %1082 = vmatpush1.msra.mxu0 0.0
    %1083 = vmatprep.subr.mxu0 0.0
    %1084 = vmatpush1.msra.mxu0 0.0
    %1085 = vmatprep.subr.mxu0 0.0
    %1086 = vmatpush1.msra.mxu0 0.0
    %1087 = vmatprep.subr.mxu0 0.0
    %1088 = vmatpush1.msra.mxu0 0.0
    %1089 = vmatprep.subr.mxu0 0.0
    %1090 = vmatpush1.msra.mxu0 0.0
    %1091 = vmatprep.subr.mxu0 0.0
    %1092 = vmatpush1.msra.mxu0 0.0
    %1093 = vmatprep.subr.mxu0 0.0
    %1094 = vmatpush1.msra.mxu0 0.0
    %1095 = vmatprep.subr.mxu0 0.0
    %1096 = vmatpush1.msra.mxu0 0.0
    %1097 = vmatprep.subr.mxu0 0.0
    %1098 = vmatpush1.msra.mxu0 0.0
    %1099 = vmatprep.subr.mxu0 0.0
    %1100 = vmatpush1.msra.mxu0 0.0
    %1101 = vmatprep.subr.mxu0 0.0
    %1102 = vmatpush1.msra.mxu0 0.0
    %1103 = vmatprep.subr.mxu0 0.0
    %1104 = vmatpush1.msra.mxu0 %v1068
    %1105 = vmatprep.subr.mxu0 0.0
    %1106 = vmatpush2.msra.mxu0 0.0
    %1107 = vmatprep.subr.mxu0 0.0
    %1108 = vmatpush2.msra.mxu0 0.0
    %1109 = vmatprep.subr.mxu0 0.0
    %1110 = vmatpush2.msra.mxu0 0.0
    %1111 = vmatprep.subr.mxu0 0.0
    %1112 = vmatpush2.msra.mxu0 0.0
    %1113 = vmatprep.subr.mxu0 0.0
    %1114 = vmatpush2.msra.mxu0 0.0
    %1115 = vmatprep.subr.mxu0 0.0
    %1116 = vmatpush2.msra.mxu0 0.0
    %1117 = vmatprep.subr.mxu0 0.0
    %1118 = vmatpush2.msra.mxu0 0.0
    %1119 = vmatprep.subr.mxu0 0.0
    %1120 = vmatpush2.msra.mxu0 0.0
    %1121 = vmatprep.subr.mxu0 0.0
    %1122 = vmatpush2.msra.mxu0 0.0
    %1123 = vmatprep.subr.mxu0 0.0
    %1124 = vmatpush2.msra.mxu0 0.0
    %1125 = vmatprep.subr.mxu0 0.0
    %1126 = vmatpush2.msra.mxu0 0.0
    %1127 = vmatprep.subr.mxu0 0.0
    %1128 = vmatpush2.msra.mxu0 0.0
    %1129 = vmatprep.subr.mxu0 0.0
    %1130 = vmatpush2.msra.mxu0 0.0
    %1131 = vmatprep.subr.mxu0 0.0
    %1132 = vmatpush2.msra.mxu0 0.0
    %1133 = vmatprep.subr.mxu0 0.0
    %1134 = vmatpush2.msra.mxu0 0.0
    %1135 = vmatprep.subr.mxu0 0.0
    %1136 = vmatpush2.msra.mxu0 0.0
    %1137 = vmatprep.mubr.f32.mxu0 0.0
    %1138 = vmatmul.mubr.f32.gmra.mxu0 %v1071
    %v1139 = vpop.f32.mrf.mxu0
    %v1140 = vadd.f32 0.0, %v1139
    %v1141 = vpop.f32.mrf.mxu0
    %1142 = vdwg.mxu0
    %v1143 = vrcp.pop %v987
    %v1144 = vrcp.pop %v990
    %v1145 = vmul.f32 %v1064, %v1143
    %v1146 = vmul.f32 %v1140, %v1144
    %1147 = vrot.lane.b32.xlu0 %v149, 116
    %v1148 = vpop.permute.xlu0 %1147
    %1149 = vrot.lane.b32.xlu0 %v149, 84
    %v1150 = vpop.permute.xlu0 %1149
    %v1151 = vsel %vm160, %v1148, 0
    %v1153 = vsel %vm160, %v1150, 0
    %1155 = vmatprep.subr.mxu0 0.0
    %1156 = vmatpush1.xpose.msra.mxu0 0.0
    %1157 = vmatprep.subr.mxu0 0.0
    %1158 = vmatpush1.xpose.msra.mxu0 0.0
    %1159 = vmatprep.subr.mxu0 0.0
    %1160 = vmatpush1.xpose.msra.mxu0 0.0
    %1161 = vmatprep.subr.mxu0 0.0
    %1162 = vmatpush1.xpose.msra.mxu0 0.0
    %1163 = vmatprep.subr.mxu0 0.0
    %1164 = vmatpush1.xpose.msra.mxu0 0.0
    %1165 = vmatprep.subr.mxu0 0.0
    %1166 = vmatpush1.xpose.msra.mxu0 0.0
    %1167 = vmatprep.subr.mxu0 0.0
    %1168 = vmatpush1.xpose.msra.mxu0 0.0
    %1169 = vmatprep.subr.mxu0 0.0
    %1170 = vmatpush1.xpose.msra.mxu0 0.0
    %1171 = vmatprep.subr.mxu0 0.0
    %1172 = vmatpush1.xpose.msra.mxu0 0.0
    %1173 = vmatprep.subr.mxu0 0.0
    %1174 = vmatpush1.xpose.msra.mxu0 0.0
    %1175 = vmatprep.subr.mxu0 0.0
    %1176 = vmatpush1.xpose.msra.mxu0 0.0
    %1177 = vmatprep.subr.mxu0 0.0
    %1178 = vmatpush1.xpose.msra.mxu0 0.0
    %1179 = vmatprep.subr.mxu0 0.0
    %1180 = vmatpush1.xpose.msra.mxu0 0.0
    %1181 = vmatprep.subr.mxu0 0.0
    %1182 = vmatpush1.xpose.msra.mxu0 0.0
    %1183 = vmatprep.subr.mxu0 0.0
    %1184 = vmatpush1.xpose.msra.mxu0 0.0
    %1185 = vmatprep.subr.mxu0 0.0
    %1186 = vmatpush1.xpose.msra.mxu0 %v1153
    %1187 = vmatprep.subr.mxu0 0.0
    %1188 = vmatpush2.xpose.msra.mxu0 0.0
    %1189 = vmatprep.subr.mxu0 0.0
    %1190 = vmatpush2.xpose.msra.mxu0 0.0
    %1191 = vmatprep.subr.mxu0 0.0
    %1192 = vmatpush2.xpose.msra.mxu0 0.0
    %1193 = vmatprep.subr.mxu0 0.0
    %1194 = vmatpush2.xpose.msra.mxu0 0.0
    %1195 = vmatprep.subr.mxu0 0.0
    %1196 = vmatpush2.xpose.msra.mxu0 0.0
    %1197 = vmatprep.subr.mxu0 0.0
    %1198 = vmatpush2.xpose.msra.mxu0 0.0
    %1199 = vmatprep.subr.mxu0 0.0
    %1200 = vmatpush2.xpose.msra.mxu0 0.0
    %1201 = vmatprep.subr.mxu0 0.0
    %1202 = vmatpush2.xpose.msra.mxu0 0.0
    %1203 = vmatprep.subr.mxu0 0.0
    %1204 = vmatpush2.xpose.msra.mxu0 0.0
    %1205 = vmatprep.subr.mxu0 0.0
    %1206 = vmatpush2.xpose.msra.mxu0 0.0
    %1207 = vmatprep.subr.mxu0 0.0
    %1208 = vmatpush2.xpose.msra.mxu0 0.0
    %1209 = vmatprep.subr.mxu0 0.0
    %1210 = vmatpush2.xpose.msra.mxu0 0.0
    %1211 = vmatprep.subr.mxu0 0.0
    %1212 = vmatpush2.xpose.msra.mxu0 0.0
    %1213 = vmatprep.subr.mxu0 0.0
    %1214 = vmatpush2.xpose.msra.mxu0 0.0
    %1215 = vmatprep.subr.mxu0 0.0
    %1216 = vmatpush2.xpose.msra.mxu0 0.0
    %1217 = vmatprep.subr.mxu0 0.0
    %1218 = vmatpush2.xpose.msra.mxu0 0.0
    %1219 = vmatprep.mubr.f32.mxu0 0.0
    %1220 = vmatmul.mubr.f32.gmra.mxu0 %v1151
    %v1221 = vpop.f32.mrf.mxu0
    %v1222 = vadd.f32 0.0, %v1221
    %v1223 = vpop.f32.mrf.mxu0
    %1224 = vdwg.mxu0
    %1225 = vrot.lane.b32.xlu0 %v154, 116
    %v1226 = vpop.permute.xlu0 %1225
    %1227 = vrot.lane.b32.xlu0 %v154, 84
    %v1228 = vpop.permute.xlu0 %1227
    %v1229 = vsel %vm160, %v1226, 0
    %v1231 = vsel %vm160, %v1228, 0
    %1233 = vmatprep.subr.mxu0 0.0
    %1234 = vmatpush1.xpose.msra.mxu0 0.0
    %1235 = vmatprep.subr.mxu0 0.0
    %1236 = vmatpush1.xpose.msra.mxu0 0.0
    %1237 = vmatprep.subr.mxu0 0.0
    %1238 = vmatpush1.xpose.msra.mxu0 0.0
    %1239 = vmatprep.subr.mxu0 0.0
    %1240 = vmatpush1.xpose.msra.mxu0 0.0
    %1241 = vmatprep.subr.mxu0 0.0
    %1242 = vmatpush1.xpose.msra.mxu0 0.0
    %1243 = vmatprep.subr.mxu0 0.0
    %1244 = vmatpush1.xpose.msra.mxu0 0.0
    %1245 = vmatprep.subr.mxu0 0.0
    %1246 = vmatpush1.xpose.msra.mxu0 0.0
    %1247 = vmatprep.subr.mxu0 0.0
    %1248 = vmatpush1.xpose.msra.mxu0 0.0
    %1249 = vmatprep.subr.mxu0 0.0
    %1250 = vmatpush1.xpose.msra.mxu0 0.0
    %1251 = vmatprep.subr.mxu0 0.0
    %1252 = vmatpush1.xpose.msra.mxu0 0.0
    %1253 = vmatprep.subr.mxu0 0.0
    %1254 = vmatpush1.xpose.msra.mxu0 0.0
    %1255 = vmatprep.subr.mxu0 0.0
    %1256 = vmatpush1.xpose.msra.mxu0 0.0
    %1257 = vmatprep.subr.mxu0 0.0
    %1258 = vmatpush1.xpose.msra.mxu0 0.0
    %1259 = vmatprep.subr.mxu0 0.0
    %1260 = vmatpush1.xpose.msra.mxu0 0.0
    %1261 = vmatprep.subr.mxu0 0.0
    %1262 = vmatpush1.xpose.msra.mxu0 0.0
    %1263 = vmatprep.subr.mxu0 0.0
    %1264 = vmatpush1.xpose.msra.mxu0 %v1231
    %1265 = vmatprep.subr.mxu0 0.0
    %1266 = vmatpush2.xpose.msra.mxu0 0.0
    %1267 = vmatprep.subr.mxu0 0.0
    %1268 = vmatpush2.xpose.msra.mxu0 0.0
    %1269 = vmatprep.subr.mxu0 0.0
    %1270 = vmatpush2.xpose.msra.mxu0 0.0
    %1271 = vmatprep.subr.mxu0 0.0
    %1272 = vmatpush2.xpose.msra.mxu0 0.0
    %1273 = vmatprep.subr.mxu0 0.0
    %1274 = vmatpush2.xpose.msra.mxu0 0.0
    %1275 = vmatprep.subr.mxu0 0.0
    %1276 = vmatpush2.xpose.msra.mxu0 0.0
    %1277 = vmatprep.subr.mxu0 0.0
    %1278 = vmatpush2.xpose.msra.mxu0 0.0
    %1279 = vmatprep.subr.mxu0 0.0
    %1280 = vmatpush2.xpose.msra.mxu0 0.0
    %1281 = vmatprep.subr.mxu0 0.0
    %1282 = vmatpush2.xpose.msra.mxu0 0.0
    %1283 = vmatprep.subr.mxu0 0.0
    %1284 = vmatpush2.xpose.msra.mxu0 0.0
    %1285 = vmatprep.subr.mxu0 0.0
    %1286 = vmatpush2.xpose.msra.mxu0 0.0
    %1287 = vmatprep.subr.mxu0 0.0
    %1288 = vmatpush2.xpose.msra.mxu0 0.0
    %1289 = vmatprep.subr.mxu0 0.0
    %1290 = vmatpush2.xpose.msra.mxu0 0.0
    %1291 = vmatprep.subr.mxu0 0.0
    %1292 = vmatpush2.xpose.msra.mxu0 0.0
    %1293 = vmatprep.subr.mxu0 0.0
    %1294 = vmatpush2.xpose.msra.mxu0 0.0
    %1295 = vmatprep.subr.mxu0 0.0
    %1296 = vmatpush2.xpose.msra.mxu0 0.0
    %1297 = vmatprep.mubr.f32.mxu0 0.0
    %1298 = vmatmul.mubr.f32.gmra.mxu0 %v1229
    %v1299 = vpop.f32.mrf.mxu0
    %v1300 = vadd.f32 0.0, %v1299
    %v1301 = vpop.f32.mrf.mxu0
    %1302 = vdwg.mxu0
    %v1303 = vsel %vm312, %v1222, -inf
    %1304 = vmax.xlane.f32.xlu0 %v1303
    %v1305 = vpop.xlane.xlu0 %1304
    %v1306 = vsel %vm312, %v1300, -inf
    %1307 = vmax.xlane.f32.xlu0 %v1306
    %v1308 = vpop.xlane.xlu0 %1307
    %v1309 = vsub.f32 %v1222, %v1305
    %v1310 = vsub.f32 %v1300, %v1308
    %v1311 = vmul.f32 %v1309, 1.442695
    %v1312 = vpow.pop %v1311
    %v1313 = vmul.f32 %v1310, 1.442695
    %v1314 = vpow.pop %v1313
    %v1315 = vsel %vm312, %v1312, 0.0
    %1316 = vadd.xlane.f32.xlu0 %v1315
    %v1317 = vpop.xlane.xlu0 %1316
    %v1318 = vsel %vm312, %v1314, 0.0
    %1319 = vadd.xlane.f32.xlu0 %v1318
    %v1320 = vpop.xlane.xlu0 %1319
    %1321 = vrot.lane.b32.xlu0 %v149, 52
    %v1322 = vpop.permute.xlu0 %1321
    %v1325 = vsel %vm312, %v1312, 0
    %1327 = vmatprep.subr.mxu0 0.0
    %1328 = vmatpush1.msra.mxu0 0.0
    %1329 = vmatprep.subr.mxu0 0.0
    %1330 = vmatpush1.msra.mxu0 0.0
    %1331 = vmatprep.subr.mxu0 0.0
    %1332 = vmatpush1.msra.mxu0 0.0
    %1333 = vmatprep.subr.mxu0 0.0
    %1334 = vmatpush1.msra.mxu0 0.0
    %1335 = vmatprep.subr.mxu0 0.0
    %1336 = vmatpush1.msra.mxu0 0.0
    %1337 = vmatprep.subr.mxu0 0.0
    %1338 = vmatpush1.msra.mxu0 0.0
    %1339 = vmatprep.subr.mxu0 0.0
    %1340 = vmatpush1.msra.mxu0 0.0
    %1341 = vmatprep.subr.mxu0 0.0
    %1342 = vmatpush1.msra.mxu0 0.0
    %1343 = vmatprep.subr.mxu0 0.0
    %1344 = vmatpush1.msra.mxu0 0.0
    %1345 = vmatprep.subr.mxu0 0.0
    %1346 = vmatpush1.msra.mxu0 0.0
    %1347 = vmatprep.subr.mxu0 0.0
    %1348 = vmatpush1.msra.mxu0 0.0
    %1349 = vmatprep.subr.mxu0 0.0
    %1350 = vmatpush1.msra.mxu0 0.0
    %1351 = vmatprep.subr.mxu0 0.0
    %1352 = vmatpush1.msra.mxu0 0.0
    %1353 = vmatprep.subr.mxu0 0.0
    %1354 = vmatpush1.msra.mxu0 0.0
    %1355 = vmatprep.subr.mxu0 0.0
    %1356 = vmatpush1.msra.mxu0 0.0
    %1357 = vmatprep.subr.mxu0 0.0
    %1358 = vmatpush1.msra.mxu0 %v1322
    %1359 = vmatprep.subr.mxu0 0.0
    %1360 = vmatpush2.msra.mxu0 0.0
    %1361 = vmatprep.subr.mxu0 0.0
    %1362 = vmatpush2.msra.mxu0 0.0
    %1363 = vmatprep.subr.mxu0 0.0
    %1364 = vmatpush2.msra.mxu0 0.0
    %1365 = vmatprep.subr.mxu0 0.0
    %1366 = vmatpush2.msra.mxu0 0.0
    %1367 = vmatprep.subr.mxu0 0.0
    %1368 = vmatpush2.msra.mxu0 0.0
    %1369 = vmatprep.subr.mxu0 0.0
    %1370 = vmatpush2.msra.mxu0 0.0
    %1371 = vmatprep.subr.mxu0 0.0
    %1372 = vmatpush2.msra.mxu0 0.0
    %1373 = vmatprep.subr.mxu0 0.0
    %1374 = vmatpush2.msra.mxu0 0.0
    %1375 = vmatprep.subr.mxu0 0.0
    %1376 = vmatpush2.msra.mxu0 0.0
    %1377 = vmatprep.subr.mxu0 0.0
    %1378 = vmatpush2.msra.mxu0 0.0
    %1379 = vmatprep.subr.mxu0 0.0
    %1380 = vmatpush2.msra.mxu0 0.0
    %1381 = vmatprep.subr.mxu0 0.0
    %1382 = vmatpush2.msra.mxu0 0.0
    %1383 = vmatprep.subr.mxu0 0.0
    %1384 = vmatpush2.msra.mxu0 0.0
    %1385 = vmatprep.subr.mxu0 0.0
    %1386 = vmatpush2.msra.mxu0 0.0
    %1387 = vmatprep.subr.mxu0 0.0
    %1388 = vmatpush2.msra.mxu0 0.0
    %1389 = vmatprep.subr.mxu0 0.0
    %1390 = vmatpush2.msra.mxu0 0.0
    %1391 = vmatprep.mubr.f32.mxu0 0.0
    %1392 = vmatmul.mubr.f32.gmra.mxu0 %v1325
    %v1393 = vpop.f32.mrf.mxu0
    %v1394 = vadd.f32 0.0, %v1393
    %v1395 = vpop.f32.mrf.mxu0
    %1396 = vdwg.mxu0
    %1397 = vrot.lane.b32.xlu0 %v154, 52
    %v1398 = vpop.permute.xlu0 %1397
    %v1401 = vsel %vm312, %v1314, 0
    %1403 = vmatprep.subr.mxu0 0.0
    %1404 = vmatpush1.msra.mxu0 0.0
    %1405 = vmatprep.subr.mxu0 0.0
    %1406 = vmatpush1.msra.mxu0 0.0
    %1407 = vmatprep.subr.mxu0 0.0
    %1408 = vmatpush1.msra.mxu0 0.0
    %1409 = vmatprep.subr.mxu0 0.0
    %1410 = vmatpush1.msra.mxu0 0.0
    %1411 = vmatprep.subr.mxu0 0.0
    %1412 = vmatpush1.msra.mxu0 0.0
    %1413 = vmatprep.subr.mxu0 0.0
    %1414 = vmatpush1.msra.mxu0 0.0
    %1415 = vmatprep.subr.mxu0 0.0
    %1416 = vmatpush1.msra.mxu0 0.0
    %1417 = vmatprep.subr.mxu0 0.0
    %1418 = vmatpush1.msra.mxu0 0.0
    %1419 = vmatprep.subr.mxu0 0.0
    %1420 = vmatpush1.msra.mxu0 0.0
    %1421 = vmatprep.subr.mxu0 0.0
    %1422 = vmatpush1.msra.mxu0 0.0
    %1423 = vmatprep.subr.mxu0 0.0
    %1424 = vmatpush1.msra.mxu0 0.0
    %1425 = vmatprep.subr.mxu0 0.0
    %1426 = vmatpush1.msra.mxu0 0.0
    %1427 = vmatprep.subr.mxu0 0.0
    %1428 = vmatpush1.msra.mxu0 0.0
    %1429 = vmatprep.subr.mxu0 0.0
    %1430 = vmatpush1.msra.mxu0 0.0
    %1431 = vmatprep.subr.mxu0 0.0
    %1432 = vmatpush1.msra.mxu0 0.0
    %1433 = vmatprep.subr.mxu0 0.0
    %1434 = vmatpush1.msra.mxu0 %v1398
    %1435 = vmatprep.subr.mxu0 0.0
    %1436 = vmatpush2.msra.mxu0 0.0
    %1437 = vmatprep.subr.mxu0 0.0
    %1438 = vmatpush2.msra.mxu0 0.0
    %1439 = vmatprep.subr.mxu0 0.0
    %1440 = vmatpush2.msra.mxu0 0.0
    %1441 = vmatprep.subr.mxu0 0.0
    %1442 = vmatpush2.msra.mxu0 0.0
    %1443 = vmatprep.subr.mxu0 0.0
    %1444 = vmatpush2.msra.mxu0 0.0
    %1445 = vmatprep.subr.mxu0 0.0
    %1446 = vmatpush2.msra.mxu0 0.0
    %1447 = vmatprep.subr.mxu0 0.0
    %1448 = vmatpush2.msra.mxu0 0.0
    %1449 = vmatprep.subr.mxu0 0.0
    %1450 = vmatpush2.msra.mxu0 0.0
    %1451 = vmatprep.subr.mxu0 0.0
    %1452 = vmatpush2.msra.mxu0 0.0
    %1453 = vmatprep.subr.mxu0 0.0
    %1454 = vmatpush2.msra.mxu0 0.0
    %1455 = vmatprep.subr.mxu0 0.0
    %1456 = vmatpush2.msra.mxu0 0.0
    %1457 = vmatprep.subr.mxu0 0.0
    %1458 = vmatpush2.msra.mxu0 0.0
    %1459 = vmatprep.subr.mxu0 0.0
    %1460 = vmatpush2.msra.mxu0 0.0
    %1461 = vmatprep.subr.mxu0 0.0
    %1462 = vmatpush2.msra.mxu0 0.0
    %1463 = vmatprep.subr.mxu0 0.0
    %1464 = vmatpush2.msra.mxu0 0.0
    %1465 = vmatprep.subr.mxu0 0.0
    %1466 = vmatpush2.msra.mxu0 0.0
    %1467 = vmatprep.mubr.f32.mxu0 0.0
    %1468 = vmatmul.mubr.f32.gmra.mxu0 %v1401
    %v1469 = vpop.f32.mrf.mxu0
    %v1470 = vadd.f32 0.0, %v1469
    %v1471 = vpop.f32.mrf.mxu0
    %1472 = vdwg.mxu0
    %v1473 = vrcp.pop %v1317
    %v1474 = vrcp.pop %v1320
    %v1475 = vmul.f32 %v1394, %v1473
    %v1476 = vmul.f32 %v1470, %v1474
    %1477 = vrot.lane.b32.xlu0 %v149, 112
    %v1478 = vpop.permute.xlu0 %1477
    %1479 = vrot.lane.b32.xlu0 %v149, 80
    %v1480 = vpop.permute.xlu0 %1479
    %v1481 = vsel %vm160, %v1478, 0
    %v1483 = vsel %vm160, %v1480, 0
    %1485 = vmatprep.subr.mxu0 0.0
    %1486 = vmatpush1.xpose.msra.mxu0 0.0
    %1487 = vmatprep.subr.mxu0 0.0
    %1488 = vmatpush1.xpose.msra.mxu0 0.0
    %1489 = vmatprep.subr.mxu0 0.0
    %1490 = vmatpush1.xpose.msra.mxu0 0.0
    %1491 = vmatprep.subr.mxu0 0.0
    %1492 = vmatpush1.xpose.msra.mxu0 0.0
    %1493 = vmatprep.subr.mxu0 0.0
    %1494 = vmatpush1.xpose.msra.mxu0 0.0
    %1495 = vmatprep.subr.mxu0 0.0
    %1496 = vmatpush1.xpose.msra.mxu0 0.0
    %1497 = vmatprep.subr.mxu0 0.0
    %1498 = vmatpush1.xpose.msra.mxu0 0.0
    %1499 = vmatprep.subr.mxu0 0.0
    %1500 = vmatpush1.xpose.msra.mxu0 0.0
    %1501 = vmatprep.subr.mxu0 0.0
    %1502 = vmatpush1.xpose.msra.mxu0 0.0
    %1503 = vmatprep.subr.mxu0 0.0
    %1504 = vmatpush1.xpose.msra.mxu0 0.0
    %1505 = vmatprep.subr.mxu0 0.0
    %1506 = vmatpush1.xpose.msra.mxu0 0.0
    %1507 = vmatprep.subr.mxu0 0.0
    %1508 = vmatpush1.xpose.msra.mxu0 0.0
    %1509 = vmatprep.subr.mxu0 0.0
    %1510 = vmatpush1.xpose.msra.mxu0 0.0
    %1511 = vmatprep.subr.mxu0 0.0
    %1512 = vmatpush1.xpose.msra.mxu0 0.0
    %1513 = vmatprep.subr.mxu0 0.0
    %1514 = vmatpush1.xpose.msra.mxu0 0.0
    %1515 = vmatprep.subr.mxu0 0.0
    %1516 = vmatpush1.xpose.msra.mxu0 %v1483
    %1517 = vmatprep.subr.mxu0 0.0
    %1518 = vmatpush2.xpose.msra.mxu0 0.0
    %1519 = vmatprep.subr.mxu0 0.0
    %1520 = vmatpush2.xpose.msra.mxu0 0.0
    %1521 = vmatprep.subr.mxu0 0.0
    %1522 = vmatpush2.xpose.msra.mxu0 0.0
    %1523 = vmatprep.subr.mxu0 0.0
    %1524 = vmatpush2.xpose.msra.mxu0 0.0
    %1525 = vmatprep.subr.mxu0 0.0
    %1526 = vmatpush2.xpose.msra.mxu0 0.0
    %1527 = vmatprep.subr.mxu0 0.0
    %1528 = vmatpush2.xpose.msra.mxu0 0.0
    %1529 = vmatprep.subr.mxu0 0.0
    %1530 = vmatpush2.xpose.msra.mxu0 0.0
    %1531 = vmatprep.subr.mxu0 0.0
    %1532 = vmatpush2.xpose.msra.mxu0 0.0
    %1533 = vmatprep.subr.mxu0 0.0
    %1534 = vmatpush2.xpose.msra.mxu0 0.0
    %1535 = vmatprep.subr.mxu0 0.0
    %1536 = vmatpush2.xpose.msra.mxu0 0.0
    %1537 = vmatprep.subr.mxu0 0.0
    %1538 = vmatpush2.xpose.msra.mxu0 0.0
    %1539 = vmatprep.subr.mxu0 0.0
    %1540 = vmatpush2.xpose.msra.mxu0 0.0
    %1541 = vmatprep.subr.mxu0 0.0
    %1542 = vmatpush2.xpose.msra.mxu0 0.0
    %1543 = vmatprep.subr.mxu0 0.0
    %1544 = vmatpush2.xpose.msra.mxu0 0.0
    %1545 = vmatprep.subr.mxu0 0.0
    %1546 = vmatpush2.xpose.msra.mxu0 0.0
    %1547 = vmatprep.subr.mxu0 0.0
    %1548 = vmatpush2.xpose.msra.mxu0 0.0
    %1549 = vmatprep.mubr.f32.mxu0 0.0
    %1550 = vmatmul.mubr.f32.gmra.mxu0 %v1481
    %v1551 = vpop.f32.mrf.mxu0
    %v1552 = vadd.f32 0.0, %v1551
    %v1553 = vpop.f32.mrf.mxu0
    %1554 = vdwg.mxu0
    %1555 = vrot.lane.b32.xlu0 %v154, 112
    %v1556 = vpop.permute.xlu0 %1555
    %1557 = vrot.lane.b32.xlu0 %v154, 80
    %v1558 = vpop.permute.xlu0 %1557
    %v1559 = vsel %vm160, %v1556, 0
    %v1561 = vsel %vm160, %v1558, 0
    %1563 = vmatprep.subr.mxu0 0.0
    %1564 = vmatpush1.xpose.msra.mxu0 0.0
    %1565 = vmatprep.subr.mxu0 0.0
    %1566 = vmatpush1.xpose.msra.mxu0 0.0
    %1567 = vmatprep.subr.mxu0 0.0
    %1568 = vmatpush1.xpose.msra.mxu0 0.0
    %1569 = vmatprep.subr.mxu0 0.0
    %1570 = vmatpush1.xpose.msra.mxu0 0.0
    %1571 = vmatprep.subr.mxu0 0.0
    %1572 = vmatpush1.xpose.msra.mxu0 0.0
    %1573 = vmatprep.subr.mxu0 0.0
    %1574 = vmatpush1.xpose.msra.mxu0 0.0
    %1575 = vmatprep.subr.mxu0 0.0
    %1576 = vmatpush1.xpose.msra.mxu0 0.0
    %1577 = vmatprep.subr.mxu0 0.0
    %1578 = vmatpush1.xpose.msra.mxu0 0.0
    %1579 = vmatprep.subr.mxu0 0.0
    %1580 = vmatpush1.xpose.msra.mxu0 0.0
    %1581 = vmatprep.subr.mxu0 0.0
    %1582 = vmatpush1.xpose.msra.mxu0 0.0
    %1583 = vmatprep.subr.mxu0 0.0
    %1584 = vmatpush1.xpose.msra.mxu0 0.0
    %1585 = vmatprep.subr.mxu0 0.0
    %1586 = vmatpush1.xpose.msra.mxu0 0.0
    %1587 = vmatprep.subr.mxu0 0.0
    %1588 = vmatpush1.xpose.msra.mxu0 0.0
    %1589 = vmatprep.subr.mxu0 0.0
    %1590 = vmatpush1.xpose.msra.mxu0 0.0
    %1591 = vmatprep.subr.mxu0 0.0
    %1592 = vmatpush1.xpose.msra.mxu0 0.0
    %1593 = vmatprep.subr.mxu0 0.0
    %1594 = vmatpush1.xpose.msra.mxu0 %v1561
    %1595 = vmatprep.subr.mxu0 0.0
    %1596 = vmatpush2.xpose.msra.mxu0 0.0
    %1597 = vmatprep.subr.mxu0 0.0
    %1598 = vmatpush2.xpose.msra.mxu0 0.0
    %1599 = vmatprep.subr.mxu0 0.0
    %1600 = vmatpush2.xpose.msra.mxu0 0.0
    %1601 = vmatprep.subr.mxu0 0.0
    %1602 = vmatpush2.xpose.msra.mxu0 0.0
    %1603 = vmatprep.subr.mxu0 0.0
    %1604 = vmatpush2.xpose.msra.mxu0 0.0
    %1605 = vmatprep.subr.mxu0 0.0
    %1606 = vmatpush2.xpose.msra.mxu0 0.0
    %1607 = vmatprep.subr.mxu0 0.0
    %1608 = vmatpush2.xpose.msra.mxu0 0.0
    %1609 = vmatprep.subr.mxu0 0.0
    %1610 = vmatpush2.xpose.msra.mxu0 0.0
    %1611 = vmatprep.subr.mxu0 0.0
    %1612 = vmatpush2.xpose.msra.mxu0 0.0
    %1613 = vmatprep.subr.mxu0 0.0
    %1614 = vmatpush2.xpose.msra.mxu0 0.0
    %1615 = vmatprep.subr.mxu0 0.0
    %1616 = vmatpush2.xpose.msra.mxu0 0.0
    %1617 = vmatprep.subr.mxu0 0.0
    %1618 = vmatpush2.xpose.msra.mxu0 0.0
    %1619 = vmatprep.subr.mxu0 0.0
    %1620 = vmatpush2.xpose.msra.mxu0 0.0
    %1621 = vmatprep.subr.mxu0 0.0
    %1622 = vmatpush2.xpose.msra.mxu0 0.0
    %1623 = vmatprep.subr.mxu0 0.0
    %1624 = vmatpush2.xpose.msra.mxu0 0.0
    %1625 = vmatprep.subr.mxu0 0.0
    %1626 = vmatpush2.xpose.msra.mxu0 0.0
    %1627 = vmatprep.mubr.f32.mxu0 0.0
    %1628 = vmatmul.mubr.f32.gmra.mxu0 %v1559
    %v1629 = vpop.f32.mrf.mxu0
    %v1630 = vadd.f32 0.0, %v1629
    %v1631 = vpop.f32.mrf.mxu0
    %1632 = vdwg.mxu0
    %v1633 = vsel %vm312, %v1552, -inf
    %1634 = vmax.xlane.f32.xlu0 %v1633
    %v1635 = vpop.xlane.xlu0 %1634
    %v1636 = vsel %vm312, %v1630, -inf
    %1637 = vmax.xlane.f32.xlu0 %v1636
    %v1638 = vpop.xlane.xlu0 %1637
    %v1639 = vsub.f32 %v1552, %v1635
    %v1640 = vsub.f32 %v1630, %v1638
    %v1641 = vmul.f32 %v1639, 1.442695
    %v1642 = vpow.pop %v1641
    %v1643 = vmul.f32 %v1640, 1.442695
    %v1644 = vpow.pop %v1643
    %v1645 = vsel %vm312, %v1642, 0.0
    %1646 = vadd.xlane.f32.xlu0 %v1645
    %v1647 = vpop.xlane.xlu0 %1646
    %v1648 = vsel %vm312, %v1644, 0.0
    %1649 = vadd.xlane.f32.xlu0 %v1648
    %v1650 = vpop.xlane.xlu0 %1649
    %1651 = vrot.lane.b32.xlu0 %v149, 48
    %v1652 = vpop.permute.xlu0 %1651
    %v1655 = vsel %vm312, %v1642, 0
    %1657 = vmatprep.subr.mxu0 0.0
    %1658 = vmatpush1.msra.mxu0 0.0
    %1659 = vmatprep.subr.mxu0 0.0
    %1660 = vmatpush1.msra.mxu0 0.0
    %1661 = vmatprep.subr.mxu0 0.0
    %1662 = vmatpush1.msra.mxu0 0.0
    %1663 = vmatprep.subr.mxu0 0.0
    %1664 = vmatpush1.msra.mxu0 0.0
    %1665 = vmatprep.subr.mxu0 0.0
    %1666 = vmatpush1.msra.mxu0 0.0
    %1667 = vmatprep.subr.mxu0 0.0
    %1668 = vmatpush1.msra.mxu0 0.0
    %1669 = vmatprep.subr.mxu0 0.0
    %1670 = vmatpush1.msra.mxu0 0.0
    %1671 = vmatprep.subr.mxu0 0.0
    %1672 = vmatpush1.msra.mxu0 0.0
    %1673 = vmatprep.subr.mxu0 0.0
    %1674 = vmatpush1.msra.mxu0 0.0
    %1675 = vmatprep.subr.mxu0 0.0
    %1676 = vmatpush1.msra.mxu0 0.0
    %1677 = vmatprep.subr.mxu0 0.0
    %1678 = vmatpush1.msra.mxu0 0.0
    %1679 = vmatprep.subr.mxu0 0.0
    %1680 = vmatpush1.msra.mxu0 0.0
    %1681 = vmatprep.subr.mxu0 0.0
    %1682 = vmatpush1.msra.mxu0 0.0
    %1683 = vmatprep.subr.mxu0 0.0
    %1684 = vmatpush1.msra.mxu0 0.0
    %1685 = vmatprep.subr.mxu0 0.0
    %1686 = vmatpush1.msra.mxu0 0.0
    %1687 = vmatprep.subr.mxu0 0.0
    %1688 = vmatpush1.msra.mxu0 %v1652
    %1689 = vmatprep.subr.mxu0 0.0
    %1690 = vmatpush2.msra.mxu0 0.0
    %1691 = vmatprep.subr.mxu0 0.0
    %1692 = vmatpush2.msra.mxu0 0.0
    %1693 = vmatprep.subr.mxu0 0.0
    %1694 = vmatpush2.msra.mxu0 0.0
    %1695 = vmatprep.subr.mxu0 0.0
    %1696 = vmatpush2.msra.mxu0 0.0
    %1697 = vmatprep.subr.mxu0 0.0
    %1698 = vmatpush2.msra.mxu0 0.0
    %1699 = vmatprep.subr.mxu0 0.0
    %1700 = vmatpush2.msra.mxu0 0.0
    %1701 = vmatprep.subr.mxu0 0.0
    %1702 = vmatpush2.msra.mxu0 0.0
    %1703 = vmatprep.subr.mxu0 0.0
    %1704 = vmatpush2.msra.mxu0 0.0
    %1705 = vmatprep.subr.mxu0 0.0
    %1706 = vmatpush2.msra.mxu0 0.0
    %1707 = vmatprep.subr.mxu0 0.0
    %1708 = vmatpush2.msra.mxu0 0.0
    %1709 = vmatprep.subr.mxu0 0.0
    %1710 = vmatpush2.msra.mxu0 0.0
    %1711 = vmatprep.subr.mxu0 0.0
    %1712 = vmatpush2.msra.mxu0 0.0
    %1713 = vmatprep.subr.mxu0 0.0
    %1714 = vmatpush2.msra.mxu0 0.0
    %1715 = vmatprep.subr.mxu0 0.0
    %1716 = vmatpush2.msra.mxu0 0.0
    %1717 = vmatprep.subr.mxu0 0.0
    %1718 = vmatpush2.msra.mxu0 0.0
    %1719 = vmatprep.subr.mxu0 0.0
    %1720 = vmatpush2.msra.mxu0 0.0
    %1721 = vmatprep.mubr.f32.mxu0 0.0
    %1722 = vmatmul.mubr.f32.gmra.mxu0 %v1655
    %v1723 = vpop.f32.mrf.mxu0
    %v1724 = vadd.f32 0.0, %v1723
    %v1725 = vpop.f32.mrf.mxu0
    %1726 = vdwg.mxu0
    %1727 = vrot.lane.b32.xlu0 %v154, 48
    %v1728 = vpop.permute.xlu0 %1727
    %v1731 = vsel %vm312, %v1644, 0
    %1733 = vmatprep.subr.mxu0 0.0
    %1734 = vmatpush1.msra.mxu0 0.0
    %1735 = vmatprep.subr.mxu0 0.0
    %1736 = vmatpush1.msra.mxu0 0.0
    %1737 = vmatprep.subr.mxu0 0.0
    %1738 = vmatpush1.msra.mxu0 0.0
    %1739 = vmatprep.subr.mxu0 0.0
    %1740 = vmatpush1.msra.mxu0 0.0
    %1741 = vmatprep.subr.mxu0 0.0
    %1742 = vmatpush1.msra.mxu0 0.0
    %1743 = vmatprep.subr.mxu0 0.0
    %1744 = vmatpush1.msra.mxu0 0.0
    %1745 = vmatprep.subr.mxu0 0.0
    %1746 = vmatpush1.msra.mxu0 0.0
    %1747 = vmatprep.subr.mxu0 0.0
    %1748 = vmatpush1.msra.mxu0 0.0
    %1749 = vmatprep.subr.mxu0 0.0
    %1750 = vmatpush1.msra.mxu0 0.0
    %1751 = vmatprep.subr.mxu0 0.0
    %1752 = vmatpush1.msra.mxu0 0.0
    %1753 = vmatprep.subr.mxu0 0.0
    %1754 = vmatpush1.msra.mxu0 0.0
    %1755 = vmatprep.subr.mxu0 0.0
    %1756 = vmatpush1.msra.mxu0 0.0
    %1757 = vmatprep.subr.mxu0 0.0
    %1758 = vmatpush1.msra.mxu0 0.0
    %1759 = vmatprep.subr.mxu0 0.0
    %1760 = vmatpush1.msra.mxu0 0.0
    %1761 = vmatprep.subr.mxu0 0.0
    %1762 = vmatpush1.msra.mxu0 0.0
    %1763 = vmatprep.subr.mxu0 0.0
    %1764 = vmatpush1.msra.mxu0 %v1728
    %1765 = vmatprep.subr.mxu0 0.0
    %1766 = vmatpush2.msra.mxu0 0.0
    %1767 = vmatprep.subr.mxu0 0.0
    %1768 = vmatpush2.msra.mxu0 0.0
    %1769 = vmatprep.subr.mxu0 0.0
    %1770 = vmatpush2.msra.mxu0 0.0
    %1771 = vmatprep.subr.mxu0 0.0
    %1772 = vmatpush2.msra.mxu0 0.0
    %1773 = vmatprep.subr.mxu0 0.0
    %1774 = vmatpush2.msra.mxu0 0.0
    %1775 = vmatprep.subr.mxu0 0.0
    %1776 = vmatpush2.msra.mxu0 0.0
    %1777 = vmatprep.subr.mxu0 0.0
    %1778 = vmatpush2.msra.mxu0 0.0
    %1779 = vmatprep.subr.mxu0 0.0
    %1780 = vmatpush2.msra.mxu0 0.0
    %1781 = vmatprep.subr.mxu0 0.0
    %1782 = vmatpush2.msra.mxu0 0.0
    %1783 = vmatprep.subr.mxu0 0.0
    %1784 = vmatpush2.msra.mxu0 0.0
    %1785 = vmatprep.subr.mxu0 0.0
    %1786 = vmatpush2.msra.mxu0 0.0
    %1787 = vmatprep.subr.mxu0 0.0
    %1788 = vmatpush2.msra.mxu0 0.0
    %1789 = vmatprep.subr.mxu0 0.0
    %1790 = vmatpush2.msra.mxu0 0.0
    %1791 = vmatprep.subr.mxu0 0.0
    %1792 = vmatpush2.msra.mxu0 0.0
    %1793 = vmatprep.subr.mxu0 0.0
    %1794 = vmatpush2.msra.mxu0 0.0
    %1795 = vmatprep.subr.mxu0 0.0
    %1796 = vmatpush2.msra.mxu0 0.0
    %1797 = vmatprep.mubr.f32.mxu0 0.0
    %1798 = vmatmul.mubr.f32.gmra.mxu0 %v1731
    %v1799 = vpop.f32.mrf.mxu0
    %v1800 = vadd.f32 0.0, %v1799
    %v1801 = vpop.f32.mrf.mxu0
    %1802 = vdwg.mxu0
    %v1803 = vrcp.pop %v1647
    %v1804 = vrcp.pop %v1650
    %v1805 = vmul.f32 %v1724, %v1803
    %v1806 = vmul.f32 %v1800, %v1804
    %1807 = vrot.lane.b32.xlu0 %v149, 108
    %v1808 = vpop.permute.xlu0 %1807
    %1809 = vrot.lane.b32.xlu0 %v149, 76
    %v1810 = vpop.permute.xlu0 %1809
    %v1811 = vsel %vm160, %v1808, 0
    %v1813 = vsel %vm160, %v1810, 0
    %1815 = vmatprep.subr.mxu0 0.0
    %1816 = vmatpush1.xpose.msra.mxu0 0.0
    %1817 = vmatprep.subr.mxu0 0.0
    %1818 = vmatpush1.xpose.msra.mxu0 0.0
    %1819 = vmatprep.subr.mxu0 0.0
    %1820 = vmatpush1.xpose.msra.mxu0 0.0
    %1821 = vmatprep.subr.mxu0 0.0
    %1822 = vmatpush1.xpose.msra.mxu0 0.0
    %1823 = vmatprep.subr.mxu0 0.0
    %1824 = vmatpush1.xpose.msra.mxu0 0.0
    %1825 = vmatprep.subr.mxu0 0.0
    %1826 = vmatpush1.xpose.msra.mxu0 0.0
    %1827 = vmatprep.subr.mxu0 0.0
    %1828 = vmatpush1.xpose.msra.mxu0 0.0
    %1829 = vmatprep.subr.mxu0 0.0
    %1830 = vmatpush1.xpose.msra.mxu0 0.0
    %1831 = vmatprep.subr.mxu0 0.0
    %1832 = vmatpush1.xpose.msra.mxu0 0.0
    %1833 = vmatprep.subr.mxu0 0.0
    %1834 = vmatpush1.xpose.msra.mxu0 0.0
    %1835 = vmatprep.subr.mxu0 0.0
    %1836 = vmatpush1.xpose.msra.mxu0 0.0
    %1837 = vmatprep.subr.mxu0 0.0
    %1838 = vmatpush1.xpose.msra.mxu0 0.0
    %1839 = vmatprep.subr.mxu0 0.0
    %1840 = vmatpush1.xpose.msra.mxu0 0.0
    %1841 = vmatprep.subr.mxu0 0.0
    %1842 = vmatpush1.xpose.msra.mxu0 0.0
    %1843 = vmatprep.subr.mxu0 0.0
    %1844 = vmatpush1.xpose.msra.mxu0 0.0
    %1845 = vmatprep.subr.mxu0 0.0
    %1846 = vmatpush1.xpose.msra.mxu0 %v1813
    %1847 = vmatprep.subr.mxu0 0.0
    %1848 = vmatpush2.xpose.msra.mxu0 0.0
    %1849 = vmatprep.subr.mxu0 0.0
    %1850 = vmatpush2.xpose.msra.mxu0 0.0
    %1851 = vmatprep.subr.mxu0 0.0
    %1852 = vmatpush2.xpose.msra.mxu0 0.0
    %1853 = vmatprep.subr.mxu0 0.0
    %1854 = vmatpush2.xpose.msra.mxu0 0.0
    %1855 = vmatprep.subr.mxu0 0.0
    %1856 = vmatpush2.xpose.msra.mxu0 0.0
    %1857 = vmatprep.subr.mxu0 0.0
    %1858 = vmatpush2.xpose.msra.mxu0 0.0
    %1859 = vmatprep.subr.mxu0 0.0
    %1860 = vmatpush2.xpose.msra.mxu0 0.0
    %1861 = vmatprep.subr.mxu0 0.0
    %1862 = vmatpush2.xpose.msra.mxu0 0.0
    %1863 = vmatprep.subr.mxu0 0.0
    %1864 = vmatpush2.xpose.msra.mxu0 0.0
    %1865 = vmatprep.subr.mxu0 0.0
    %1866 = vmatpush2.xpose.msra.mxu0 0.0
    %1867 = vmatprep.subr.mxu0 0.0
    %1868 = vmatpush2.xpose.msra.mxu0 0.0
    %1869 = vmatprep.subr.mxu0 0.0
    %1870 = vmatpush2.xpose.msra.mxu0 0.0
    %1871 = vmatprep.subr.mxu0 0.0
    %1872 = vmatpush2.xpose.msra.mxu0 0.0
    %1873 = vmatprep.subr.mxu0 0.0
    %1874 = vmatpush2.xpose.msra.mxu0 0.0
    %1875 = vmatprep.subr.mxu0 0.0
    %1876 = vmatpush2.xpose.msra.mxu0 0.0
    %1877 = vmatprep.subr.mxu0 0.0
    %1878 = vmatpush2.xpose.msra.mxu0 0.0
    %1879 = vmatprep.mubr.f32.mxu0 0.0
    %1880 = vmatmul.mubr.f32.gmra.mxu0 %v1811
    %v1881 = vpop.f32.mrf.mxu0
    %v1882 = vadd.f32 0.0, %v1881
    %v1883 = vpop.f32.mrf.mxu0
    %1884 = vdwg.mxu0
    %1885 = vrot.lane.b32.xlu0 %v154, 108
    %v1886 = vpop.permute.xlu0 %1885
    %1887 = vrot.lane.b32.xlu0 %v154, 76
    %v1888 = vpop.permute.xlu0 %1887
    %v1889 = vsel %vm160, %v1886, 0
    %v1891 = vsel %vm160, %v1888, 0
    %1893 = vmatprep.subr.mxu0 0.0
    %1894 = vmatpush1.xpose.msra.mxu0 0.0
    %1895 = vmatprep.subr.mxu0 0.0
    %1896 = vmatpush1.xpose.msra.mxu0 0.0
    %1897 = vmatprep.subr.mxu0 0.0
    %1898 = vmatpush1.xpose.msra.mxu0 0.0
    %1899 = vmatprep.subr.mxu0 0.0
    %1900 = vmatpush1.xpose.msra.mxu0 0.0
    %1901 = vmatprep.subr.mxu0 0.0
    %1902 = vmatpush1.xpose.msra.mxu0 0.0
    %1903 = vmatprep.subr.mxu0 0.0
    %1904 = vmatpush1.xpose.msra.mxu0 0.0
    %1905 = vmatprep.subr.mxu0 0.0
    %1906 = vmatpush1.xpose.msra.mxu0 0.0
    %1907 = vmatprep.subr.mxu0 0.0
    %1908 = vmatpush1.xpose.msra.mxu0 0.0
    %1909 = vmatprep.subr.mxu0 0.0
    %1910 = vmatpush1.xpose.msra.mxu0 0.0
    %1911 = vmatprep.subr.mxu0 0.0
    %1912 = vmatpush1.xpose.msra.mxu0 0.0
    %1913 = vmatprep.subr.mxu0 0.0
    %1914 = vmatpush1.xpose.msra.mxu0 0.0
    %1915 = vmatprep.subr.mxu0 0.0
    %1916 = vmatpush1.xpose.msra.mxu0 0.0
    %1917 = vmatprep.subr.mxu0 0.0
    %1918 = vmatpush1.xpose.msra.mxu0 0.0
    %1919 = vmatprep.subr.mxu0 0.0
    %1920 = vmatpush1.xpose.msra.mxu0 0.0
    %1921 = vmatprep.subr.mxu0 0.0
    %1922 = vmatpush1.xpose.msra.mxu0 0.0
    %1923 = vmatprep.subr.mxu0 0.0
    %1924 = vmatpush1.xpose.msra.mxu0 %v1891
    %1925 = vmatprep.subr.mxu0 0.0
    %1926 = vmatpush2.xpose.msra.mxu0 0.0
    %1927 = vmatprep.subr.mxu0 0.0
    %1928 = vmatpush2.xpose.msra.mxu0 0.0
    %1929 = vmatprep.subr.mxu0 0.0
    %1930 = vmatpush2.xpose.msra.mxu0 0.0
    %1931 = vmatprep.subr.mxu0 0.0
    %1932 = vmatpush2.xpose.msra.mxu0 0.0
    %1933 = vmatprep.subr.mxu0 0.0
    %1934 = vmatpush2.xpose.msra.mxu0 0.0
    %1935 = vmatprep.subr.mxu0 0.0
    %1936 = vmatpush2.xpose.msra.mxu0 0.0
    %1937 = vmatprep.subr.mxu0 0.0
    %1938 = vmatpush2.xpose.msra.mxu0 0.0
    %1939 = vmatprep.subr.mxu0 0.0
    %1940 = vmatpush2.xpose.msra.mxu0 0.0
    %1941 = vmatprep.subr.mxu0 0.0
    %1942 = vmatpush2.xpose.msra.mxu0 0.0
    %1943 = vmatprep.subr.mxu0 0.0
    %1944 = vmatpush2.xpose.msra.mxu0 0.0
    %1945 = vmatprep.subr.mxu0 0.0
    %1946 = vmatpush2.xpose.msra.mxu0 0.0
    %1947 = vmatprep.subr.mxu0 0.0
    %1948 = vmatpush2.xpose.msra.mxu0 0.0
    %1949 = vmatprep.subr.mxu0 0.0
    %1950 = vmatpush2.xpose.msra.mxu0 0.0
    %1951 = vmatprep.subr.mxu0 0.0
    %1952 = vmatpush2.xpose.msra.mxu0 0.0
    %1953 = vmatprep.subr.mxu0 0.0
    %1954 = vmatpush2.xpose.msra.mxu0 0.0
    %1955 = vmatprep.subr.mxu0 0.0
    %1956 = vmatpush2.xpose.msra.mxu0 0.0
    %1957 = vmatprep.mubr.f32.mxu0 0.0
    %1958 = vmatmul.mubr.f32.gmra.mxu0 %v1889
    %v1959 = vpop.f32.mrf.mxu0
    %v1960 = vadd.f32 0.0, %v1959
    %v1961 = vpop.f32.mrf.mxu0
    %1962 = vdwg.mxu0
    %v1963 = vsel %vm312, %v1882, -inf
    %1964 = vmax.xlane.f32.xlu0 %v1963
    %v1965 = vpop.xlane.xlu0 %1964
    %v1966 = vsel %vm312, %v1960, -inf
    %1967 = vmax.xlane.f32.xlu0 %v1966
    %v1968 = vpop.xlane.xlu0 %1967
    %v1969 = vsub.f32 %v1882, %v1965
    %v1970 = vsub.f32 %v1960, %v1968
    %v1971 = vmul.f32 %v1969, 1.442695
    %v1972 = vpow.pop %v1971
    %v1973 = vmul.f32 %v1970, 1.442695
    %v1974 = vpow.pop %v1973
    %v1975 = vsel %vm312, %v1972, 0.0
    %1976 = vadd.xlane.f32.xlu0 %v1975
    %v1977 = vpop.xlane.xlu0 %1976
    %v1978 = vsel %vm312, %v1974, 0.0
    %1979 = vadd.xlane.f32.xlu0 %v1978
    %v1980 = vpop.xlane.xlu0 %1979
    %1981 = vrot.lane.b32.xlu0 %v149, 44
    %v1982 = vpop.permute.xlu0 %1981
    %v1985 = vsel %vm312, %v1972, 0
    %1987 = vmatprep.subr.mxu0 0.0
    %1988 = vmatpush1.msra.mxu0 0.0
    %1989 = vmatprep.subr.mxu0 0.0
    %1990 = vmatpush1.msra.mxu0 0.0
    %1991 = vmatprep.subr.mxu0 0.0
    %1992 = vmatpush1.msra.mxu0 0.0
    %1993 = vmatprep.subr.mxu0 0.0
    %1994 = vmatpush1.msra.mxu0 0.0
    %1995 = vmatprep.subr.mxu0 0.0
    %1996 = vmatpush1.msra.mxu0 0.0
    %1997 = vmatprep.subr.mxu0 0.0
    %1998 = vmatpush1.msra.mxu0 0.0
    %1999 = vmatprep.subr.mxu0 0.0
    %2000 = vmatpush1.msra.mxu0 0.0
    %2001 = vmatprep.subr.mxu0 0.0
    %2002 = vmatpush1.msra.mxu0 0.0
    %2003 = vmatprep.subr.mxu0 0.0
    %2004 = vmatpush1.msra.mxu0 0.0
    %2005 = vmatprep.subr.mxu0 0.0
    %2006 = vmatpush1.msra.mxu0 0.0
    %2007 = vmatprep.subr.mxu0 0.0
    %2008 = vmatpush1.msra.mxu0 0.0
    %2009 = vmatprep.subr.mxu0 0.0
    %2010 = vmatpush1.msra.mxu0 0.0
    %2011 = vmatprep.subr.mxu0 0.0
    %2012 = vmatpush1.msra.mxu0 0.0
    %2013 = vmatprep.subr.mxu0 0.0
    %2014 = vmatpush1.msra.mxu0 0.0
    %2015 = vmatprep.subr.mxu0 0.0
    %2016 = vmatpush1.msra.mxu0 0.0
    %2017 = vmatprep.subr.mxu0 0.0
    %2018 = vmatpush1.msra.mxu0 %v1982
    %2019 = vmatprep.subr.mxu0 0.0
    %2020 = vmatpush2.msra.mxu0 0.0
    %2021 = vmatprep.subr.mxu0 0.0
    %2022 = vmatpush2.msra.mxu0 0.0
    %2023 = vmatprep.subr.mxu0 0.0
    %2024 = vmatpush2.msra.mxu0 0.0
    %2025 = vmatprep.subr.mxu0 0.0
    %2026 = vmatpush2.msra.mxu0 0.0
    %2027 = vmatprep.subr.mxu0 0.0
    %2028 = vmatpush2.msra.mxu0 0.0
    %2029 = vmatprep.subr.mxu0 0.0
    %2030 = vmatpush2.msra.mxu0 0.0
    %2031 = vmatprep.subr.mxu0 0.0
    %2032 = vmatpush2.msra.mxu0 0.0
    %2033 = vmatprep.subr.mxu0 0.0
    %2034 = vmatpush2.msra.mxu0 0.0
    %2035 = vmatprep.subr.mxu0 0.0
    %2036 = vmatpush2.msra.mxu0 0.0
    %2037 = vmatprep.subr.mxu0 0.0
    %2038 = vmatpush2.msra.mxu0 0.0
    %2039 = vmatprep.subr.mxu0 0.0
    %2040 = vmatpush2.msra.mxu0 0.0
    %2041 = vmatprep.subr.mxu0 0.0
    %2042 = vmatpush2.msra.mxu0 0.0
    %2043 = vmatprep.subr.mxu0 0.0
    %2044 = vmatpush2.msra.mxu0 0.0
    %2045 = vmatprep.subr.mxu0 0.0
    %2046 = vmatpush2.msra.mxu0 0.0
    %2047 = vmatprep.subr.mxu0 0.0
    %2048 = vmatpush2.msra.mxu0 0.0
    %2049 = vmatprep.subr.mxu0 0.0
    %2050 = vmatpush2.msra.mxu0 0.0
    %2051 = vmatprep.mubr.f32.mxu0 0.0
    %2052 = vmatmul.mubr.f32.gmra.mxu0 %v1985
    %v2053 = vpop.f32.mrf.mxu0
    %v2054 = vadd.f32 0.0, %v2053
    %v2055 = vpop.f32.mrf.mxu0
    %2056 = vdwg.mxu0
    %2057 = vrot.lane.b32.xlu0 %v154, 44
    %v2058 = vpop.permute.xlu0 %2057
    %v2061 = vsel %vm312, %v1974, 0
    %2063 = vmatprep.subr.mxu0 0.0
    %2064 = vmatpush1.msra.mxu0 0.0
    %2065 = vmatprep.subr.mxu0 0.0
    %2066 = vmatpush1.msra.mxu0 0.0
    %2067 = vmatprep.subr.mxu0 0.0
    %2068 = vmatpush1.msra.mxu0 0.0
    %2069 = vmatprep.subr.mxu0 0.0
    %2070 = vmatpush1.msra.mxu0 0.0
    %2071 = vmatprep.subr.mxu0 0.0
    %2072 = vmatpush1.msra.mxu0 0.0
    %2073 = vmatprep.subr.mxu0 0.0
    %2074 = vmatpush1.msra.mxu0 0.0
    %2075 = vmatprep.subr.mxu0 0.0
    %2076 = vmatpush1.msra.mxu0 0.0
    %2077 = vmatprep.subr.mxu0 0.0
    %2078 = vmatpush1.msra.mxu0 0.0
    %2079 = vmatprep.subr.mxu0 0.0
    %2080 = vmatpush1.msra.mxu0 0.0
    %2081 = vmatprep.subr.mxu0 0.0
    %2082 = vmatpush1.msra.mxu0 0.0
    %2083 = vmatprep.subr.mxu0 0.0
    %2084 = vmatpush1.msra.mxu0 0.0
    %2085 = vmatprep.subr.mxu0 0.0
    %2086 = vmatpush1.msra.mxu0 0.0
    %2087 = vmatprep.subr.mxu0 0.0
    %2088 = vmatpush1.msra.mxu0 0.0
    %2089 = vmatprep.subr.mxu0 0.0
    %2090 = vmatpush1.msra.mxu0 0.0
    %2091 = vmatprep.subr.mxu0 0.0
    %2092 = vmatpush1.msra.mxu0 0.0
    %2093 = vmatprep.subr.mxu0 0.0
    %2094 = vmatpush1.msra.mxu0 %v2058
    %2095 = vmatprep.subr.mxu0 0.0
    %2096 = vmatpush2.msra.mxu0 0.0
    %2097 = vmatprep.subr.mxu0 0.0
    %2098 = vmatpush2.msra.mxu0 0.0
    %2099 = vmatprep.subr.mxu0 0.0
    %2100 = vmatpush2.msra.mxu0 0.0
    %2101 = vmatprep.subr.mxu0 0.0
    %2102 = vmatpush2.msra.mxu0 0.0
    %2103 = vmatprep.subr.mxu0 0.0
    %2104 = vmatpush2.msra.mxu0 0.0
    %2105 = vmatprep.subr.mxu0 0.0
    %2106 = vmatpush2.msra.mxu0 0.0
    %2107 = vmatprep.subr.mxu0 0.0
    %2108 = vmatpush2.msra.mxu0 0.0
    %2109 = vmatprep.subr.mxu0 0.0
    %2110 = vmatpush2.msra.mxu0 0.0
    %2111 = vmatprep.subr.mxu0 0.0
    %2112 = vmatpush2.msra.mxu0 0.0
    %2113 = vmatprep.subr.mxu0 0.0
    %2114 = vmatpush2.msra.mxu0 0.0
    %2115 = vmatprep.subr.mxu0 0.0
    %2116 = vmatpush2.msra.mxu0 0.0
    %2117 = vmatprep.subr.mxu0 0.0
    %2118 = vmatpush2.msra.mxu0 0.0
    %2119 = vmatprep.subr.mxu0 0.0
    %2120 = vmatpush2.msra.mxu0 0.0
    %2121 = vmatprep.subr.mxu0 0.0
    %2122 = vmatpush2.msra.mxu0 0.0
    %2123 = vmatprep.subr.mxu0 0.0
    %2124 = vmatpush2.msra.mxu0 0.0
    %2125 = vmatprep.subr.mxu0 0.0
    %2126 = vmatpush2.msra.mxu0 0.0
    %2127 = vmatprep.mubr.f32.mxu0 0.0
    %2128 = vmatmul.mubr.f32.gmra.mxu0 %v2061
    %v2129 = vpop.f32.mrf.mxu0
    %v2130 = vadd.f32 0.0, %v2129
    %v2131 = vpop.f32.mrf.mxu0
    %2132 = vdwg.mxu0
    %v2133 = vrcp.pop %v1977
    %v2134 = vrcp.pop %v1980
    %v2135 = vmul.f32 %v2054, %v2133
    %v2136 = vmul.f32 %v2130, %v2134
    %2137 = vrot.lane.b32.xlu0 %v149, 104
    %v2138 = vpop.permute.xlu0 %2137
    %2139 = vrot.lane.b32.xlu0 %v149, 72
    %v2140 = vpop.permute.xlu0 %2139
    %v2141 = vsel %vm160, %v2138, 0
    %v2143 = vsel %vm160, %v2140, 0
    %2145 = vmatprep.subr.mxu0 0.0
    %2146 = vmatpush1.xpose.msra.mxu0 0.0
    %2147 = vmatprep.subr.mxu0 0.0
    %2148 = vmatpush1.xpose.msra.mxu0 0.0
    %2149 = vmatprep.subr.mxu0 0.0
    %2150 = vmatpush1.xpose.msra.mxu0 0.0
    %2151 = vmatprep.subr.mxu0 0.0
    %2152 = vmatpush1.xpose.msra.mxu0 0.0
    %2153 = vmatprep.subr.mxu0 0.0
    %2154 = vmatpush1.xpose.msra.mxu0 0.0
    %2155 = vmatprep.subr.mxu0 0.0
    %2156 = vmatpush1.xpose.msra.mxu0 0.0
    %2157 = vmatprep.subr.mxu0 0.0
    %2158 = vmatpush1.xpose.msra.mxu0 0.0
    %2159 = vmatprep.subr.mxu0 0.0
    %2160 = vmatpush1.xpose.msra.mxu0 0.0
    %2161 = vmatprep.subr.mxu0 0.0
    %2162 = vmatpush1.xpose.msra.mxu0 0.0
    %2163 = vmatprep.subr.mxu0 0.0
    %2164 = vmatpush1.xpose.msra.mxu0 0.0
    %2165 = vmatprep.subr.mxu0 0.0
    %2166 = vmatpush1.xpose.msra.mxu0 0.0
    %2167 = vmatprep.subr.mxu0 0.0
    %2168 = vmatpush1.xpose.msra.mxu0 0.0
    %2169 = vmatprep.subr.mxu0 0.0
    %2170 = vmatpush1.xpose.msra.mxu0 0.0
    %2171 = vmatprep.subr.mxu0 0.0
    %2172 = vmatpush1.xpose.msra.mxu0 0.0
    %2173 = vmatprep.subr.mxu0 0.0
    %2174 = vmatpush1.xpose.msra.mxu0 0.0
    %2175 = vmatprep.subr.mxu0 0.0
    %2176 = vmatpush1.xpose.msra.mxu0 %v2143
    %2177 = vmatprep.subr.mxu0 0.0
    %2178 = vmatpush2.xpose.msra.mxu0 0.0
    %2179 = vmatprep.subr.mxu0 0.0
    %2180 = vmatpush2.xpose.msra.mxu0 0.0
    %2181 = vmatprep.subr.mxu0 0.0
    %2182 = vmatpush2.xpose.msra.mxu0 0.0
    %2183 = vmatprep.subr.mxu0 0.0
    %2184 = vmatpush2.xpose.msra.mxu0 0.0
    %2185 = vmatprep.subr.mxu0 0.0
    %2186 = vmatpush2.xpose.msra.mxu0 0.0
    %2187 = vmatprep.subr.mxu0 0.0
    %2188 = vmatpush2.xpose.msra.mxu0 0.0
    %2189 = vmatprep.subr.mxu0 0.0
    %2190 = vmatpush2.xpose.msra.mxu0 0.0
    %2191 = vmatprep.subr.mxu0 0.0
    %2192 = vmatpush2.xpose.msra.mxu0 0.0
    %2193 = vmatprep.subr.mxu0 0.0
    %2194 = vmatpush2.xpose.msra.mxu0 0.0
    %2195 = vmatprep.subr.mxu0 0.0
    %2196 = vmatpush2.xpose.msra.mxu0 0.0
    %2197 = vmatprep.subr.mxu0 0.0
    %2198 = vmatpush2.xpose.msra.mxu0 0.0
    %2199 = vmatprep.subr.mxu0 0.0
    %2200 = vmatpush2.xpose.msra.mxu0 0.0
    %2201 = vmatprep.subr.mxu0 0.0
    %2202 = vmatpush2.xpose.msra.mxu0 0.0
    %2203 = vmatprep.subr.mxu0 0.0
    %2204 = vmatpush2.xpose.msra.mxu0 0.0
    %2205 = vmatprep.subr.mxu0 0.0
    %2206 = vmatpush2.xpose.msra.mxu0 0.0
    %2207 = vmatprep.subr.mxu0 0.0
    %2208 = vmatpush2.xpose.msra.mxu0 0.0
    %2209 = vmatprep.mubr.f32.mxu0 0.0
    %2210 = vmatmul.mubr.f32.gmra.mxu0 %v2141
    %v2211 = vpop.f32.mrf.mxu0
    %v2212 = vadd.f32 0.0, %v2211
    %v2213 = vpop.f32.mrf.mxu0
    %2214 = vdwg.mxu0
    %2215 = vrot.lane.b32.xlu0 %v154, 104
    %v2216 = vpop.permute.xlu0 %2215
    %2217 = vrot.lane.b32.xlu0 %v154, 72
    %v2218 = vpop.permute.xlu0 %2217
    %v2219 = vsel %vm160, %v2216, 0
    %v2221 = vsel %vm160, %v2218, 0
    %2223 = vmatprep.subr.mxu0 0.0
    %2224 = vmatpush1.xpose.msra.mxu0 0.0
    %2225 = vmatprep.subr.mxu0 0.0
    %2226 = vmatpush1.xpose.msra.mxu0 0.0
    %2227 = vmatprep.subr.mxu0 0.0
    %2228 = vmatpush1.xpose.msra.mxu0 0.0
    %2229 = vmatprep.subr.mxu0 0.0
    %2230 = vmatpush1.xpose.msra.mxu0 0.0
    %2231 = vmatprep.subr.mxu0 0.0
    %2232 = vmatpush1.xpose.msra.mxu0 0.0
    %2233 = vmatprep.subr.mxu0 0.0
    %2234 = vmatpush1.xpose.msra.mxu0 0.0
    %2235 = vmatprep.subr.mxu0 0.0
    %2236 = vmatpush1.xpose.msra.mxu0 0.0
    %2237 = vmatprep.subr.mxu0 0.0
    %2238 = vmatpush1.xpose.msra.mxu0 0.0
    %2239 = vmatprep.subr.mxu0 0.0
    %2240 = vmatpush1.xpose.msra.mxu0 0.0
    %2241 = vmatprep.subr.mxu0 0.0
    %2242 = vmatpush1.xpose.msra.mxu0 0.0
    %2243 = vmatprep.subr.mxu0 0.0
    %2244 = vmatpush1.xpose.msra.mxu0 0.0
    %2245 = vmatprep.subr.mxu0 0.0
    %2246 = vmatpush1.xpose.msra.mxu0 0.0
    %2247 = vmatprep.subr.mxu0 0.0
    %2248 = vmatpush1.xpose.msra.mxu0 0.0
    %2249 = vmatprep.subr.mxu0 0.0
    %2250 = vmatpush1.xpose.msra.mxu0 0.0
    %2251 = vmatprep.subr.mxu0 0.0
    %2252 = vmatpush1.xpose.msra.mxu0 0.0
    %2253 = vmatprep.subr.mxu0 0.0
    %2254 = vmatpush1.xpose.msra.mxu0 %v2221
    %2255 = vmatprep.subr.mxu0 0.0
    %2256 = vmatpush2.xpose.msra.mxu0 0.0
    %2257 = vmatprep.subr.mxu0 0.0
    %2258 = vmatpush2.xpose.msra.mxu0 0.0
    %2259 = vmatprep.subr.mxu0 0.0
    %2260 = vmatpush2.xpose.msra.mxu0 0.0
    %2261 = vmatprep.subr.mxu0 0.0
    %2262 = vmatpush2.xpose.msra.mxu0 0.0
    %2263 = vmatprep.subr.mxu0 0.0
    %2264 = vmatpush2.xpose.msra.mxu0 0.0
    %2265 = vmatprep.subr.mxu0 0.0
    %2266 = vmatpush2.xpose.msra.mxu0 0.0
    %2267 = vmatprep.subr.mxu0 0.0
    %2268 = vmatpush2.xpose.msra.mxu0 0.0
    %2269 = vmatprep.subr.mxu0 0.0
    %2270 = vmatpush2.xpose.msra.mxu0 0.0
    %2271 = vmatprep.subr.mxu0 0.0
    %2272 = vmatpush2.xpose.msra.mxu0 0.0
    %2273 = vmatprep.subr.mxu0 0.0
    %2274 = vmatpush2.xpose.msra.mxu0 0.0
    %2275 = vmatprep.subr.mxu0 0.0
    %2276 = vmatpush2.xpose.msra.mxu0 0.0
    %2277 = vmatprep.subr.mxu0 0.0
    %2278 = vmatpush2.xpose.msra.mxu0 0.0
    %2279 = vmatprep.subr.mxu0 0.0
    %2280 = vmatpush2.xpose.msra.mxu0 0.0
    %2281 = vmatprep.subr.mxu0 0.0
    %2282 = vmatpush2.xpose.msra.mxu0 0.0
    %2283 = vmatprep.subr.mxu0 0.0
    %2284 = vmatpush2.xpose.msra.mxu0 0.0
    %2285 = vmatprep.subr.mxu0 0.0
    %2286 = vmatpush2.xpose.msra.mxu0 0.0
    %2287 = vmatprep.mubr.f32.mxu0 0.0
    %2288 = vmatmul.mubr.f32.gmra.mxu0 %v2219
    %v2289 = vpop.f32.mrf.mxu0
    %v2290 = vadd.f32 0.0, %v2289
    %v2291 = vpop.f32.mrf.mxu0
    %2292 = vdwg.mxu0
    %v2293 = vsel %vm312, %v2212, -inf
    %2294 = vmax.xlane.f32.xlu0 %v2293
    %v2295 = vpop.xlane.xlu0 %2294
    %v2296 = vsel %vm312, %v2290, -inf
    %2297 = vmax.xlane.f32.xlu0 %v2296
    %v2298 = vpop.xlane.xlu0 %2297
    %v2299 = vsub.f32 %v2212, %v2295
    %v2300 = vsub.f32 %v2290, %v2298
    %v2301 = vmul.f32 %v2299, 1.442695
    %v2302 = vpow.pop %v2301
    %v2303 = vmul.f32 %v2300, 1.442695
    %v2304 = vpow.pop %v2303
    %v2305 = vsel %vm312, %v2302, 0.0
    %2306 = vadd.xlane.f32.xlu0 %v2305
    %v2307 = vpop.xlane.xlu0 %2306
    %v2308 = vsel %vm312, %v2304, 0.0
    %2309 = vadd.xlane.f32.xlu0 %v2308
    %v2310 = vpop.xlane.xlu0 %2309
    %2311 = vrot.lane.b32.xlu0 %v149, 40
    %v2312 = vpop.permute.xlu0 %2311
    %v2315 = vsel %vm312, %v2302, 0
    %2317 = vmatprep.subr.mxu0 0.0
    %2318 = vmatpush1.msra.mxu0 0.0
    %2319 = vmatprep.subr.mxu0 0.0
    %2320 = vmatpush1.msra.mxu0 0.0
    %2321 = vmatprep.subr.mxu0 0.0
    %2322 = vmatpush1.msra.mxu0 0.0
    %2323 = vmatprep.subr.mxu0 0.0
    %2324 = vmatpush1.msra.mxu0 0.0
    %2325 = vmatprep.subr.mxu0 0.0
    %2326 = vmatpush1.msra.mxu0 0.0
    %2327 = vmatprep.subr.mxu0 0.0
    %2328 = vmatpush1.msra.mxu0 0.0
    %2329 = vmatprep.subr.mxu0 0.0
    %2330 = vmatpush1.msra.mxu0 0.0
    %2331 = vmatprep.subr.mxu0 0.0
    %2332 = vmatpush1.msra.mxu0 0.0
    %2333 = vmatprep.subr.mxu0 0.0
    %2334 = vmatpush1.msra.mxu0 0.0
    %2335 = vmatprep.subr.mxu0 0.0
    %2336 = vmatpush1.msra.mxu0 0.0
    %2337 = vmatprep.subr.mxu0 0.0
    %2338 = vmatpush1.msra.mxu0 0.0
    %2339 = vmatprep.subr.mxu0 0.0
    %2340 = vmatpush1.msra.mxu0 0.0
    %2341 = vmatprep.subr.mxu0 0.0
    %2342 = vmatpush1.msra.mxu0 0.0
    %2343 = vmatprep.subr.mxu0 0.0
    %2344 = vmatpush1.msra.mxu0 0.0
    %2345 = vmatprep.subr.mxu0 0.0
    %2346 = vmatpush1.msra.mxu0 0.0
    %2347 = vmatprep.subr.mxu0 0.0
    %2348 = vmatpush1.msra.mxu0 %v2312
    %2349 = vmatprep.subr.mxu0 0.0
    %2350 = vmatpush2.msra.mxu0 0.0
    %2351 = vmatprep.subr.mxu0 0.0
    %2352 = vmatpush2.msra.mxu0 0.0
    %2353 = vmatprep.subr.mxu0 0.0
    %2354 = vmatpush2.msra.mxu0 0.0
    %2355 = vmatprep.subr.mxu0 0.0
    %2356 = vmatpush2.msra.mxu0 0.0
    %2357 = vmatprep.subr.mxu0 0.0
    %2358 = vmatpush2.msra.mxu0 0.0
    %2359 = vmatprep.subr.mxu0 0.0
    %2360 = vmatpush2.msra.mxu0 0.0
    %2361 = vmatprep.subr.mxu0 0.0
    %2362 = vmatpush2.msra.mxu0 0.0
    %2363 = vmatprep.subr.mxu0 0.0
    %2364 = vmatpush2.msra.mxu0 0.0
    %2365 = vmatprep.subr.mxu0 0.0
    %2366 = vmatpush2.msra.mxu0 0.0
    %2367 = vmatprep.subr.mxu0 0.0
    %2368 = vmatpush2.msra.mxu0 0.0
    %2369 = vmatprep.subr.mxu0 0.0
    %2370 = vmatpush2.msra.mxu0 0.0
    %2371 = vmatprep.subr.mxu0 0.0
    %2372 = vmatpush2.msra.mxu0 0.0
    %2373 = vmatprep.subr.mxu0 0.0
    %2374 = vmatpush2.msra.mxu0 0.0
    %2375 = vmatprep.subr.mxu0 0.0
    %2376 = vmatpush2.msra.mxu0 0.0
    %2377 = vmatprep.subr.mxu0 0.0
    %2378 = vmatpush2.msra.mxu0 0.0
    %2379 = vmatprep.subr.mxu0 0.0
    %2380 = vmatpush2.msra.mxu0 0.0
    %2381 = vmatprep.mubr.f32.mxu0 0.0
    %2382 = vmatmul.mubr.f32.gmra.mxu0 %v2315
    %v2383 = vpop.f32.mrf.mxu0
    %v2384 = vadd.f32 0.0, %v2383
    %v2385 = vpop.f32.mrf.mxu0
    %2386 = vdwg.mxu0
    %2387 = vrot.lane.b32.xlu0 %v154, 40
    %v2388 = vpop.permute.xlu0 %2387
    %v2391 = vsel %vm312, %v2304, 0
    %2393 = vmatprep.subr.mxu0 0.0
    %2394 = vmatpush1.msra.mxu0 0.0
    %2395 = vmatprep.subr.mxu0 0.0
    %2396 = vmatpush1.msra.mxu0 0.0
    %2397 = vmatprep.subr.mxu0 0.0
    %2398 = vmatpush1.msra.mxu0 0.0
    %2399 = vmatprep.subr.mxu0 0.0
    %2400 = vmatpush1.msra.mxu0 0.0
    %2401 = vmatprep.subr.mxu0 0.0
    %2402 = vmatpush1.msra.mxu0 0.0
    %2403 = vmatprep.subr.mxu0 0.0
    %2404 = vmatpush1.msra.mxu0 0.0
    %2405 = vmatprep.subr.mxu0 0.0
    %2406 = vmatpush1.msra.mxu0 0.0
    %2407 = vmatprep.subr.mxu0 0.0
    %2408 = vmatpush1.msra.mxu0 0.0
    %2409 = vmatprep.subr.mxu0 0.0
    %2410 = vmatpush1.msra.mxu0 0.0
    %2411 = vmatprep.subr.mxu0 0.0
    %2412 = vmatpush1.msra.mxu0 0.0
    %2413 = vmatprep.subr.mxu0 0.0
    %2414 = vmatpush1.msra.mxu0 0.0
    %2415 = vmatprep.subr.mxu0 0.0
    %2416 = vmatpush1.msra.mxu0 0.0
    %2417 = vmatprep.subr.mxu0 0.0
    %2418 = vmatpush1.msra.mxu0 0.0
    %2419 = vmatprep.subr.mxu0 0.0
    %2420 = vmatpush1.msra.mxu0 0.0
    %2421 = vmatprep.subr.mxu0 0.0
    %2422 = vmatpush1.msra.mxu0 0.0
    %2423 = vmatprep.subr.mxu0 0.0
    %2424 = vmatpush1.msra.mxu0 %v2388
    %2425 = vmatprep.subr.mxu0 0.0
    %2426 = vmatpush2.msra.mxu0 0.0
    %2427 = vmatprep.subr.mxu0 0.0
    %2428 = vmatpush2.msra.mxu0 0.0
    %2429 = vmatprep.subr.mxu0 0.0
    %2430 = vmatpush2.msra.mxu0 0.0
    %2431 = vmatprep.subr.mxu0 0.0
    %2432 = vmatpush2.msra.mxu0 0.0
    %2433 = vmatprep.subr.mxu0 0.0
    %2434 = vmatpush2.msra.mxu0 0.0
    %2435 = vmatprep.subr.mxu0 0.0
    %2436 = vmatpush2.msra.mxu0 0.0
    %2437 = vmatprep.subr.mxu0 0.0
    %2438 = vmatpush2.msra.mxu0 0.0
    %2439 = vmatprep.subr.mxu0 0.0
    %2440 = vmatpush2.msra.mxu0 0.0
    %2441 = vmatprep.subr.mxu0 0.0
    %2442 = vmatpush2.msra.mxu0 0.0
    %2443 = vmatprep.subr.mxu0 0.0
    %2444 = vmatpush2.msra.mxu0 0.0
    %2445 = vmatprep.subr.mxu0 0.0
    %2446 = vmatpush2.msra.mxu0 0.0
    %2447 = vmatprep.subr.mxu0 0.0
    %2448 = vmatpush2.msra.mxu0 0.0
    %2449 = vmatprep.subr.mxu0 0.0
    %2450 = vmatpush2.msra.mxu0 0.0
    %2451 = vmatprep.subr.mxu0 0.0
    %2452 = vmatpush2.msra.mxu0 0.0
    %2453 = vmatprep.subr.mxu0 0.0
    %2454 = vmatpush2.msra.mxu0 0.0
    %2455 = vmatprep.subr.mxu0 0.0
    %2456 = vmatpush2.msra.mxu0 0.0
    %2457 = vmatprep.mubr.f32.mxu0 0.0
    %2458 = vmatmul.mubr.f32.gmra.mxu0 %v2391
    %v2459 = vpop.f32.mrf.mxu0
    %v2460 = vadd.f32 0.0, %v2459
    %v2461 = vpop.f32.mrf.mxu0
    %2462 = vdwg.mxu0
    %v2463 = vrcp.pop %v2307
    %v2464 = vrcp.pop %v2310
    %v2465 = vmul.f32 %v2384, %v2463
    %v2466 = vmul.f32 %v2460, %v2464
    %2467 = vrot.lane.b32.xlu0 %v149, 100
    %v2468 = vpop.permute.xlu0 %2467
    %2469 = vrot.lane.b32.xlu0 %v149, 68
    %v2470 = vpop.permute.xlu0 %2469
    %v2471 = vsel %vm160, %v2468, 0
    %v2473 = vsel %vm160, %v2470, 0
    %2475 = vmatprep.subr.mxu0 0.0
    %2476 = vmatpush1.xpose.msra.mxu0 0.0
    %2477 = vmatprep.subr.mxu0 0.0
    %2478 = vmatpush1.xpose.msra.mxu0 0.0
    %2479 = vmatprep.subr.mxu0 0.0
    %2480 = vmatpush1.xpose.msra.mxu0 0.0
    %2481 = vmatprep.subr.mxu0 0.0
    %2482 = vmatpush1.xpose.msra.mxu0 0.0
    %2483 = vmatprep.subr.mxu0 0.0
    %2484 = vmatpush1.xpose.msra.mxu0 0.0
    %2485 = vmatprep.subr.mxu0 0.0
    %2486 = vmatpush1.xpose.msra.mxu0 0.0
    %2487 = vmatprep.subr.mxu0 0.0
    %2488 = vmatpush1.xpose.msra.mxu0 0.0
    %2489 = vmatprep.subr.mxu0 0.0
    %2490 = vmatpush1.xpose.msra.mxu0 0.0
    %2491 = vmatprep.subr.mxu0 0.0
    %2492 = vmatpush1.xpose.msra.mxu0 0.0
    %2493 = vmatprep.subr.mxu0 0.0
    %2494 = vmatpush1.xpose.msra.mxu0 0.0
    %2495 = vmatprep.subr.mxu0 0.0
    %2496 = vmatpush1.xpose.msra.mxu0 0.0
    %2497 = vmatprep.subr.mxu0 0.0
    %2498 = vmatpush1.xpose.msra.mxu0 0.0
    %2499 = vmatprep.subr.mxu0 0.0
    %2500 = vmatpush1.xpose.msra.mxu0 0.0
    %2501 = vmatprep.subr.mxu0 0.0
    %2502 = vmatpush1.xpose.msra.mxu0 0.0
    %2503 = vmatprep.subr.mxu0 0.0
    %2504 = vmatpush1.xpose.msra.mxu0 0.0
    %2505 = vmatprep.subr.mxu0 0.0
    %2506 = vmatpush1.xpose.msra.mxu0 %v2473
    %2507 = vmatprep.subr.mxu0 0.0
    %2508 = vmatpush2.xpose.msra.mxu0 0.0
    %2509 = vmatprep.subr.mxu0 0.0
    %2510 = vmatpush2.xpose.msra.mxu0 0.0
    %2511 = vmatprep.subr.mxu0 0.0
    %2512 = vmatpush2.xpose.msra.mxu0 0.0
    %2513 = vmatprep.subr.mxu0 0.0
    %2514 = vmatpush2.xpose.msra.mxu0 0.0
    %2515 = vmatprep.subr.mxu0 0.0
    %2516 = vmatpush2.xpose.msra.mxu0 0.0
    %2517 = vmatprep.subr.mxu0 0.0
    %2518 = vmatpush2.xpose.msra.mxu0 0.0
    %2519 = vmatprep.subr.mxu0 0.0
    %2520 = vmatpush2.xpose.msra.mxu0 0.0
    %2521 = vmatprep.subr.mxu0 0.0
    %2522 = vmatpush2.xpose.msra.mxu0 0.0
    %2523 = vmatprep.subr.mxu0 0.0
    %2524 = vmatpush2.xpose.msra.mxu0 0.0
    %2525 = vmatprep.subr.mxu0 0.0
    %2526 = vmatpush2.xpose.msra.mxu0 0.0
    %2527 = vmatprep.subr.mxu0 0.0
    %2528 = vmatpush2.xpose.msra.mxu0 0.0
    %2529 = vmatprep.subr.mxu0 0.0
    %2530 = vmatpush2.xpose.msra.mxu0 0.0
    %2531 = vmatprep.subr.mxu0 0.0
    %2532 = vmatpush2.xpose.msra.mxu0 0.0
    %2533 = vmatprep.subr.mxu0 0.0
    %2534 = vmatpush2.xpose.msra.mxu0 0.0
    %2535 = vmatprep.subr.mxu0 0.0
    %2536 = vmatpush2.xpose.msra.mxu0 0.0
    %2537 = vmatprep.subr.mxu0 0.0
    %2538 = vmatpush2.xpose.msra.mxu0 0.0
    %2539 = vmatprep.mubr.f32.mxu0 0.0
    %2540 = vmatmul.mubr.f32.gmra.mxu0 %v2471
    %v2541 = vpop.f32.mrf.mxu0
    %v2542 = vadd.f32 0.0, %v2541
    %v2543 = vpop.f32.mrf.mxu0
    %2544 = vdwg.mxu0
    %2545 = vrot.lane.b32.xlu0 %v154, 100
    %v2546 = vpop.permute.xlu0 %2545
    %2547 = vrot.lane.b32.xlu0 %v154, 68
    %v2548 = vpop.permute.xlu0 %2547
    %v2549 = vsel %vm160, %v2546, 0
    %v2551 = vsel %vm160, %v2548, 0
    %2553 = vmatprep.subr.mxu0 0.0
    %2554 = vmatpush1.xpose.msra.mxu0 0.0
    %2555 = vmatprep.subr.mxu0 0.0
    %2556 = vmatpush1.xpose.msra.mxu0 0.0
    %2557 = vmatprep.subr.mxu0 0.0
    %2558 = vmatpush1.xpose.msra.mxu0 0.0
    %2559 = vmatprep.subr.mxu0 0.0
    %2560 = vmatpush1.xpose.msra.mxu0 0.0
    %2561 = vmatprep.subr.mxu0 0.0
    %2562 = vmatpush1.xpose.msra.mxu0 0.0
    %2563 = vmatprep.subr.mxu0 0.0
    %2564 = vmatpush1.xpose.msra.mxu0 0.0
    %2565 = vmatprep.subr.mxu0 0.0
    %2566 = vmatpush1.xpose.msra.mxu0 0.0
    %2567 = vmatprep.subr.mxu0 0.0
    %2568 = vmatpush1.xpose.msra.mxu0 0.0
    %2569 = vmatprep.subr.mxu0 0.0
    %2570 = vmatpush1.xpose.msra.mxu0 0.0
    %2571 = vmatprep.subr.mxu0 0.0
    %2572 = vmatpush1.xpose.msra.mxu0 0.0
    %2573 = vmatprep.subr.mxu0 0.0
    %2574 = vmatpush1.xpose.msra.mxu0 0.0
    %2575 = vmatprep.subr.mxu0 0.0
    %2576 = vmatpush1.xpose.msra.mxu0 0.0
    %2577 = vmatprep.subr.mxu0 0.0
    %2578 = vmatpush1.xpose.msra.mxu0 0.0
    %2579 = vmatprep.subr.mxu0 0.0
    %2580 = vmatpush1.xpose.msra.mxu0 0.0
    %2581 = vmatprep.subr.mxu0 0.0
    %2582 = vmatpush1.xpose.msra.mxu0 0.0
    %2583 = vmatprep.subr.mxu0 0.0
    %2584 = vmatpush1.xpose.msra.mxu0 %v2551
    %2585 = vmatprep.subr.mxu0 0.0
    %2586 = vmatpush2.xpose.msra.mxu0 0.0
    %2587 = vmatprep.subr.mxu0 0.0
    %2588 = vmatpush2.xpose.msra.mxu0 0.0
    %2589 = vmatprep.subr.mxu0 0.0
    %2590 = vmatpush2.xpose.msra.mxu0 0.0
    %2591 = vmatprep.subr.mxu0 0.0
    %2592 = vmatpush2.xpose.msra.mxu0 0.0
    %2593 = vmatprep.subr.mxu0 0.0
    %2594 = vmatpush2.xpose.msra.mxu0 0.0
    %2595 = vmatprep.subr.mxu0 0.0
    %2596 = vmatpush2.xpose.msra.mxu0 0.0
    %2597 = vmatprep.subr.mxu0 0.0
    %2598 = vmatpush2.xpose.msra.mxu0 0.0
    %2599 = vmatprep.subr.mxu0 0.0
    %2600 = vmatpush2.xpose.msra.mxu0 0.0
    %2601 = vmatprep.subr.mxu0 0.0
    %2602 = vmatpush2.xpose.msra.mxu0 0.0
    %2603 = vmatprep.subr.mxu0 0.0
    %2604 = vmatpush2.xpose.msra.mxu0 0.0
    %2605 = vmatprep.subr.mxu0 0.0
    %2606 = vmatpush2.xpose.msra.mxu0 0.0
    %2607 = vmatprep.subr.mxu0 0.0
    %2608 = vmatpush2.xpose.msra.mxu0 0.0
    %2609 = vmatprep.subr.mxu0 0.0
    %2610 = vmatpush2.xpose.msra.mxu0 0.0
    %2611 = vmatprep.subr.mxu0 0.0
    %2612 = vmatpush2.xpose.msra.mxu0 0.0
    %2613 = vmatprep.subr.mxu0 0.0
    %2614 = vmatpush2.xpose.msra.mxu0 0.0
    %2615 = vmatprep.subr.mxu0 0.0
    %2616 = vmatpush2.xpose.msra.mxu0 0.0
    %2617 = vmatprep.mubr.f32.mxu0 0.0
    %2618 = vmatmul.mubr.f32.gmra.mxu0 %v2549
    %v2619 = vpop.f32.mrf.mxu0
    %v2620 = vadd.f32 0.0, %v2619
    %v2621 = vpop.f32.mrf.mxu0
    %2622 = vdwg.mxu0
    %v2623 = vsel %vm312, %v2542, -inf
    %2624 = vmax.xlane.f32.xlu0 %v2623
    %v2625 = vpop.xlane.xlu0 %2624
    %v2626 = vsel %vm312, %v2620, -inf
    %2627 = vmax.xlane.f32.xlu0 %v2626
    %v2628 = vpop.xlane.xlu0 %2627
    %v2629 = vsub.f32 %v2542, %v2625
    %v2630 = vsub.f32 %v2620, %v2628
    %v2631 = vmul.f32 %v2629, 1.442695
    %v2632 = vpow.pop %v2631
    %v2633 = vmul.f32 %v2630, 1.442695
    %v2634 = vpow.pop %v2633
    %v2635 = vsel %vm312, %v2632, 0.0
    %2636 = vadd.xlane.f32.xlu0 %v2635
    %v2637 = vpop.xlane.xlu0 %2636
    %v2638 = vsel %vm312, %v2634, 0.0
    %2639 = vadd.xlane.f32.xlu0 %v2638
    %v2640 = vpop.xlane.xlu0 %2639
    %2641 = vrot.lane.b32.xlu0 %v149, 36
    %v2642 = vpop.permute.xlu0 %2641
    %v2645 = vsel %vm312, %v2632, 0
    %2647 = vmatprep.subr.mxu0 0.0
    %2648 = vmatpush1.msra.mxu0 0.0
    %2649 = vmatprep.subr.mxu0 0.0
    %2650 = vmatpush1.msra.mxu0 0.0
    %2651 = vmatprep.subr.mxu0 0.0
    %2652 = vmatpush1.msra.mxu0 0.0
    %2653 = vmatprep.subr.mxu0 0.0
    %2654 = vmatpush1.msra.mxu0 0.0
    %2655 = vmatprep.subr.mxu0 0.0
    %2656 = vmatpush1.msra.mxu0 0.0
    %2657 = vmatprep.subr.mxu0 0.0
    %2658 = vmatpush1.msra.mxu0 0.0
    %2659 = vmatprep.subr.mxu0 0.0
    %2660 = vmatpush1.msra.mxu0 0.0
    %2661 = vmatprep.subr.mxu0 0.0
    %2662 = vmatpush1.msra.mxu0 0.0
    %2663 = vmatprep.subr.mxu0 0.0
    %2664 = vmatpush1.msra.mxu0 0.0
    %2665 = vmatprep.subr.mxu0 0.0
    %2666 = vmatpush1.msra.mxu0 0.0
    %2667 = vmatprep.subr.mxu0 0.0
    %2668 = vmatpush1.msra.mxu0 0.0
    %2669 = vmatprep.subr.mxu0 0.0
    %2670 = vmatpush1.msra.mxu0 0.0
    %2671 = vmatprep.subr.mxu0 0.0
    %2672 = vmatpush1.msra.mxu0 0.0
    %2673 = vmatprep.subr.mxu0 0.0
    %2674 = vmatpush1.msra.mxu0 0.0
    %2675 = vmatprep.subr.mxu0 0.0
    %2676 = vmatpush1.msra.mxu0 0.0
    %2677 = vmatprep.subr.mxu0 0.0
    %2678 = vmatpush1.msra.mxu0 %v2642
    %2679 = vmatprep.subr.mxu0 0.0
    %2680 = vmatpush2.msra.mxu0 0.0
    %2681 = vmatprep.subr.mxu0 0.0
    %2682 = vmatpush2.msra.mxu0 0.0
    %2683 = vmatprep.subr.mxu0 0.0
    %2684 = vmatpush2.msra.mxu0 0.0
    %2685 = vmatprep.subr.mxu0 0.0
    %2686 = vmatpush2.msra.mxu0 0.0
    %2687 = vmatprep.subr.mxu0 0.0
    %2688 = vmatpush2.msra.mxu0 0.0
    %2689 = vmatprep.subr.mxu0 0.0
    %2690 = vmatpush2.msra.mxu0 0.0
    %2691 = vmatprep.subr.mxu0 0.0
    %2692 = vmatpush2.msra.mxu0 0.0
    %2693 = vmatprep.subr.mxu0 0.0
    %2694 = vmatpush2.msra.mxu0 0.0
    %2695 = vmatprep.subr.mxu0 0.0
    %2696 = vmatpush2.msra.mxu0 0.0
    %2697 = vmatprep.subr.mxu0 0.0
    %2698 = vmatpush2.msra.mxu0 0.0
    %2699 = vmatprep.subr.mxu0 0.0
    %2700 = vmatpush2.msra.mxu0 0.0
    %2701 = vmatprep.subr.mxu0 0.0
    %2702 = vmatpush2.msra.mxu0 0.0
    %2703 = vmatprep.subr.mxu0 0.0
    %2704 = vmatpush2.msra.mxu0 0.0
    %2705 = vmatprep.subr.mxu0 0.0
    %2706 = vmatpush2.msra.mxu0 0.0
    %2707 = vmatprep.subr.mxu0 0.0
    %2708 = vmatpush2.msra.mxu0 0.0
    %2709 = vmatprep.subr.mxu0 0.0
    %2710 = vmatpush2.msra.mxu0 0.0
    %2711 = vmatprep.mubr.f32.mxu0 0.0
    %2712 = vmatmul.mubr.f32.gmra.mxu0 %v2645
    %v2713 = vpop.f32.mrf.mxu0
    %v2714 = vadd.f32 0.0, %v2713
    %v2715 = vpop.f32.mrf.mxu0
    %2716 = vdwg.mxu0
    %2717 = vrot.lane.b32.xlu0 %v154, 36
    %v2718 = vpop.permute.xlu0 %2717
    %v2721 = vsel %vm312, %v2634, 0
    %2723 = vmatprep.subr.mxu0 0.0
    %2724 = vmatpush1.msra.mxu0 0.0
    %2725 = vmatprep.subr.mxu0 0.0
    %2726 = vmatpush1.msra.mxu0 0.0
    %2727 = vmatprep.subr.mxu0 0.0
    %2728 = vmatpush1.msra.mxu0 0.0
    %2729 = vmatprep.subr.mxu0 0.0
    %2730 = vmatpush1.msra.mxu0 0.0
    %2731 = vmatprep.subr.mxu0 0.0
    %2732 = vmatpush1.msra.mxu0 0.0
    %2733 = vmatprep.subr.mxu0 0.0
    %2734 = vmatpush1.msra.mxu0 0.0
    %2735 = vmatprep.subr.mxu0 0.0
    %2736 = vmatpush1.msra.mxu0 0.0
    %2737 = vmatprep.subr.mxu0 0.0
    %2738 = vmatpush1.msra.mxu0 0.0
    %2739 = vmatprep.subr.mxu0 0.0
    %2740 = vmatpush1.msra.mxu0 0.0
    %2741 = vmatprep.subr.mxu0 0.0
    %2742 = vmatpush1.msra.mxu0 0.0
    %2743 = vmatprep.subr.mxu0 0.0
    %2744 = vmatpush1.msra.mxu0 0.0
    %2745 = vmatprep.subr.mxu0 0.0
    %2746 = vmatpush1.msra.mxu0 0.0
    %2747 = vmatprep.subr.mxu0 0.0
    %2748 = vmatpush1.msra.mxu0 0.0
    %2749 = vmatprep.subr.mxu0 0.0
    %2750 = vmatpush1.msra.mxu0 0.0
    %2751 = vmatprep.subr.mxu0 0.0
    %2752 = vmatpush1.msra.mxu0 0.0
    %2753 = vmatprep.subr.mxu0 0.0
    %2754 = vmatpush1.msra.mxu0 %v2718
    %2755 = vmatprep.subr.mxu0 0.0
    %2756 = vmatpush2.msra.mxu0 0.0
    %2757 = vmatprep.subr.mxu0 0.0
    %2758 = vmatpush2.msra.mxu0 0.0
    %2759 = vmatprep.subr.mxu0 0.0
    %2760 = vmatpush2.msra.mxu0 0.0
    %2761 = vmatprep.subr.mxu0 0.0
    %2762 = vmatpush2.msra.mxu0 0.0
    %2763 = vmatprep.subr.mxu0 0.0
    %2764 = vmatpush2.msra.mxu0 0.0
    %2765 = vmatprep.subr.mxu0 0.0
    %2766 = vmatpush2.msra.mxu0 0.0
    %2767 = vmatprep.subr.mxu0 0.0
    %2768 = vmatpush2.msra.mxu0 0.0
    %2769 = vmatprep.subr.mxu0 0.0
    %2770 = vmatpush2.msra.mxu0 0.0
    %2771 = vmatprep.subr.mxu0 0.0
    %2772 = vmatpush2.msra.mxu0 0.0
    %2773 = vmatprep.subr.mxu0 0.0
    %2774 = vmatpush2.msra.mxu0 0.0
    %2775 = vmatprep.subr.mxu0 0.0
    %2776 = vmatpush2.msra.mxu0 0.0
    %2777 = vmatprep.subr.mxu0 0.0
    %2778 = vmatpush2.msra.mxu0 0.0
    %2779 = vmatprep.subr.mxu0 0.0
    %2780 = vmatpush2.msra.mxu0 0.0
    %2781 = vmatprep.subr.mxu0 0.0
    %2782 = vmatpush2.msra.mxu0 0.0
    %2783 = vmatprep.subr.mxu0 0.0
    %2784 = vmatpush2.msra.mxu0 0.0
    %2785 = vmatprep.subr.mxu0 0.0
    %2786 = vmatpush2.msra.mxu0 0.0
    %2787 = vmatprep.mubr.f32.mxu0 0.0
    %2788 = vmatmul.mubr.f32.gmra.mxu0 %v2721
    %v2789 = vpop.f32.mrf.mxu0
    %v2790 = vadd.f32 0.0, %v2789
    %v2791 = vpop.f32.mrf.mxu0
    %2792 = vdwg.mxu0
    %v2793 = vrcp.pop %v2637
    %v2794 = vrcp.pop %v2640
    %v2795 = vmul.f32 %v2714, %v2793
    %v2796 = vmul.f32 %v2790, %v2794
    %2799 = vrot.lane.b32.xlu0 %v815, 4
    %v2800 = vpop.permute.xlu0 %2799
    %2801 = vrot.lane.b32.xlu0 %v816, 4
    %v2802 = vpop.permute.xlu0 %2801
    %2807 = vrot.lane.b32.xlu0 %v1145, 8
    %v2808 = vpop.permute.xlu0 %2807
    %2809 = vrot.lane.b32.xlu0 %v1146, 8
    %v2810 = vpop.permute.xlu0 %2809
    %2815 = vrot.lane.b32.xlu0 %v1475, 12
    %v2816 = vpop.permute.xlu0 %2815
    %2817 = vrot.lane.b32.xlu0 %v1476, 12
    %v2818 = vpop.permute.xlu0 %2817
    %2823 = vrot.lane.b32.xlu0 %v1805, 16
    %v2824 = vpop.permute.xlu0 %2823
    %2825 = vrot.lane.b32.xlu0 %v1806, 16
    %v2826 = vpop.permute.xlu0 %2825
    %2831 = vrot.lane.b32.xlu0 %v2135, 20
    %v2832 = vpop.permute.xlu0 %2831
    %2833 = vrot.lane.b32.xlu0 %v2136, 20
    %v2834 = vpop.permute.xlu0 %2833
    %2839 = vrot.lane.b32.xlu0 %v2465, 24
    %v2840 = vpop.permute.xlu0 %2839
    %2841 = vrot.lane.b32.xlu0 %v2466, 24
    %v2842 = vpop.permute.xlu0 %2841
    %2847 = vrot.lane.b32.xlu0 %v2795, 28
    %v2848 = vpop.permute.xlu0 %2847
    %2849 = vrot.lane.b32.xlu0 %v2796, 28
    %v2850 = vpop.permute.xlu0 %2849
    %v2853 = vsel %vm160, %v485, %v2800
    %v2854 = vsel %vm160, %v486, %v2802
    %v2855 = vsel %vm312, %v2853, %v2808
    %v2856 = vsel %vm312, %v2854, %v2810
    %vm2857 = vcmask 97280
    %v2858 = vsel %vm2857, %v2855, %v2816
    %v2859 = vsel %vm2857, %v2856, %v2818
    %vm2860 = vcmask 130048
    %v2861 = vsel %vm2860, %v2858, %v2824
    %v2862 = vsel %vm2860, %v2859, %v2826
    %vm2863 = vcmask 162816
    %v2864 = vsel %vm2863, %v2861, %v2832
    %v2865 = vsel %vm2863, %v2862, %v2834
    %vm2866 = vcmask 195584
    %v2867 = vsel %vm2866, %v2864, %v2840
    %v2868 = vsel %vm2866, %v2865, %v2842
    %vm2869 = vcmask 228352
    %v2870 = vsel %vm2869, %v2867, %v2848
    %v2871 = vsel %vm2869, %v2868, %v2850
    %v2872 = vld [vmem:[#allocation7] sm:$0xff]
    %v2873 = vld [vmem:[#allocation7 + $0x8] sm:$0xff]
    %v2874 = vld [vmem:[#allocation7 + $0x10] sm:$0xff]
    %v2875 = vld [vmem:[#allocation7 + $0x18] sm:$0xff]
    %v2876 = vld [vmem:[%s4] sm:$0x1]
    %v2878 = vlaneseq
    %v2879 = vshrl.u32 %v2878, 7
    %v2880 = vsub.s32 0, %v2879
    %v2881 = vrot.slane %v2876, %v2880
    %v2884 = vsel %vm75, %v2870, 0
    %v2887 = vsel %vm75, %v2871, 0
    %2889 = vmatprep.subr.mxu0 0.0
    %2890 = vmatpush1.msra.mxu0 0.0
    %2891 = vmatprep.subr.mxu0 0.0
    %2892 = vmatpush1.msra.mxu0 0.0
    %2893 = vmatprep.subr.mxu0 0.0
    %2894 = vmatpush1.msra.mxu0 0.0
    %2895 = vmatprep.subr.mxu0 0.0
    %2896 = vmatpush1.msra.mxu0 0.0
    %2897 = vmatprep.subr.mxu0 0.0
    %2898 = vmatpush1.msra.mxu0 0.0
    %2899 = vmatprep.subr.mxu0 0.0
    %2900 = vmatpush1.msra.mxu0 0.0
    %2901 = vmatprep.subr.mxu0 0.0
    %2902 = vmatpush1.msra.mxu0 0.0
    %2903 = vmatprep.subr.mxu0 0.0
    %2904 = vmatpush1.msra.mxu0 0.0
    %2905 = vmatprep.subr.mxu0 0.0
    %2906 = vmatpush1.msra.mxu0 0.0
    %2907 = vmatprep.subr.mxu0 0.0
    %2908 = vmatpush1.msra.mxu0 0.0
    %2909 = vmatprep.subr.mxu0 0.0
    %2910 = vmatpush1.msra.mxu0 0.0
    %2911 = vmatprep.subr.mxu0 0.0
    %2912 = vmatpush1.msra.mxu0 0.0
    %2913 = vmatprep.subr.mxu0 0.0
    %2914 = vmatpush1.msra.mxu0 %v2875
    %2915 = vmatprep.subr.mxu0 0.0
    %2916 = vmatpush1.msra.mxu0 %v2874
    %2917 = vmatprep.subr.mxu0 0.0
    %2918 = vmatpush1.msra.mxu0 %v2873
    %2919 = vmatprep.subr.mxu0 0.0
    %2920 = vmatpush1.msra.mxu0 %v2872
    %2921 = vmatprep.subr.mxu0 0.0
    %2922 = vmatpush2.msra.mxu0 0.0
    %2923 = vmatprep.subr.mxu0 0.0
    %2924 = vmatpush2.msra.mxu0 0.0
    %2925 = vmatprep.subr.mxu0 0.0
    %2926 = vmatpush2.msra.mxu0 0.0
    %2927 = vmatprep.subr.mxu0 0.0
    %2928 = vmatpush2.msra.mxu0 0.0
    %2929 = vmatprep.subr.mxu0 0.0
    %2930 = vmatpush2.msra.mxu0 0.0
    %2931 = vmatprep.subr.mxu0 0.0
    %2932 = vmatpush2.msra.mxu0 0.0
    %2933 = vmatprep.subr.mxu0 0.0
    %2934 = vmatpush2.msra.mxu0 0.0
    %2935 = vmatprep.subr.mxu0 0.0
    %2936 = vmatpush2.msra.mxu0 0.0
    %2937 = vmatprep.subr.mxu0 0.0
    %2938 = vmatpush2.msra.mxu0 0.0
    %2939 = vmatprep.subr.mxu0 0.0
    %2940 = vmatpush2.msra.mxu0 0.0
    %2941 = vmatprep.subr.mxu0 0.0
    %2942 = vmatpush2.msra.mxu0 0.0
    %2943 = vmatprep.subr.mxu0 0.0
    %2944 = vmatpush2.msra.mxu0 0.0
    %2945 = vmatprep.subr.mxu0 0.0
    %2946 = vmatpush2.msra.mxu0 0.0
    %2947 = vmatprep.subr.mxu0 0.0
    %2948 = vmatpush2.msra.mxu0 0.0
    %2949 = vmatprep.subr.mxu0 0.0
    %2950 = vmatpush2.msra.mxu0 0.0
    %2951 = vmatprep.subr.mxu0 0.0
    %2952 = vmatpush2.msra.mxu0 0.0
    %2953 = vmatprep.mubr.f32.mxu0 0.0
    %2954 = vmatmul.mubr.f32.gmra.mxu0 %v2884
    %v2955 = vpop.f32.mrf.mxu0
    %v2956 = vadd.f32 %v2881, %v2955
    %v2957 = vpop.f32.mrf.mxu0
    %2958 = vmatprep.mubr.f32.mxu0 0.0
    %2959 = vmatmul.mubr.f32.gmra.mxu0 %v2887
    %v2960 = vpop.f32.mrf.mxu0
    %v2961 = vadd.f32 %v2881, %v2960
    %v2962 = vpop.f32.mrf.mxu0
    %2963 = vdwg.mxu0
    %2964 = vst [vmem:[#allocation8] sm:$0xff] %v2956
    %2965 = vst [vmem:[#allocation8 + $0x8] sm:$0xff] %v2961
    // Predicated region
    $region34: #{tpu_custom_call.1} parent=1 // pred_check
      _
    $region35: #{tpu_custom_call.1} parent=1 // pred_check_branch
      %2967 = sbr.rel (0) target = $region37
    $region36: #{tpu_custom_call.1} parent=1 // pred_region
      %s2969 = ssub.s32 256, 256
      %2970 = vsyncadd [#allocation4], %s2969
      %s2971 = sshll.u32 [#allocation8], 4
      %s2972 = int_to_ptr.vmem [resolvable:$true] %s2971
      %2977 = dma.vmem_to_hbm [thread:$0]  %s2972, 256, %s5, [#allocation4], 128, 128, 8
    $region37: #{tpu_custom_call.1} parent=1 // pred_fallthru
      _
    // Predicated region
    $region38: #{tpu_custom_call.1} parent=1 // pred_check
      _
    $region39: #{tpu_custom_call.1} parent=1 // pred_check_branch
      %2979 = sbr.rel (0) target = $region41
    $region40: #{tpu_custom_call.1} parent=1 // pred_region
      %2980 = dma.done [#allocation4], 256
    $region41: #{tpu_custom_call.1} parent=1 // pred_fallthru
      _
    %2981 = vsyncpa [#allocation3], 1
    %2982 = vsyncpa [#allocation6], 1
    %2983 = vsyncpa [#allocation4], 1

</llo_original>
